<compile_context>
chip_gen: v6e
topology: v6e:2x2x1
jax: 0.10.0
libtpu: 0.0.40
codegen_flags: <defaults>
</compile_context>

<pallas_src>
import functools

import numpy as np
import jax
import jax.numpy as jnp
from jax.experimental import pallas as pl
from jax.experimental.pallas import tpu as pltpu

LN_EPS = 1e-5


# ----------------------------------------------------------------------------
# Pallas kernel: one grid step == NB sequences (token-0-only classifier path).
# ----------------------------------------------------------------------------
def _transformer_kernel(dims, lane_dense,
                        emb_ref,
                        wall, ball,
                        wp1, wp2, bp,
                        lng, lnb,
                        w1, b1, w2, b2,
                        w3r, b3,
                        out_ref):
    dk, dv, dq = dims
    NB, T, H = emb_ref.shape

    x = emb_ref[...]                                  # (NB, T, H) bf16
    x_flat = x.reshape(NB * T, H)                     # NB*T rows feed the MXU

    # ---- ONE fused [K1|K2|V1|V2|Q1|Q2] projection for ALL tokens (bf16 MXU,
    #      f32 accumulation).  Q columns are pre-scaled by 1/sqrt(dk). ----
    proj = jnp.dot(x_flat, wall[...],
                   preferred_element_type=jnp.float32) + ball[...]
    proj = proj.reshape(NB, T, 2 * (dk + dv + dq))    # (NB, T, C) f32

    K = proj[:, :, 0:2 * dk]                          # (NB, T, 2*dk)  [k1 | k2]
    V = proj[:, :, 2 * dk:2 * (dk + dv)]              # (NB, T, 2*dv)  [v1 | v2]
    q = proj[:, 0, 2 * (dk + dv):]                    # (NB, 2*dq) token-0 queries

    # ---- attention for the single query row: VPU math, both heads batched in
    #      the lane dimension (no degenerate 1 x dk x T MXU passes). ----
    prod = K * q[:, None, :]                          # (NB, T, 2*dk) f32
    s1 = jnp.sum(prod[:, :, :dk], axis=-1, keepdims=True)    # (NB, T, 1)
    s2 = jnp.sum(prod[:, :, dk:], axis=-1, keepdims=True)    # (NB, T, 1)

    def attend(s, v):
        # softmax over the T (key) axis, all in f32
        s = s - jnp.max(s, axis=1, keepdims=True)
        e = jnp.exp(s)
        p = e / jnp.sum(e, axis=1, keepdims=True)     # (NB, T, 1)
        return jnp.sum(p * v, axis=1, keepdims=True)[:, 0, :]   # (NB, dv)

    h1 = attend(s1, V[:, :, :dv])
    h2 = attend(s2, V[:, :, dv:])

    # concat([h1, h2]) @ Wp  ==  h1 @ Wp[:dv] + h2 @ Wp[dv:]   (weights pre-split)
    mh = (jnp.dot(h1.astype(jnp.bfloat16), wp1[...],
                  preferred_element_type=jnp.float32)
          + jnp.dot(h2.astype(jnp.bfloat16), wp2[...],
                    preferred_element_type=jnp.float32)
          + bp[...])                                  # (NB, H) f32

    gamma = lng[...]                                  # read once per step
    beta = lnb[...]

    def layernorm(z):                                 # f32 LayerNorm
        mu = jnp.mean(z, axis=-1, keepdims=True)
        var = jnp.mean((z - mu) ** 2, axis=-1, keepdims=True)
        return (z - mu) * jax.lax.rsqrt(var + LN_EPS) * gamma + beta

    x0 = x[:, 0, :].astype(jnp.float32)               # classifier-token residual
    attn0 = layernorm(mh + x0)                        # (NB, H)

    # ---- feedforward (token-0 rows only), bf16 operands / f32 accumulation ----
    hidden = jnp.maximum(
        jnp.dot(attn0.astype(jnp.bfloat16), w1[...],
                preferred_element_type=jnp.float32) + b1[...], 0.0)   # (NB, dff)
    ff = jnp.dot(hidden.astype(jnp.bfloat16), w2[...],
                 preferred_element_type=jnp.float32) + b2[...]        # (NB, H)
    ff0 = layernorm(ff + attn0)                       # (NB, H)

    # ---- final linear (H, 1): VPU dot (no N=1 MXU pass) + sigmoid ----
    logits = jnp.sum(ff0 * w3r[...], axis=-1, keepdims=True) + b3[...]  # (NB, 1)
    probs = jax.nn.sigmoid(logits)

    if lane_dense:
        out_ref[...] = probs.reshape(1, NB)           # lane-dense row -> unmasked vst
    else:
        out_ref[...] = probs                          # conservative column layout


# ----------------------------------------------------------------------------
# Batch-block picker: big blocks (>=128 -> NB*T rows >= 1024 per MXU pass),
# but >= 2 grid steps when the batch allows it (v7x megacore), and a multiple
# of 128 so the lane-dense output block stays aligned.
# ----------------------------------------------------------------------------
def _pick_block(n, block_n):
    if n <= 128:
        return max(8, pl.next_power_of_2(n))          # one step covers the batch
    nb = max(128, (n // 2) // 128 * 128)               # >= 2 steps, 128-aligned
    return min(int(block_n), nb)


# ----------------------------------------------------------------------------
# Wrapper: embedding gather (glue) + weight packing + pallas_call
# ----------------------------------------------------------------------------
def transformer_forward(inputs, params, block_n=256):
    N, T = inputs.shape
    H = params["token_emb"].shape[1]
    dk = int(params["dim_k"])
    dv = int(params["dim_v"])
    dq = int(params["dim_q"])
    assert dq == dk, "q.k^T requires dim_q == dim_k"
    dff = int(params["w1"].shape[1])

    # Glue: embedding lookup + positional embedding (gather, outside kernel).
    # bf16 halves the per-step emb DMA and runs the MXU at its bf16 rate.
    emb = (params["token_emb"][inputs]
           + params["pos_emb"][jnp.arange(T)][None, :, :]).astype(jnp.bfloat16)

    NB = _pick_block(N, block_n)
    Npad = pl.cdiv(N, NB) * NB
    if Npad != N:
        emb = jnp.pad(emb, ((0, Npad - N), (0, 0), (0, 0)))
    grid = (Npad // NB,)

    # Pack [Wk1|Wk2|Wv1|Wv2|Wq1|Wq2] into ONE projection operand; fold the
    # 1/sqrt(dk) score scale into the Q columns (free, done once here).
    s = np.float32(1.0 / np.sqrt(dk))
    wall = jnp.concatenate([params["wk1"], params["wk2"],
                            params["wv1"], params["wv2"],
                            params["wq1"] * s, params["wq2"] * s], axis=1)
    ball = jnp.concatenate([params["bk1"], params["bk2"],
                            params["bv1"], params["bv2"],
                            params["bq1"] * s, params["bq2"] * s], axis=1)

    bf = lambda a: a.astype(jnp.bfloat16)
    weights = [bf(wall), ball,                                   # packed K/V/Q
               bf(params["wp1"]), bf(params["wp2"]), params["bp"],
               params["lng"], params["lnb"],
               bf(params["w1"]), params["b1"],
               bf(params["w2"]), params["b2"],
               params["w3"].reshape(1, H), params["b3"]]         # final linear (VPU, f32)

    kern = functools.partial(_transformer_kernel, (dk, dv, dq))

    # Advisory cost estimate (scheduling hint only).
    flops = int(2 * Npad * T * H * wall.shape[1]
                + 2 * Npad * (2 * dv * H + 2 * H * dff + H))
    bytes_accessed = int(emb.size * 2
                         + sum(int(w.size) * w.dtype.itemsize for w in weights)
                         + Npad * 4)
    cost = pl.CostEstimate(flops=flops,
                           transcendentals=int(Npad * (2 * T + 1)),
                           bytes_accessed=bytes_accessed)

    def run(lane_dense, resident_weights):
        if resident_weights:
            # Grid-invariant weights: map the whole array into VMEM once
            # (single copy, no per-step double-buffering).
            w_specs = [pl.BlockSpec(memory_space=pltpu.MemorySpace.VMEM)
                       for _ in weights]
        else:
            w_specs = [pl.BlockSpec(w.shape, lambda i, _nd=w.ndim: (0,) * _nd)
                       for w in weights]

        if lane_dense:
            out_shape = jax.ShapeDtypeStruct((1, Npad), jnp.float32)
            out_spec = pl.BlockSpec((1, NB), lambda i: (0, i))
        else:
            out_shape = jax.ShapeDtypeStruct((Npad, 1), jnp.float32)
            out_spec = pl.BlockSpec((NB, 1), lambda i: (i, 0))

        out = pl.pallas_call(
            functools.partial(kern, lane_dense),
            out_shape=out_shape,
            grid=grid,
            in_specs=[pl.BlockSpec((NB, T, H), lambda i: (i, 0, 0))] + w_specs,
            out_specs=out_spec,
            compiler_params=pltpu.CompilerParams(
                dimension_semantics=("parallel",)),   # batch axis -> both TCs on v7x
            cost_estimate=cost,
        )(emb, *weights)
        out = jax.block_until_ready(out)
        if lane_dense:
            return out[0, :N].reshape(N, 1)
        return out[:N]

    try:
        # Primary path: lane-dense (1, NB) output rows + VMEM-resident weights.
        return run(lane_dense=True, resident_weights=True)
    except Exception:
        # Conservative fallback (proven-clean layout) in case this Mosaic
        # version rejects the column->row output relayout or the unblocked
        # VMEM-resident weight specs; all other optimizations are kept.
        return run(lane_dense=False, resident_weights=False)


# ----------------------------------------------------------------------------
# Deterministic parameter init (matches the PyTorch module's shapes)
# ----------------------------------------------------------------------------
def init_params(key, vocab, H, dk, dv, dq, dff, max_length):
    keys = iter(jax.random.split(key, 32))

    def lin(fan_in, fan_out):
        bound = 1.0 / np.sqrt(fan_in)
        w = jax.random.uniform(next(keys), (fan_in, fan_out), jnp.float32, -bound, bound)
        b = jax.random.uniform(next(keys), (1, fan_out), jnp.float32, -bound, bound)
        return w, b

    p = {}
    p["token_emb"] = jax.random.normal(next(keys), (vocab, H), jnp.float32)
    p["pos_emb"] = jax.random.normal(next(keys), (max_length, H), jnp.float32)
    p["wk1"], p["bk1"] = lin(H, dk)
    p["wv1"], p["bv1"] = lin(H, dv)
    p["wq1"], p["bq1"] = lin(H, dq)
    p["wk2"], p["bk2"] = lin(H, dk)
    p["wv2"], p["bv2"] = lin(H, dv)
    p["wq2"], p["bq2"] = lin(H, dq)
    wp_full, p["bp"] = lin(2 * dv, H)             # attention_head_projection
    p["wp1"], p["wp2"] = wp_full[:dv, :], wp_full[dv:, :]
    p["lng"] = jnp.ones((1, H), jnp.float32)      # LayerNorm gamma
    p["lnb"] = jnp.zeros((1, H), jnp.float32)     # LayerNorm beta
    p["w1"], p["b1"] = lin(H, dff)
    p["w2"], p["b2"] = lin(dff, H)
    p["w3"], p["b3"] = lin(H, 1)
    p["dim_k"] = dk
    p["dim_v"] = dv
    p["dim_q"] = dq
    return p


# ----------------------------------------------------------------------------
# Pure-JAX f32 reference (mirrors PyTorch semantics) for validation
# ----------------------------------------------------------------------------
def reference_forward(inputs, p):
    N, T = inputs.shape
    x = (p["token_emb"][inputs] + p["pos_emb"][jnp.arange(T)][None]).astype(jnp.float32)

    def softmax(s):
        s = s - s.max(-1, keepdims=True)
        e = jnp.exp(s)
        return e / e.sum(-1, keepdims=True)

    def head(wq, bq, wk, bk, wv, bv):
        q = x @ wq + bq
        k = x @ wk + bk
        v = x @ wv + bv
        s = jnp.einsum("ntd,nsd->nts", q, k) / np.sqrt(p["dim_k"])
        return jnp.einsum("nts,nsd->ntd", softmax(s), v)

    def layernorm(z):
        mu = z.mean(-1, keepdims=True)
        var = ((z - mu) ** 2).mean(-1, keepdims=True)
        return (z - mu) / jnp.sqrt(var + LN_EPS) * p["lng"] + p["lnb"]

    h1 = head(p["wq1"], p["bq1"], p["wk1"], p["bk1"], p["wv1"], p["bv1"])
    h2 = head(p["wq2"], p["bq2"], p["wk2"], p["bk2"], p["wv2"], p["bv2"])
    mh = jnp.concatenate([h1, h2], axis=-1)
    wp_full = jnp.concatenate([p["wp1"], p["wp2"]], axis=0)
    attn_out = layernorm(mh @ wp_full + p["bp"] + x)
    ff = jnp.maximum(attn_out @ p["w1"] + p["b1"], 0.0) @ p["w2"] + p["b2"]
    ff_out = layernorm(ff + attn_out)
    logits = ff_out[:, 0, :] @ p["w3"] + p["b3"]
    return jax.nn.sigmoid(logits)


if __name__ == "__main__":
    # Small shapes consistent with the module's forward.
    N, T = 2, 8          # batch, sequence length (<= max_length)
    H = 32               # hidden_dim (divisible by num_heads=2)
    dk = dv = dq = 16    # key / value / query dims
    dff = 64             # feedforward dim
    vocab = 50
    max_length = 43

    key = jax.random.PRNGKey(0)
    params = init_params(key, vocab, H, dk, dv, dq, dff, max_length)
    inputs = jax.random.randint(jax.random.fold_in(key, 123), (N, T), 0, vocab,
                                dtype=jnp.int32)

    out = transformer_forward(inputs, params)
    out = jax.block_until_ready(out)
    assert out.shape == (N, 1)

    ref = reference_forward(inputs, params)
    # bf16 MXU operands (f32 accumulation) -> tolerance loosened vs f32 reference.
    np.testing.assert_allclose(np.asarray(out), np.asarray(ref), rtol=2e-2, atol=2e-2)
    print("KERNEL_OK")
</pallas_src>

<mosaic_0001>
module attributes {stable_mosaic.version = 11 : i64} {
  func.func @_transformer_kernel(%arg0: i32, %arg1: memref<8x8x32xbf16, #tpu.memory_space<vmem>>, %arg2: memref<32x96xbf16, #tpu.memory_space<vmem>>, %arg3: memref<1x96xf32, #tpu.memory_space<vmem>>, %arg4: memref<16x32xbf16, #tpu.memory_space<vmem>>, %arg5: memref<16x32xbf16, #tpu.memory_space<vmem>>, %arg6: memref<1x32xf32, #tpu.memory_space<vmem>>, %arg7: memref<1x32xf32, #tpu.memory_space<vmem>>, %arg8: memref<1x32xf32, #tpu.memory_space<vmem>>, %arg9: memref<32x64xbf16, #tpu.memory_space<vmem>>, %arg10: memref<1x64xf32, #tpu.memory_space<vmem>>, %arg11: memref<64x32xbf16, #tpu.memory_space<vmem>>, %arg12: memref<1x32xf32, #tpu.memory_space<vmem>>, %arg13: memref<1x32xf32, #tpu.memory_space<vmem>>, %arg14: memref<1x1xf32, #tpu.memory_space<vmem>>, %arg15: memref<1x8xf32, #tpu.memory_space<vmem>>) attributes {dimension_semantics = [#tpu.dimension_semantics<parallel>], iteration_bounds = array<i64: 1>, scalar_prefetch = 0 : i64, scratch_operands = 0 : i64, tpu.core_type = #tpu.core_type<tc>, window_params = [{transform_indices = @transform_0, window_bounds = array<i64: 8, 8, 32>}, {pipeline_mode = #tpu.pipeline_mode<synchronous>, transform_indices = @transform_1, window_bounds = array<i64: 32, 96>}, {pipeline_mode = #tpu.pipeline_mode<synchronous>, transform_indices = @transform_2, window_bounds = array<i64: 1, 96>}, {pipeline_mode = #tpu.pipeline_mode<synchronous>, transform_indices = @transform_3, window_bounds = array<i64: 16, 32>}, {pipeline_mode = #tpu.pipeline_mode<synchronous>, transform_indices = @transform_4, window_bounds = array<i64: 16, 32>}, {pipeline_mode = #tpu.pipeline_mode<synchronous>, transform_indices = @transform_5, window_bounds = array<i64: 1, 32>}, {pipeline_mode = #tpu.pipeline_mode<synchronous>, transform_indices = @transform_6, window_bounds = array<i64: 1, 32>}, {pipeline_mode = #tpu.pipeline_mode<synchronous>, transform_indices = @transform_7, window_bounds = array<i64: 1, 32>}, {pipeline_mode = #tpu.pipeline_mode<synchronous>, transform_indices = @transform_8, window_bounds = array<i64: 32, 64>}, {pipeline_mode = #tpu.pipeline_mode<synchronous>, transform_indices = @transform_9, window_bounds = array<i64: 1, 64>}, {pipeline_mode = #tpu.pipeline_mode<synchronous>, transform_indices = @transform_10, window_bounds = array<i64: 64, 32>}, {pipeline_mode = #tpu.pipeline_mode<synchronous>, transform_indices = @transform_11, window_bounds = array<i64: 1, 32>}, {pipeline_mode = #tpu.pipeline_mode<synchronous>, transform_indices = @transform_12, window_bounds = array<i64: 1, 32>}, {pipeline_mode = #tpu.pipeline_mode<synchronous>, transform_indices = @transform_13, window_bounds = array<i64: 1, 1>}, {transform_indices = @transform_14, window_bounds = array<i64: 1, 8>}]} {
    %c0 = arith.constant 0 : index
    %c0_0 = arith.constant 0 : index
    %c0_1 = arith.constant 0 : index
    %0 = vector.load %arg1[%c0, %c0_0, %c0_1] : memref<8x8x32xbf16, #tpu.memory_space<vmem>>, vector<8x8x32xbf16>
    %1 = vector.shape_cast %0 : vector<8x8x32xbf16> to vector<64x32xbf16>
    %c0_2 = arith.constant 0 : index
    %c0_3 = arith.constant 0 : index
    %2 = vector.load %arg2[%c0_2, %c0_3] : memref<32x96xbf16, #tpu.memory_space<vmem>>, vector<32x96xbf16>
    %cst = arith.constant dense<0.000000e+00> : vector<64x96xf32>
    %3 = tpu.matmul %1, %2, %cst {dimension_numbers = #tpu.dot_dimension_numbers<[1], [0], [0], [1], [0, 0, 1, 1], [], []>} : vector<64x32xbf16>, vector<32x96xbf16>, vector<64x96xf32> -> vector<64x96xf32>
    %c0_4 = arith.constant 0 : index
    %c0_5 = arith.constant 0 : index
    %4 = vector.load %arg3[%c0_4, %c0_5] : memref<1x96xf32, #tpu.memory_space<vmem>>, vector<1x96xf32>
    %5 = vector.broadcast %4 : vector<1x96xf32> to vector<64x96xf32>
    %6 = arith.addf %3, %5 : vector<64x96xf32>
    %7 = vector.shape_cast %6 : vector<64x96xf32> to vector<8x8x96xf32>
    %8 = vector.extract_strided_slice %7 {offsets = [0, 0, 0], sizes = [8, 8, 32], strides = [1, 1, 1]} : vector<8x8x96xf32> to vector<8x8x32xf32>
    %9 = vector.extract_strided_slice %7 {offsets = [0, 0, 32], sizes = [8, 8, 32], strides = [1, 1, 1]} : vector<8x8x96xf32> to vector<8x8x32xf32>
    %10 = vector.extract_strided_slice %7 {offsets = [0, 0, 64], sizes = [8, 1, 32], strides = [1, 1, 1]} : vector<8x8x96xf32> to vector<8x1x32xf32>
    %11 = vector.shape_cast %10 : vector<8x1x32xf32> to vector<8x32xf32>
    %12 = vector.shape_cast %11 : vector<8x32xf32> to vector<8x1x32xf32>
    %13 = vector.broadcast %12 : vector<8x1x32xf32> to vector<8x8x32xf32>
    %14 = arith.mulf %8, %13 : vector<8x8x32xf32>
    %15 = vector.extract_strided_slice %14 {offsets = [0, 0, 0], sizes = [8, 8, 16], strides = [1, 1, 1]} : vector<8x8x32xf32> to vector<8x8x16xf32>
    %cst_6 = arith.constant dense<0.000000e+00> : vector<8x8xf32>
    %16 = vector.multi_reduction <add>, %15, %cst_6 [2] : vector<8x8x16xf32> to vector<8x8xf32>
    %17 = vector.shape_cast %16 : vector<8x8xf32> to vector<8x8x1xf32>
    %18 = vector.extract_strided_slice %14 {offsets = [0, 0, 16], sizes = [8, 8, 16], strides = [1, 1, 1]} : vector<8x8x32xf32> to vector<8x8x16xf32>
    %cst_7 = arith.constant dense<0.000000e+00> : vector<8x8xf32>
    %19 = vector.multi_reduction <add>, %18, %cst_7 [2] : vector<8x8x16xf32> to vector<8x8xf32>
    %20 = vector.shape_cast %19 : vector<8x8xf32> to vector<8x8x1xf32>
    %21 = vector.extract_strided_slice %9 {offsets = [0, 0, 0], sizes = [8, 8, 16], strides = [1, 1, 1]} : vector<8x8x32xf32> to vector<8x8x16xf32>
    %cst_8 = arith.constant dense<0xFF800000> : vector<8x1xf32>
    %22 = vector.multi_reduction <maximumf>, %17, %cst_8 [1] : vector<8x8x1xf32> to vector<8x1xf32>
    %23 = vector.shape_cast %22 : vector<8x1xf32> to vector<8x1x1xf32>
    %24 = vector.broadcast %23 : vector<8x1x1xf32> to vector<8x8x1xf32>
    %25 = arith.subf %17, %24 : vector<8x8x1xf32>
    %26 = math.exp %25 : vector<8x8x1xf32>
    %cst_9 = arith.constant dense<0.000000e+00> : vector<8x1xf32>
    %27 = vector.multi_reduction <add>, %26, %cst_9 [1] : vector<8x8x1xf32> to vector<8x1xf32>
    %28 = vector.shape_cast %27 : vector<8x1xf32> to vector<8x1x1xf32>
    %29 = vector.broadcast %28 : vector<8x1x1xf32> to vector<8x8x1xf32>
    %30 = arith.divf %26, %29 : vector<8x8x1xf32>
    %31 = vector.broadcast %30 : vector<8x8x1xf32> to vector<8x8x16xf32>
    %32 = arith.mulf %31, %21 : vector<8x8x16xf32>
    %cst_10 = arith.constant dense<0.000000e+00> : vector<8x16xf32>
    %33 = vector.multi_reduction <add>, %32, %cst_10 [1] : vector<8x8x16xf32> to vector<8x16xf32>
    %34 = vector.shape_cast %33 : vector<8x16xf32> to vector<8x1x16xf32>
    %35 = vector.shape_cast %34 : vector<8x1x16xf32> to vector<8x16xf32>
    %36 = vector.extract_strided_slice %9 {offsets = [0, 0, 16], sizes = [8, 8, 16], strides = [1, 1, 1]} : vector<8x8x32xf32> to vector<8x8x16xf32>
    %cst_11 = arith.constant dense<0xFF800000> : vector<8x1xf32>
    %37 = vector.multi_reduction <maximumf>, %20, %cst_11 [1] : vector<8x8x1xf32> to vector<8x1xf32>
    %38 = vector.shape_cast %37 : vector<8x1xf32> to vector<8x1x1xf32>
    %39 = vector.broadcast %38 : vector<8x1x1xf32> to vector<8x8x1xf32>
    %40 = arith.subf %20, %39 : vector<8x8x1xf32>
    %41 = math.exp %40 : vector<8x8x1xf32>
    %cst_12 = arith.constant dense<0.000000e+00> : vector<8x1xf32>
    %42 = vector.multi_reduction <add>, %41, %cst_12 [1] : vector<8x8x1xf32> to vector<8x1xf32>
    %43 = vector.shape_cast %42 : vector<8x1xf32> to vector<8x1x1xf32>
    %44 = vector.broadcast %43 : vector<8x1x1xf32> to vector<8x8x1xf32>
    %45 = arith.divf %41, %44 : vector<8x8x1xf32>
    %46 = vector.broadcast %45 : vector<8x8x1xf32> to vector<8x8x16xf32>
    %47 = arith.mulf %46, %36 : vector<8x8x16xf32>
    %cst_13 = arith.constant dense<0.000000e+00> : vector<8x16xf32>
    %48 = vector.multi_reduction <add>, %47, %cst_13 [1] : vector<8x8x16xf32> to vector<8x16xf32>
    %49 = vector.shape_cast %48 : vector<8x16xf32> to vector<8x1x16xf32>
    %50 = vector.shape_cast %49 : vector<8x1x16xf32> to vector<8x16xf32>
    %51 = arith.truncf %35 : vector<8x16xf32> to vector<8x16xbf16>
    %c0_14 = arith.constant 0 : index
    %c0_15 = arith.constant 0 : index
    %52 = vector.load %arg4[%c0_14, %c0_15] : memref<16x32xbf16, #tpu.memory_space<vmem>>, vector<16x32xbf16>
    %cst_16 = arith.constant dense<0.000000e+00> : vector<8x32xf32>
    %53 = tpu.matmul %51, %52, %cst_16 {dimension_numbers = #tpu.dot_dimension_numbers<[1], [0], [0], [1], [0, 0, 1, 1], [], []>} : vector<8x16xbf16>, vector<16x32xbf16>, vector<8x32xf32> -> vector<8x32xf32>
    %54 = arith.truncf %50 : vector<8x16xf32> to vector<8x16xbf16>
    %c0_17 = arith.constant 0 : index
    %c0_18 = arith.constant 0 : index
    %55 = vector.load %arg5[%c0_17, %c0_18] : memref<16x32xbf16, #tpu.memory_space<vmem>>, vector<16x32xbf16>
    %cst_19 = arith.constant dense<0.000000e+00> : vector<8x32xf32>
    %56 = tpu.matmul %54, %55, %cst_19 {dimension_numbers = #tpu.dot_dimension_numbers<[1], [0], [0], [1], [0, 0, 1, 1], [], []>} : vector<8x16xbf16>, vector<16x32xbf16>, vector<8x32xf32> -> vector<8x32xf32>
    %57 = arith.addf %53, %56 : vector<8x32xf32>
    %c0_20 = arith.constant 0 : index
    %c0_21 = arith.constant 0 : index
    %58 = vector.load %arg6[%c0_20, %c0_21] : memref<1x32xf32, #tpu.memory_space<vmem>>, vector<1x32xf32>
    %59 = vector.broadcast %58 : vector<1x32xf32> to vector<8x32xf32>
    %60 = arith.addf %57, %59 : vector<8x32xf32>
    %c0_22 = arith.constant 0 : index
    %c0_23 = arith.constant 0 : index
    %61 = vector.load %arg7[%c0_22, %c0_23] : memref<1x32xf32, #tpu.memory_space<vmem>>, vector<1x32xf32>
    %c0_24 = arith.constant 0 : index
    %c0_25 = arith.constant 0 : index
    %62 = vector.load %arg8[%c0_24, %c0_25] : memref<1x32xf32, #tpu.memory_space<vmem>>, vector<1x32xf32>
    %63 = vector.extract_strided_slice %0 {offsets = [0, 0, 0], sizes = [8, 1, 32], strides = [1, 1, 1]} : vector<8x8x32xbf16> to vector<8x1x32xbf16>
    %64 = vector.shape_cast %63 : vector<8x1x32xbf16> to vector<8x32xbf16>
    %65 = arith.extf %64 : vector<8x32xbf16> to vector<8x32xf32>
    %66 = arith.addf %60, %65 : vector<8x32xf32>
    %cst_26 = arith.constant dense<0.000000e+00> : vector<8xf32>
    %67 = vector.multi_reduction <add>, %66, %cst_26 [1] : vector<8x32xf32> to vector<8xf32>
    %68 = vector.shape_cast %67 : vector<8xf32> to vector<8x1xf32>
    %cst_27 = arith.constant 3.200000e+01 : f32
    %69 = vector.broadcast %cst_27 : f32 to vector<8x1xf32>
    %70 = arith.divf %68, %69 : vector<8x1xf32>
    %71 = vector.broadcast %70 : vector<8x1xf32> to vector<8x32xf32>
    %72 = arith.subf %66, %71 : vector<8x32xf32>
    %73 = arith.mulf %72, %72 : vector<8x32xf32>
    %cst_28 = arith.constant dense<0.000000e+00> : vector<8xf32>
    %74 = vector.multi_reduction <add>, %73, %cst_28 [1] : vector<8x32xf32> to vector<8xf32>
    %75 = vector.shape_cast %74 : vector<8xf32> to vector<8x1xf32>
    %cst_29 = arith.constant 3.200000e+01 : f32
    %76 = vector.broadcast %cst_29 : f32 to vector<8x1xf32>
    %77 = arith.divf %75, %76 : vector<8x1xf32>
    %78 = vector.broadcast %70 : vector<8x1xf32> to vector<8x32xf32>
    %79 = arith.subf %66, %78 : vector<8x32xf32>
    %cst_30 = arith.constant 9.99999974E-6 : f32
    %80 = vector.broadcast %cst_30 : f32 to vector<8x1xf32>
    %81 = arith.addf %77, %80 : vector<8x1xf32>
    %82 = math.rsqrt %81 : vector<8x1xf32>
    %83 = vector.broadcast %82 : vector<8x1xf32> to vector<8x32xf32>
    %84 = arith.mulf %79, %83 : vector<8x32xf32>
    %85 = vector.broadcast %61 : vector<1x32xf32> to vector<8x32xf32>
    %86 = arith.mulf %84, %85 : vector<8x32xf32>
    %87 = vector.broadcast %62 : vector<1x32xf32> to vector<8x32xf32>
    %88 = arith.addf %86, %87 : vector<8x32xf32>
    %89 = arith.truncf %88 : vector<8x32xf32> to vector<8x32xbf16>
    %c0_31 = arith.constant 0 : index
    %c0_32 = arith.constant 0 : index
    %90 = vector.load %arg9[%c0_31, %c0_32] : memref<32x64xbf16, #tpu.memory_space<vmem>>, vector<32x64xbf16>
    %cst_33 = arith.constant dense<0.000000e+00> : vector<8x64xf32>
    %91 = tpu.matmul %89, %90, %cst_33 {dimension_numbers = #tpu.dot_dimension_numbers<[1], [0], [0], [1], [0, 0, 1, 1], [], []>} : vector<8x32xbf16>, vector<32x64xbf16>, vector<8x64xf32> -> vector<8x64xf32>
    %c0_34 = arith.constant 0 : index
    %c0_35 = arith.constant 0 : index
    %92 = vector.load %arg10[%c0_34, %c0_35] : memref<1x64xf32, #tpu.memory_space<vmem>>, vector<1x64xf32>
    %93 = vector.broadcast %92 : vector<1x64xf32> to vector<8x64xf32>
    %94 = arith.addf %91, %93 : vector<8x64xf32>
    %cst_36 = arith.constant 0.000000e+00 : f32
    %95 = vector.broadcast %cst_36 : f32 to vector<8x64xf32>
    %96 = arith.maximumf %94, %95 : vector<8x64xf32>
    %97 = arith.truncf %96 : vector<8x64xf32> to vector<8x64xbf16>
    %c0_37 = arith.constant 0 : index
    %c0_38 = arith.constant 0 : index
    %98 = vector.load %arg11[%c0_37, %c0_38] : memref<64x32xbf16, #tpu.memory_space<vmem>>, vector<64x32xbf16>
    %cst_39 = arith.constant dense<0.000000e+00> : vector<8x32xf32>
    %99 = tpu.matmul %97, %98, %cst_39 {dimension_numbers = #tpu.dot_dimension_numbers<[1], [0], [0], [1], [0, 0, 1, 1], [], []>} : vector<8x64xbf16>, vector<64x32xbf16>, vector<8x32xf32> -> vector<8x32xf32>
    %c0_40 = arith.constant 0 : index
    %c0_41 = arith.constant 0 : index
    %100 = vector.load %arg12[%c0_40, %c0_41] : memref<1x32xf32, #tpu.memory_space<vmem>>, vector<1x32xf32>
    %101 = vector.broadcast %100 : vector<1x32xf32> to vector<8x32xf32>
    %102 = arith.addf %99, %101 : vector<8x32xf32>
    %103 = arith.addf %102, %88 : vector<8x32xf32>
    %cst_42 = arith.constant dense<0.000000e+00> : vector<8xf32>
    %104 = vector.multi_reduction <add>, %103, %cst_42 [1] : vector<8x32xf32> to vector<8xf32>
    %105 = vector.shape_cast %104 : vector<8xf32> to vector<8x1xf32>
    %cst_43 = arith.constant 3.200000e+01 : f32
    %106 = vector.broadcast %cst_43 : f32 to vector<8x1xf32>
    %107 = arith.divf %105, %106 : vector<8x1xf32>
    %108 = vector.broadcast %107 : vector<8x1xf32> to vector<8x32xf32>
    %109 = arith.subf %103, %108 : vector<8x32xf32>
    %110 = arith.mulf %109, %109 : vector<8x32xf32>
    %cst_44 = arith.constant dense<0.000000e+00> : vector<8xf32>
    %111 = vector.multi_reduction <add>, %110, %cst_44 [1] : vector<8x32xf32> to vector<8xf32>
    %112 = vector.shape_cast %111 : vector<8xf32> to vector<8x1xf32>
    %cst_45 = arith.constant 3.200000e+01 : f32
    %113 = vector.broadcast %cst_45 : f32 to vector<8x1xf32>
    %114 = arith.divf %112, %113 : vector<8x1xf32>
    %115 = vector.broadcast %107 : vector<8x1xf32> to vector<8x32xf32>
    %116 = arith.subf %103, %115 : vector<8x32xf32>
    %cst_46 = arith.constant 9.99999974E-6 : f32
    %117 = vector.broadcast %cst_46 : f32 to vector<8x1xf32>
    %118 = arith.addf %114, %117 : vector<8x1xf32>
    %119 = math.rsqrt %118 : vector<8x1xf32>
    %120 = vector.broadcast %119 : vector<8x1xf32> to vector<8x32xf32>
    %121 = arith.mulf %116, %120 : vector<8x32xf32>
    %122 = vector.broadcast %61 : vector<1x32xf32> to vector<8x32xf32>
    %123 = arith.mulf %121, %122 : vector<8x32xf32>
    %124 = vector.broadcast %62 : vector<1x32xf32> to vector<8x32xf32>
    %125 = arith.addf %123, %124 : vector<8x32xf32>
    %c0_47 = arith.constant 0 : index
    %c0_48 = arith.constant 0 : index
    %126 = vector.load %arg13[%c0_47, %c0_48] : memref<1x32xf32, #tpu.memory_space<vmem>>, vector<1x32xf32>
    %127 = vector.broadcast %126 : vector<1x32xf32> to vector<8x32xf32>
    %128 = arith.mulf %125, %127 : vector<8x32xf32>
    %cst_49 = arith.constant dense<0.000000e+00> : vector<8xf32>
    %129 = vector.multi_reduction <add>, %128, %cst_49 [1] : vector<8x32xf32> to vector<8xf32>
    %130 = vector.shape_cast %129 : vector<8xf32> to vector<8x1xf32>
    %c0_50 = arith.constant 0 : index
    %c0_51 = arith.constant 0 : index
    %131 = vector.load %arg14[%c0_50, %c0_51] : memref<1x1xf32, #tpu.memory_space<vmem>>, vector<1x1xf32>
    %132 = vector.broadcast %131 : vector<1x1xf32> to vector<8x1xf32>
    %133 = arith.addf %130, %132 : vector<8x1xf32>
    %134 = arith.negf %133 : vector<8x1xf32>
    %135 = math.exp %134 : vector<8x1xf32>
    %cst_52 = arith.constant 1.000000e+00 : f32
    %136 = vector.broadcast %cst_52 : f32 to vector<8x1xf32>
    %137 = arith.addf %136, %135 : vector<8x1xf32>
    %138 = arith.divf %136, %137 : vector<8x1xf32>
    %139 = vector.shape_cast %138 : vector<8x1xf32> to vector<1x8xf32>
    %c0_53 = arith.constant 0 : index
    %c0_54 = arith.constant 0 : index
    %140 = vector.load %arg15[%c0_53, %c0_54] : memref<1x8xf32, #tpu.memory_space<vmem>>, vector<1x8xf32>
    tpu.vector_store %arg15[%c0_53, %c0_54], %139 {strides = array<i32>} : memref<1x8xf32, #tpu.memory_space<vmem>>, vector<1x8xf32>,
    return
  }
  func.func @transform_0(%arg0: i32) -> (i32, i32, i32) {
    %c0_i32 = arith.constant 0 : i32
    %c0_i32_0 = arith.constant 0 : i32
    %c0_i32_1 = arith.constant 0 : i32
    return %arg0, %c0_i32, %c0_i32_0 : i32, i32, i32
  }
  func.func @transform_1(%arg0: i32) -> (i32, i32) {
    %c0_i32 = arith.constant 0 : i32
    %c0_i32_0 = arith.constant 0 : i32
    %c0_i32_1 = arith.constant 0 : i32
    return %c0_i32, %c0_i32_0 : i32, i32
  }
  func.func @transform_2(%arg0: i32) -> (i32, i32) {
    %c0_i32 = arith.constant 0 : i32
    %c0_i32_0 = arith.constant 0 : i32
    %c0_i32_1 = arith.constant 0 : i32
    return %c0_i32, %c0_i32_0 : i32, i32
  }
  func.func @transform_3(%arg0: i32) -> (i32, i32) {
    %c0_i32 = arith.constant 0 : i32
    %c0_i32_0 = arith.constant 0 : i32
    %c0_i32_1 = arith.constant 0 : i32
    return %c0_i32, %c0_i32_0 : i32, i32
  }
  func.func @transform_4(%arg0: i32) -> (i32, i32) {
    %c0_i32 = arith.constant 0 : i32
    %c0_i32_0 = arith.constant 0 : i32
    %c0_i32_1 = arith.constant 0 : i32
    return %c0_i32, %c0_i32_0 : i32, i32
  }
  func.func @transform_5(%arg0: i32) -> (i32, i32) {
    %c0_i32 = arith.constant 0 : i32
    %c0_i32_0 = arith.constant 0 : i32
    %c0_i32_1 = arith.constant 0 : i32
    return %c0_i32, %c0_i32_0 : i32, i32
  }
  func.func @transform_6(%arg0: i32) -> (i32, i32) {
    %c0_i32 = arith.constant 0 : i32
    %c0_i32_0 = arith.constant 0 : i32
    %c0_i32_1 = arith.constant 0 : i32
    return %c0_i32, %c0_i32_0 : i32, i32
  }
  func.func @transform_7(%arg0: i32) -> (i32, i32) {
    %c0_i32 = arith.constant 0 : i32
    %c0_i32_0 = arith.constant 0 : i32
    %c0_i32_1 = arith.constant 0 : i32
    return %c0_i32, %c0_i32_0 : i32, i32
  }
  func.func @transform_8(%arg0: i32) -> (i32, i32) {
    %c0_i32 = arith.constant 0 : i32
    %c0_i32_0 = arith.constant 0 : i32
    %c0_i32_1 = arith.constant 0 : i32
    return %c0_i32, %c0_i32_0 : i32, i32
  }
  func.func @transform_9(%arg0: i32) -> (i32, i32) {
    %c0_i32 = arith.constant 0 : i32
    %c0_i32_0 = arith.constant 0 : i32
    %c0_i32_1 = arith.constant 0 : i32
    return %c0_i32, %c0_i32_0 : i32, i32
  }
  func.func @transform_10(%arg0: i32) -> (i32, i32) {
    %c0_i32 = arith.constant 0 : i32
    %c0_i32_0 = arith.constant 0 : i32
    %c0_i32_1 = arith.constant 0 : i32
    return %c0_i32, %c0_i32_0 : i32, i32
  }
  func.func @transform_11(%arg0: i32) -> (i32, i32) {
    %c0_i32 = arith.constant 0 : i32
    %c0_i32_0 = arith.constant 0 : i32
    %c0_i32_1 = arith.constant 0 : i32
    return %c0_i32, %c0_i32_0 : i32, i32
  }
  func.func @transform_12(%arg0: i32) -> (i32, i32) {
    %c0_i32 = arith.constant 0 : i32
    %c0_i32_0 = arith.constant 0 : i32
    %c0_i32_1 = arith.constant 0 : i32
    return %c0_i32, %c0_i32_0 : i32, i32
  }
  func.func @transform_13(%arg0: i32) -> (i32, i32) {
    %c0_i32 = arith.constant 0 : i32
    %c0_i32_0 = arith.constant 0 : i32
    %c0_i32_1 = arith.constant 0 : i32
    return %c0_i32, %c0_i32_0 : i32, i32
  }
  func.func @transform_14(%arg0: i32) -> (i32, i32) {
    %c0_i32 = arith.constant 0 : i32
    %c0_i32_0 = arith.constant 0 : i32
    return %c0_i32, %arg0 : i32, i32
  }
}

module attributes {stable_mosaic.version = 11 : i64} {
  func.func @_transformer_kernel(%arg0: i32, %arg1: memref<8x8x32xbf16, #tpu.memory_space<vmem>>, %arg2: memref<32x96xbf16, #tpu.memory_space<vmem>>, %arg3: memref<1x96xf32, #tpu.memory_space<vmem>>, %arg4: memref<16x32xbf16, #tpu.memory_space<vmem>>, %arg5: memref<16x32xbf16, #tpu.memory_space<vmem>>, %arg6: memref<1x32xf32, #tpu.memory_space<vmem>>, %arg7: memref<1x32xf32, #tpu.memory_space<vmem>>, %arg8: memref<1x32xf32, #tpu.memory_space<vmem>>, %arg9: memref<32x64xbf16, #tpu.memory_space<vmem>>, %arg10: memref<1x64xf32, #tpu.memory_space<vmem>>, %arg11: memref<64x32xbf16, #tpu.memory_space<vmem>>, %arg12: memref<1x32xf32, #tpu.memory_space<vmem>>, %arg13: memref<1x32xf32, #tpu.memory_space<vmem>>, %arg14: memref<1x1xf32, #tpu.memory_space<vmem>>, %arg15: memref<8x1xf32, #tpu.memory_space<vmem>>) attributes {dimension_semantics = [#tpu.dimension_semantics<parallel>], iteration_bounds = array<i64: 1>, scalar_prefetch = 0 : i64, scratch_operands = 0 : i64, tpu.core_type = #tpu.core_type<tc>, window_params = [{transform_indices = @transform_0, window_bounds = array<i64: 8, 8, 32>}, {pipeline_mode = #tpu.pipeline_mode<synchronous>, transform_indices = @transform_1, window_bounds = array<i64: 32, 96>}, {pipeline_mode = #tpu.pipeline_mode<synchronous>, transform_indices = @transform_2, window_bounds = array<i64: 1, 96>}, {pipeline_mode = #tpu.pipeline_mode<synchronous>, transform_indices = @transform_3, window_bounds = array<i64: 16, 32>}, {pipeline_mode = #tpu.pipeline_mode<synchronous>, transform_indices = @transform_4, window_bounds = array<i64: 16, 32>}, {pipeline_mode = #tpu.pipeline_mode<synchronous>, transform_indices = @transform_5, window_bounds = array<i64: 1, 32>}, {pipeline_mode = #tpu.pipeline_mode<synchronous>, transform_indices = @transform_6, window_bounds = array<i64: 1, 32>}, {pipeline_mode = #tpu.pipeline_mode<synchronous>, transform_indices = @transform_7, window_bounds = array<i64: 1, 32>}, {pipeline_mode = #tpu.pipeline_mode<synchronous>, transform_indices = @transform_8, window_bounds = array<i64: 32, 64>}, {pipeline_mode = #tpu.pipeline_mode<synchronous>, transform_indices = @transform_9, window_bounds = array<i64: 1, 64>}, {pipeline_mode = #tpu.pipeline_mode<synchronous>, transform_indices = @transform_10, window_bounds = array<i64: 64, 32>}, {pipeline_mode = #tpu.pipeline_mode<synchronous>, transform_indices = @transform_11, window_bounds = array<i64: 1, 32>}, {pipeline_mode = #tpu.pipeline_mode<synchronous>, transform_indices = @transform_12, window_bounds = array<i64: 1, 32>}, {pipeline_mode = #tpu.pipeline_mode<synchronous>, transform_indices = @transform_13, window_bounds = array<i64: 1, 1>}, {transform_indices = @transform_14, window_bounds = array<i64: 8, 1>}]} {
    %c0 = arith.constant 0 : index
    %c0_0 = arith.constant 0 : index
    %c0_1 = arith.constant 0 : index
    %0 = vector.load %arg1[%c0, %c0_0, %c0_1] : memref<8x8x32xbf16, #tpu.memory_space<vmem>>, vector<8x8x32xbf16>
    %1 = vector.shape_cast %0 : vector<8x8x32xbf16> to vector<64x32xbf16>
    %c0_2 = arith.constant 0 : index
    %c0_3 = arith.constant 0 : index
    %2 = vector.load %arg2[%c0_2, %c0_3] : memref<32x96xbf16, #tpu.memory_space<vmem>>, vector<32x96xbf16>
    %cst = arith.constant dense<0.000000e+00> : vector<64x96xf32>
    %3 = tpu.matmul %1, %2, %cst {dimension_numbers = #tpu.dot_dimension_numbers<[1], [0], [0], [1], [0, 0, 1, 1], [], []>} : vector<64x32xbf16>, vector<32x96xbf16>, vector<64x96xf32> -> vector<64x96xf32>
    %c0_4 = arith.constant 0 : index
    %c0_5 = arith.constant 0 : index
    %4 = vector.load %arg3[%c0_4, %c0_5] : memref<1x96xf32, #tpu.memory_space<vmem>>, vector<1x96xf32>
    %5 = vector.broadcast %4 : vector<1x96xf32> to vector<64x96xf32>
    %6 = arith.addf %3, %5 : vector<64x96xf32>
    %7 = vector.shape_cast %6 : vector<64x96xf32> to vector<8x8x96xf32>
    %8 = vector.extract_strided_slice %7 {offsets = [0, 0, 0], sizes = [8, 8, 32], strides = [1, 1, 1]} : vector<8x8x96xf32> to vector<8x8x32xf32>
    %9 = vector.extract_strided_slice %7 {offsets = [0, 0, 32], sizes = [8, 8, 32], strides = [1, 1, 1]} : vector<8x8x96xf32> to vector<8x8x32xf32>
    %10 = vector.extract_strided_slice %7 {offsets = [0, 0, 64], sizes = [8, 1, 32], strides = [1, 1, 1]} : vector<8x8x96xf32> to vector<8x1x32xf32>
    %11 = vector.shape_cast %10 : vector<8x1x32xf32> to vector<8x32xf32>
    %12 = vector.shape_cast %11 : vector<8x32xf32> to vector<8x1x32xf32>
    %13 = vector.broadcast %12 : vector<8x1x32xf32> to vector<8x8x32xf32>
    %14 = arith.mulf %8, %13 : vector<8x8x32xf32>
    %15 = vector.extract_strided_slice %14 {offsets = [0, 0, 0], sizes = [8, 8, 16], strides = [1, 1, 1]} : vector<8x8x32xf32> to vector<8x8x16xf32>
    %cst_6 = arith.constant dense<0.000000e+00> : vector<8x8xf32>
    %16 = vector.multi_reduction <add>, %15, %cst_6 [2] : vector<8x8x16xf32> to vector<8x8xf32>
    %17 = vector.shape_cast %16 : vector<8x8xf32> to vector<8x8x1xf32>
    %18 = vector.extract_strided_slice %14 {offsets = [0, 0, 16], sizes = [8, 8, 16], strides = [1, 1, 1]} : vector<8x8x32xf32> to vector<8x8x16xf32>
    %cst_7 = arith.constant dense<0.000000e+00> : vector<8x8xf32>
    %19 = vector.multi_reduction <add>, %18, %cst_7 [2] : vector<8x8x16xf32> to vector<8x8xf32>
    %20 = vector.shape_cast %19 : vector<8x8xf32> to vector<8x8x1xf32>
    %21 = vector.extract_strided_slice %9 {offsets = [0, 0, 0], sizes = [8, 8, 16], strides = [1, 1, 1]} : vector<8x8x32xf32> to vector<8x8x16xf32>
    %cst_8 = arith.constant dense<0xFF800000> : vector<8x1xf32>
    %22 = vector.multi_reduction <maximumf>, %17, %cst_8 [1] : vector<8x8x1xf32> to vector<8x1xf32>
    %23 = vector.shape_cast %22 : vector<8x1xf32> to vector<8x1x1xf32>
    %24 = vector.broadcast %23 : vector<8x1x1xf32> to vector<8x8x1xf32>
    %25 = arith.subf %17, %24 : vector<8x8x1xf32>
    %26 = math.exp %25 : vector<8x8x1xf32>
    %cst_9 = arith.constant dense<0.000000e+00> : vector<8x1xf32>
    %27 = vector.multi_reduction <add>, %26, %cst_9 [1] : vector<8x8x1xf32> to vector<8x1xf32>
    %28 = vector.shape_cast %27 : vector<8x1xf32> to vector<8x1x1xf32>
    %29 = vector.broadcast %28 : vector<8x1x1xf32> to vector<8x8x1xf32>
    %30 = arith.divf %26, %29 : vector<8x8x1xf32>
    %31 = vector.broadcast %30 : vector<8x8x1xf32> to vector<8x8x16xf32>
    %32 = arith.mulf %31, %21 : vector<8x8x16xf32>
    %cst_10 = arith.constant dense<0.000000e+00> : vector<8x16xf32>
    %33 = vector.multi_reduction <add>, %32, %cst_10 [1] : vector<8x8x16xf32> to vector<8x16xf32>
    %34 = vector.shape_cast %33 : vector<8x16xf32> to vector<8x1x16xf32>
    %35 = vector.shape_cast %34 : vector<8x1x16xf32> to vector<8x16xf32>
    %36 = vector.extract_strided_slice %9 {offsets = [0, 0, 16], sizes = [8, 8, 16], strides = [1, 1, 1]} : vector<8x8x32xf32> to vector<8x8x16xf32>
    %cst_11 = arith.constant dense<0xFF800000> : vector<8x1xf32>
    %37 = vector.multi_reduction <maximumf>, %20, %cst_11 [1] : vector<8x8x1xf32> to vector<8x1xf32>
    %38 = vector.shape_cast %37 : vector<8x1xf32> to vector<8x1x1xf32>
    %39 = vector.broadcast %38 : vector<8x1x1xf32> to vector<8x8x1xf32>
    %40 = arith.subf %20, %39 : vector<8x8x1xf32>
    %41 = math.exp %40 : vector<8x8x1xf32>
    %cst_12 = arith.constant dense<0.000000e+00> : vector<8x1xf32>
    %42 = vector.multi_reduction <add>, %41, %cst_12 [1] : vector<8x8x1xf32> to vector<8x1xf32>
    %43 = vector.shape_cast %42 : vector<8x1xf32> to vector<8x1x1xf32>
    %44 = vector.broadcast %43 : vector<8x1x1xf32> to vector<8x8x1xf32>
    %45 = arith.divf %41, %44 : vector<8x8x1xf32>
    %46 = vector.broadcast %45 : vector<8x8x1xf32> to vector<8x8x16xf32>
    %47 = arith.mulf %46, %36 : vector<8x8x16xf32>
    %cst_13 = arith.constant dense<0.000000e+00> : vector<8x16xf32>
    %48 = vector.multi_reduction <add>, %47, %cst_13 [1] : vector<8x8x16xf32> to vector<8x16xf32>
    %49 = vector.shape_cast %48 : vector<8x16xf32> to vector<8x1x16xf32>
    %50 = vector.shape_cast %49 : vector<8x1x16xf32> to vector<8x16xf32>
    %51 = arith.truncf %35 : vector<8x16xf32> to vector<8x16xbf16>
    %c0_14 = arith.constant 0 : index
    %c0_15 = arith.constant 0 : index
    %52 = vector.load %arg4[%c0_14, %c0_15] : memref<16x32xbf16, #tpu.memory_space<vmem>>, vector<16x32xbf16>
    %cst_16 = arith.constant dense<0.000000e+00> : vector<8x32xf32>
    %53 = tpu.matmul %51, %52, %cst_16 {dimension_numbers = #tpu.dot_dimension_numbers<[1], [0], [0], [1], [0, 0, 1, 1], [], []>} : vector<8x16xbf16>, vector<16x32xbf16>, vector<8x32xf32> -> vector<8x32xf32>
    %54 = arith.truncf %50 : vector<8x16xf32> to vector<8x16xbf16>
    %c0_17 = arith.constant 0 : index
    %c0_18 = arith.constant 0 : index
    %55 = vector.load %arg5[%c0_17, %c0_18] : memref<16x32xbf16, #tpu.memory_space<vmem>>, vector<16x32xbf16>
    %cst_19 = arith.constant dense<0.000000e+00> : vector<8x32xf32>
    %56 = tpu.matmul %54, %55, %cst_19 {dimension_numbers = #tpu.dot_dimension_numbers<[1], [0], [0], [1], [0, 0, 1, 1], [], []>} : vector<8x16xbf16>, vector<16x32xbf16>, vector<8x32xf32> -> vector<8x32xf32>
    %57 = arith.addf %53, %56 : vector<8x32xf32>
    %c0_20 = arith.constant 0 : index
    %c0_21 = arith.constant 0 : index
    %58 = vector.load %arg6[%c0_20, %c0_21] : memref<1x32xf32, #tpu.memory_space<vmem>>, vector<1x32xf32>
    %59 = vector.broadcast %58 : vector<1x32xf32> to vector<8x32xf32>
    %60 = arith.addf %57, %59 : vector<8x32xf32>
    %c0_22 = arith.constant 0 : index
    %c0_23 = arith.constant 0 : index
    %61 = vector.load %arg7[%c0_22, %c0_23] : memref<1x32xf32, #tpu.memory_space<vmem>>, vector<1x32xf32>
    %c0_24 = arith.constant 0 : index
    %c0_25 = arith.constant 0 : index
    %62 = vector.load %arg8[%c0_24, %c0_25] : memref<1x32xf32, #tpu.memory_space<vmem>>, vector<1x32xf32>
    %63 = vector.extract_strided_slice %0 {offsets = [0, 0, 0], sizes = [8, 1, 32], strides = [1, 1, 1]} : vector<8x8x32xbf16> to vector<8x1x32xbf16>
    %64 = vector.shape_cast %63 : vector<8x1x32xbf16> to vector<8x32xbf16>
    %65 = arith.extf %64 : vector<8x32xbf16> to vector<8x32xf32>
    %66 = arith.addf %60, %65 : vector<8x32xf32>
    %cst_26 = arith.constant dense<0.000000e+00> : vector<8xf32>
    %67 = vector.multi_reduction <add>, %66, %cst_26 [1] : vector<8x32xf32> to vector<8xf32>
    %68 = vector.shape_cast %67 : vector<8xf32> to vector<8x1xf32>
    %cst_27 = arith.constant 3.200000e+01 : f32
    %69 = vector.broadcast %cst_27 : f32 to vector<8x1xf32>
    %70 = arith.divf %68, %69 : vector<8x1xf32>
    %71 = vector.broadcast %70 : vector<8x1xf32> to vector<8x32xf32>
    %72 = arith.subf %66, %71 : vector<8x32xf32>
    %73 = arith.mulf %72, %72 : vector<8x32xf32>
    %cst_28 = arith.constant dense<0.000000e+00> : vector<8xf32>
    %74 = vector.multi_reduction <add>, %73, %cst_28 [1] : vector<8x32xf32> to vector<8xf32>
    %75 = vector.shape_cast %74 : vector<8xf32> to vector<8x1xf32>
    %cst_29 = arith.constant 3.200000e+01 : f32
    %76 = vector.broadcast %cst_29 : f32 to vector<8x1xf32>
    %77 = arith.divf %75, %76 : vector<8x1xf32>
    %78 = vector.broadcast %70 : vector<8x1xf32> to vector<8x32xf32>
    %79 = arith.subf %66, %78 : vector<8x32xf32>
    %cst_30 = arith.constant 9.99999974E-6 : f32
    %80 = vector.broadcast %cst_30 : f32 to vector<8x1xf32>
    %81 = arith.addf %77, %80 : vector<8x1xf32>
    %82 = math.rsqrt %81 : vector<8x1xf32>
    %83 = vector.broadcast %82 : vector<8x1xf32> to vector<8x32xf32>
    %84 = arith.mulf %79, %83 : vector<8x32xf32>
    %85 = vector.broadcast %61 : vector<1x32xf32> to vector<8x32xf32>
    %86 = arith.mulf %84, %85 : vector<8x32xf32>
    %87 = vector.broadcast %62 : vector<1x32xf32> to vector<8x32xf32>
    %88 = arith.addf %86, %87 : vector<8x32xf32>
    %89 = arith.truncf %88 : vector<8x32xf32> to vector<8x32xbf16>
    %c0_31 = arith.constant 0 : index
    %c0_32 = arith.constant 0 : index
    %90 = vector.load %arg9[%c0_31, %c0_32] : memref<32x64xbf16, #tpu.memory_space<vmem>>, vector<32x64xbf16>
    %cst_33 = arith.constant dense<0.000000e+00> : vector<8x64xf32>
    %91 = tpu.matmul %89, %90, %cst_33 {dimension_numbers = #tpu.dot_dimension_numbers<[1], [0], [0], [1], [0, 0, 1, 1], [], []>} : vector<8x32xbf16>, vector<32x64xbf16>, vector<8x64xf32> -> vector<8x64xf32>
    %c0_34 = arith.constant 0 : index
    %c0_35 = arith.constant 0 : index
    %92 = vector.load %arg10[%c0_34, %c0_35] : memref<1x64xf32, #tpu.memory_space<vmem>>, vector<1x64xf32>
    %93 = vector.broadcast %92 : vector<1x64xf32> to vector<8x64xf32>
    %94 = arith.addf %91, %93 : vector<8x64xf32>
    %cst_36 = arith.constant 0.000000e+00 : f32
    %95 = vector.broadcast %cst_36 : f32 to vector<8x64xf32>
    %96 = arith.maximumf %94, %95 : vector<8x64xf32>
    %97 = arith.truncf %96 : vector<8x64xf32> to vector<8x64xbf16>
    %c0_37 = arith.constant 0 : index
    %c0_38 = arith.constant 0 : index
    %98 = vector.load %arg11[%c0_37, %c0_38] : memref<64x32xbf16, #tpu.memory_space<vmem>>, vector<64x32xbf16>
    %cst_39 = arith.constant dense<0.000000e+00> : vector<8x32xf32>
    %99 = tpu.matmul %97, %98, %cst_39 {dimension_numbers = #tpu.dot_dimension_numbers<[1], [0], [0], [1], [0, 0, 1, 1], [], []>} : vector<8x64xbf16>, vector<64x32xbf16>, vector<8x32xf32> -> vector<8x32xf32>
    %c0_40 = arith.constant 0 : index
    %c0_41 = arith.constant 0 : index
    %100 = vector.load %arg12[%c0_40, %c0_41] : memref<1x32xf32, #tpu.memory_space<vmem>>, vector<1x32xf32>
    %101 = vector.broadcast %100 : vector<1x32xf32> to vector<8x32xf32>
    %102 = arith.addf %99, %101 : vector<8x32xf32>
    %103 = arith.addf %102, %88 : vector<8x32xf32>
    %cst_42 = arith.constant dense<0.000000e+00> : vector<8xf32>
    %104 = vector.multi_reduction <add>, %103, %cst_42 [1] : vector<8x32xf32> to vector<8xf32>
    %105 = vector.shape_cast %104 : vector<8xf32> to vector<8x1xf32>
    %cst_43 = arith.constant 3.200000e+01 : f32
    %106 = vector.broadcast %cst_43 : f32 to vector<8x1xf32>
    %107 = arith.divf %105, %106 : vector<8x1xf32>
    %108 = vector.broadcast %107 : vector<8x1xf32> to vector<8x32xf32>
    %109 = arith.subf %103, %108 : vector<8x32xf32>
    %110 = arith.mulf %109, %109 : vector<8x32xf32>
    %cst_44 = arith.constant dense<0.000000e+00> : vector<8xf32>
    %111 = vector.multi_reduction <add>, %110, %cst_44 [1] : vector<8x32xf32> to vector<8xf32>
    %112 = vector.shape_cast %111 : vector<8xf32> to vector<8x1xf32>
    %cst_45 = arith.constant 3.200000e+01 : f32
    %113 = vector.broadcast %cst_45 : f32 to vector<8x1xf32>
    %114 = arith.divf %112, %113 : vector<8x1xf32>
    %115 = vector.broadcast %107 : vector<8x1xf32> to vector<8x32xf32>
    %116 = arith.subf %103, %115 : vector<8x32xf32>
    %cst_46 = arith.constant 9.99999974E-6 : f32
    %117 = vector.broadcast %cst_46 : f32 to vector<8x1xf32>
    %118 = arith.addf %114, %117 : vector<8x1xf32>
    %119 = math.rsqrt %118 : vector<8x1xf32>
    %120 = vector.broadcast %119 : vector<8x1xf32> to vector<8x32xf32>
    %121 = arith.mulf %116, %120 : vector<8x32xf32>
    %122 = vector.broadcast %61 : vector<1x32xf32> to vector<8x32xf32>
    %123 = arith.mulf %121, %122 : vector<8x32xf32>
    %124 = vector.broadcast %62 : vector<1x32xf32> to vector<8x32xf32>
    %125 = arith.addf %123, %124 : vector<8x32xf32>
    %c0_47 = arith.constant 0 : index
    %c0_48 = arith.constant 0 : index
    %126 = vector.load %arg13[%c0_47, %c0_48] : memref<1x32xf32, #tpu.memory_space<vmem>>, vector<1x32xf32>
    %127 = vector.broadcast %126 : vector<1x32xf32> to vector<8x32xf32>
    %128 = arith.mulf %125, %127 : vector<8x32xf32>
    %cst_49 = arith.constant dense<0.000000e+00> : vector<8xf32>
    %129 = vector.multi_reduction <add>, %128, %cst_49 [1] : vector<8x32xf32> to vector<8xf32>
    %130 = vector.shape_cast %129 : vector<8xf32> to vector<8x1xf32>
    %c0_50 = arith.constant 0 : index
    %c0_51 = arith.constant 0 : index
    %131 = vector.load %arg14[%c0_50, %c0_51] : memref<1x1xf32, #tpu.memory_space<vmem>>, vector<1x1xf32>
    %132 = vector.broadcast %131 : vector<1x1xf32> to vector<8x1xf32>
    %133 = arith.addf %130, %132 : vector<8x1xf32>
    %134 = arith.negf %133 : vector<8x1xf32>
    %135 = math.exp %134 : vector<8x1xf32>
    %cst_52 = arith.constant 1.000000e+00 : f32
    %136 = vector.broadcast %cst_52 : f32 to vector<8x1xf32>
    %137 = arith.addf %136, %135 : vector<8x1xf32>
    %138 = arith.divf %136, %137 : vector<8x1xf32>
    %c0_53 = arith.constant 0 : index
    %c0_54 = arith.constant 0 : index
    %139 = vector.load %arg15[%c0_53, %c0_54] : memref<8x1xf32, #tpu.memory_space<vmem>>, vector<8x1xf32>
    tpu.vector_store %arg15[%c0_53, %c0_54], %138 {strides = array<i32>} : memref<8x1xf32, #tpu.memory_space<vmem>>, vector<8x1xf32>,
    return
  }
  func.func @transform_0(%arg0: i32) -> (i32, i32, i32) {
    %c0_i32 = arith.constant 0 : i32
    %c0_i32_0 = arith.constant 0 : i32
    %c0_i32_1 = arith.constant 0 : i32
    return %arg0, %c0_i32, %c0_i32_0 : i32, i32, i32
  }
  func.func @transform_1(%arg0: i32) -> (i32, i32) {
    %c0_i32 = arith.constant 0 : i32
    %c0_i32_0 = arith.constant 0 : i32
    %c0_i32_1 = arith.constant 0 : i32
    return %c0_i32, %c0_i32_0 : i32, i32
  }
  func.func @transform_2(%arg0: i32) -> (i32, i32) {
    %c0_i32 = arith.constant 0 : i32
    %c0_i32_0 = arith.constant 0 : i32
    %c0_i32_1 = arith.constant 0 : i32
    return %c0_i32, %c0_i32_0 : i32, i32
  }
  func.func @transform_3(%arg0: i32) -> (i32, i32) {
    %c0_i32 = arith.constant 0 : i32
    %c0_i32_0 = arith.constant 0 : i32
    %c0_i32_1 = arith.constant 0 : i32
    return %c0_i32, %c0_i32_0 : i32, i32
  }
  func.func @transform_4(%arg0: i32) -> (i32, i32) {
    %c0_i32 = arith.constant 0 : i32
    %c0_i32_0 = arith.constant 0 : i32
    %c0_i32_1 = arith.constant 0 : i32
    return %c0_i32, %c0_i32_0 : i32, i32
  }
  func.func @transform_5(%arg0: i32) -> (i32, i32) {
    %c0_i32 = arith.constant 0 : i32
    %c0_i32_0 = arith.constant 0 : i32
    %c0_i32_1 = arith.constant 0 : i32
    return %c0_i32, %c0_i32_0 : i32, i32
  }
  func.func @transform_6(%arg0: i32) -> (i32, i32) {
    %c0_i32 = arith.constant 0 : i32
    %c0_i32_0 = arith.constant 0 : i32
    %c0_i32_1 = arith.constant 0 : i32
    return %c0_i32, %c0_i32_0 : i32, i32
  }
  func.func @transform_7(%arg0: i32) -> (i32, i32) {
    %c0_i32 = arith.constant 0 : i32
    %c0_i32_0 = arith.constant 0 : i32
    %c0_i32_1 = arith.constant 0 : i32
    return %c0_i32, %c0_i32_0 : i32, i32
  }
  func.func @transform_8(%arg0: i32) -> (i32, i32) {
    %c0_i32 = arith.constant 0 : i32
    %c0_i32_0 = arith.constant 0 : i32
    %c0_i32_1 = arith.constant 0 : i32
    return %c0_i32, %c0_i32_0 : i32, i32
  }
  func.func @transform_9(%arg0: i32) -> (i32, i32) {
    %c0_i32 = arith.constant 0 : i32
    %c0_i32_0 = arith.constant 0 : i32
    %c0_i32_1 = arith.constant 0 : i32
    return %c0_i32, %c0_i32_0 : i32, i32
  }
  func.func @transform_10(%arg0: i32) -> (i32, i32) {
    %c0_i32 = arith.constant 0 : i32
    %c0_i32_0 = arith.constant 0 : i32
    %c0_i32_1 = arith.constant 0 : i32
    return %c0_i32, %c0_i32_0 : i32, i32
  }
  func.func @transform_11(%arg0: i32) -> (i32, i32) {
    %c0_i32 = arith.constant 0 : i32
    %c0_i32_0 = arith.constant 0 : i32
    %c0_i32_1 = arith.constant 0 : i32
    return %c0_i32, %c0_i32_0 : i32, i32
  }
  func.func @transform_12(%arg0: i32) -> (i32, i32) {
    %c0_i32 = arith.constant 0 : i32
    %c0_i32_0 = arith.constant 0 : i32
    %c0_i32_1 = arith.constant 0 : i32
    return %c0_i32, %c0_i32_0 : i32, i32
  }
  func.func @transform_13(%arg0: i32) -> (i32, i32) {
    %c0_i32 = arith.constant 0 : i32
    %c0_i32_0 = arith.constant 0 : i32
    %c0_i32_1 = arith.constant 0 : i32
    return %c0_i32, %c0_i32_0 : i32, i32
  }
  func.func @transform_14(%arg0: i32) -> (i32, i32) {
    %c0_i32 = arith.constant 0 : i32
    %c0_i32_0 = arith.constant 0 : i32
    return %arg0, %c0_i32 : i32, i32
  }
}

</mosaic_0001>

<llo_original>
// kernel: tpu_custom_call.1
$region0: #{tpu_custom_call.1}
  #allocation0 [shape = 'u32[]', space=smem, size = 0x4, offset = 0x4, fixed_abs, tag = 'smem constant byte address 0x4 - core index']
  #allocation1 [shape = 'u32[144,128]{1,0:T(1,128)}', space=vmem, size = 0x12000, scoped, tag = 'internal scratch']
  #allocation2 [shape = 'f32[1,1]{1,0:T(1,128)S(1)}', space=vmem, size = 0x200, scoped, tag = 'scoped memory for tpu_custom_call.1']
  %s0 = inlined_call_operand.vmem [shape: bf16[8,8,32], index: 0, kind: input, shape index: {}]
  %s1 = inlined_call_operand.vmem [shape: bf16[32,96], index: 1, kind: input, shape index: {}]
  %s2 = inlined_call_operand.hbm [shape: f32[1,96], index: 2, kind: input, shape index: {}]
  %s3 = inlined_call_operand.hbm [shape: bf16[16,32], index: 3, kind: input, shape index: {}]
  %s4 = inlined_call_operand.hbm [shape: bf16[16,32], index: 4, kind: input, shape index: {}]
  %s5 = inlined_call_operand.hbm [shape: f32[1,32], index: 5, kind: input, shape index: {}]
  %s6 = inlined_call_operand.hbm [shape: f32[1,32], index: 6, kind: input, shape index: {}]
  %s7 = inlined_call_operand.hbm [shape: f32[1,32], index: 7, kind: input, shape index: {}]
  %s8 = inlined_call_operand.vmem [shape: bf16[32,64], index: 8, kind: input, shape index: {}]
  %s9 = inlined_call_operand.vmem [shape: f32[1,64], index: 9, kind: input, shape index: {}]
  %s10 = inlined_call_operand.vmem [shape: bf16[64,32], index: 10, kind: input, shape index: {}]
  %s11 = inlined_call_operand.vmem [shape: f32[1,32], index: 11, kind: input, shape index: {}]
  %s12 = inlined_call_operand.vmem [shape: f32[1,32], index: 12, kind: input, shape index: {}]
  %s13 = inlined_call_operand.<no memory space> [shape: f32[1,1], index: 13, kind: input, shape index: {}]
  %s14 = inlined_call_operand.hbm [shape: f32[1,8], index: 14, kind: output, shape index: {}]
  %s15 = sld [smem:[#allocation0]]
  $region90: #{tpu_custom_call.1} parent=0
    _
  %s17 = ssub.s32 1, %s15
  %s18 = scalar_select 0, %s17, %s15
  %v19 = vstv %s13
  %20 = vst [vmem:[#allocation2] sm:$0x1] %v19
  $region1: #{tpu_custom_call.1} parent=0
    #allocation3 [shape = 'u8[512]{0}', space=vmem, size = 0x400, scoped, tag = 'input window, operand 2, single buffered']
    #allocation4 [shape = 's32[1]{0}', space=sflag, size = 0x4, scoped, tag = 'scoped memory for tpu_custom_call.1']
    #allocation5 [shape = 's32[1]{0}', space=sflag, size = 0x4, scoped, tag = 'scoped memory for tpu_custom_call.1']
    #allocation6 [shape = 'u8[4096]{0}', space=vmem, size = 0x1000, scoped, tag = 'input window, operand 3, single buffered']
    #allocation7 [shape = 's32[1]{0}', space=sflag, size = 0x4, scoped, tag = 'scoped memory for tpu_custom_call.1']
    #allocation8 [shape = 'u8[4096]{0}', space=vmem, size = 0x1000, scoped, tag = 'input window, operand 4, single buffered']
    #allocation9 [shape = 'u8[512]{0}', space=vmem, size = 0x400, scoped, tag = 'input window, operand 5, single buffered']
    #allocation10 [shape = 's32[1]{0}', space=sflag, size = 0x4, scoped, tag = 'scoped memory for tpu_custom_call.1']
    #allocation11 [shape = 'u8[512]{0}', space=vmem, size = 0x400, scoped, tag = 'input window, operand 6, single buffered']
    #allocation12 [shape = 'u8[512]{0}', space=vmem, size = 0x400, scoped, tag = 'input window, operand 7, single buffered']
    #allocation13 [shape = 's32[1]{0}', space=sflag, size = 0x4, scoped, tag = 'scoped memory for tpu_custom_call.1']
    #allocation14 [shape = 'u8[512]{0}', space=vmem, size = 0x400, scoped, tag = 'output window, operand 0, single buffered']
    %21 = vsyncpa [#allocation4], 0
    %22 = vsyncpa [#allocation7], 0
    %23 = vsyncpa [#allocation10], 0
    %24 = vsyncpa [#allocation13], 0
    %25 = vsyncpa [#allocation5], 0
    // Predicated region
    $region2: #{tpu_custom_call.1} parent=1 // pred_check
      _
    $region3: #{tpu_custom_call.1} parent=1 // pred_check_branch
      %27 = sbr.rel (0) target = $region5
    $region4: #{tpu_custom_call.1} parent=1 // pred_region
      _
    $region5: #{tpu_custom_call.1} parent=1 // pred_fallthru
      _
    // Predicated region
    $region6: #{tpu_custom_call.1} parent=1 // pred_check
      _
    $region7: #{tpu_custom_call.1} parent=1 // pred_check_branch
      %29 = sbr.rel (0) target = $region9
    $region8: #{tpu_custom_call.1} parent=1 // pred_region
      _
    $region9: #{tpu_custom_call.1} parent=1 // pred_fallthru
      _
    // Predicated region
    $region10: #{tpu_custom_call.1} parent=1 // pred_check
      _
    $region11: #{tpu_custom_call.1} parent=1 // pred_check_branch
      %31 = sbr.rel (0) target = $region13
    $region12: #{tpu_custom_call.1} parent=1 // pred_region
      %s33 = ssub.s32 16, 16
      %34 = vsyncadd [#allocation4], %s33
      %s36 = sshll.u32 [#allocation3], 4
      %s37 = int_to_ptr.vmem [resolvable:$true] %s36
      %39 = dma.hbm_to_vmem [thread:$0]  %s2, 16, %s37, [#allocation4]
    $region13: #{tpu_custom_call.1} parent=1 // pred_fallthru
      _
    // Predicated region
    $region14: #{tpu_custom_call.1} parent=1 // pred_check
      _
    $region15: #{tpu_custom_call.1} parent=1 // pred_check_branch
      %41 = sbr.rel (0) target = $region17
    $region16: #{tpu_custom_call.1} parent=1 // pred_region
      %s43 = ssub.s32 128, 128
      %44 = vsyncadd [#allocation7], %s43
      %s45 = sshll.u32 [#allocation6], 4
      %s46 = int_to_ptr.vmem [resolvable:$true] %s45
      %51 = dma.hbm_to_vmem [thread:$0]  %s3, 128, %s46, [#allocation7], 64, 64, 4
    $region17: #{tpu_custom_call.1} parent=1 // pred_fallthru
      _
    // Predicated region
    $region18: #{tpu_custom_call.1} parent=1 // pred_check
      _
    $region19: #{tpu_custom_call.1} parent=1 // pred_check_branch
      %53 = sbr.rel (0) target = $region21
    $region20: #{tpu_custom_call.1} parent=1 // pred_region
      %s55 = ssub.s32 128, 128
      %56 = vsyncadd [#allocation7], %s55
      %s57 = sshll.u32 [#allocation8], 4
      %s58 = int_to_ptr.vmem [resolvable:$true] %s57
      %63 = dma.hbm_to_vmem [thread:$0]  %s4, 128, %s58, [#allocation7], 64, 64, 4
    $region21: #{tpu_custom_call.1} parent=1 // pred_fallthru
      _
    // Predicated region
    $region22: #{tpu_custom_call.1} parent=1 // pred_check
      _
    $region23: #{tpu_custom_call.1} parent=1 // pred_check_branch
      %65 = sbr.rel (0) target = $region25
    $region24: #{tpu_custom_call.1} parent=1 // pred_region
      %s67 = ssub.s32 16, 16
      %68 = vsyncadd [#allocation10], %s67
      %s70 = sshll.u32 [#allocation9], 4
      %s71 = int_to_ptr.vmem [resolvable:$true] %s70
      %73 = dma.hbm_to_vmem [thread:$0]  %s5, 16, %s71, [#allocation10]
    $region25: #{tpu_custom_call.1} parent=1 // pred_fallthru
      _
    // Predicated region
    $region26: #{tpu_custom_call.1} parent=1 // pred_check
      _
    $region27: #{tpu_custom_call.1} parent=1 // pred_check_branch
      %75 = sbr.rel (0) target = $region29
    $region28: #{tpu_custom_call.1} parent=1 // pred_region
      %s77 = ssub.s32 16, 16
      %78 = vsyncadd [#allocation10], %s77
      %s80 = sshll.u32 [#allocation11], 4
      %s81 = int_to_ptr.vmem [resolvable:$true] %s80
      %83 = dma.hbm_to_vmem [thread:$0]  %s6, 16, %s81, [#allocation10]
    $region29: #{tpu_custom_call.1} parent=1 // pred_fallthru
      _
    // Predicated region
    $region30: #{tpu_custom_call.1} parent=1 // pred_check
      _
    $region31: #{tpu_custom_call.1} parent=1 // pred_check_branch
      %85 = sbr.rel (0) target = $region33
    $region32: #{tpu_custom_call.1} parent=1 // pred_region
      %s87 = ssub.s32 16, 16
      %88 = vsyncadd [#allocation13], %s87
      %s90 = sshll.u32 [#allocation12], 4
      %s91 = int_to_ptr.vmem [resolvable:$true] %s90
      %93 = dma.hbm_to_vmem [thread:$0]  %s7, 16, %s91, [#allocation13]
    $region33: #{tpu_custom_call.1} parent=1 // pred_fallthru
      _
    // Predicated region
    $region34: #{tpu_custom_call.1} parent=1 // pred_check
      _
    $region35: #{tpu_custom_call.1} parent=1 // pred_check_branch
      %95 = sbr.rel (0) target = $region37
    $region36: #{tpu_custom_call.1} parent=1 // pred_region
      _
    $region37: #{tpu_custom_call.1} parent=1 // pred_fallthru
      _
    // Predicated region
    $region38: #{tpu_custom_call.1} parent=1 // pred_check
      _
    $region39: #{tpu_custom_call.1} parent=1 // pred_check_branch
      %97 = sbr.rel (0) target = $region41
    $region40: #{tpu_custom_call.1} parent=1 // pred_region
      _
    $region41: #{tpu_custom_call.1} parent=1 // pred_fallthru
      _
    // Predicated region
    $region42: #{tpu_custom_call.1} parent=1 // pred_check
      _
    $region43: #{tpu_custom_call.1} parent=1 // pred_check_branch
      %99 = sbr.rel (0) target = $region45
    $region44: #{tpu_custom_call.1} parent=1 // pred_region
      _
    $region45: #{tpu_custom_call.1} parent=1 // pred_fallthru
      _
    // Predicated region
    $region46: #{tpu_custom_call.1} parent=1 // pred_check
      _
    $region47: #{tpu_custom_call.1} parent=1 // pred_check_branch
      %101 = sbr.rel (0) target = $region49
    $region48: #{tpu_custom_call.1} parent=1 // pred_region
      _
    $region49: #{tpu_custom_call.1} parent=1 // pred_fallthru
      _
    // Predicated region
    $region50: #{tpu_custom_call.1} parent=1 // pred_check
      _
    $region51: #{tpu_custom_call.1} parent=1 // pred_check_branch
      %103 = sbr.rel (0) target = $region53
    $region52: #{tpu_custom_call.1} parent=1 // pred_region
      _
    $region53: #{tpu_custom_call.1} parent=1 // pred_fallthru
      _
    // Predicated region
    $region54: #{tpu_custom_call.1} parent=1 // pred_check
      _
    $region55: #{tpu_custom_call.1} parent=1 // pred_check_branch
      %105 = sbr.rel (0) target = $region57
    $region56: #{tpu_custom_call.1} parent=1 // pred_region
      _
    $region57: #{tpu_custom_call.1} parent=1 // pred_fallthru
      _
    // Predicated region
    $region58: #{tpu_custom_call.1} parent=1 // pred_check
      _
    $region59: #{tpu_custom_call.1} parent=1 // pred_check_branch
      %107 = sbr.rel (0) target = $region61
    $region60: #{tpu_custom_call.1} parent=1 // pred_region
      %108 = dma.done [#allocation4], 16
    $region61: #{tpu_custom_call.1} parent=1 // pred_fallthru
      _
    // Predicated region
    $region62: #{tpu_custom_call.1} parent=1 // pred_check
      _
    $region63: #{tpu_custom_call.1} parent=1 // pred_check_branch
      %110 = sbr.rel (0) target = $region65
    $region64: #{tpu_custom_call.1} parent=1 // pred_region
      %111 = dma.done [#allocation7], 128
    $region65: #{tpu_custom_call.1} parent=1 // pred_fallthru
      _
    // Predicated region
    $region66: #{tpu_custom_call.1} parent=1 // pred_check
      _
    $region67: #{tpu_custom_call.1} parent=1 // pred_check_branch
      %113 = sbr.rel (0) target = $region69
    $region68: #{tpu_custom_call.1} parent=1 // pred_region
      %114 = dma.done [#allocation7], 128
    $region69: #{tpu_custom_call.1} parent=1 // pred_fallthru
      _
    // Predicated region
    $region70: #{tpu_custom_call.1} parent=1 // pred_check
      _
    $region71: #{tpu_custom_call.1} parent=1 // pred_check_branch
      %116 = sbr.rel (0) target = $region73
    $region72: #{tpu_custom_call.1} parent=1 // pred_region
      %117 = dma.done [#allocation10], 16
    $region73: #{tpu_custom_call.1} parent=1 // pred_fallthru
      _
    // Predicated region
    $region74: #{tpu_custom_call.1} parent=1 // pred_check
      _
    $region75: #{tpu_custom_call.1} parent=1 // pred_check_branch
      %119 = sbr.rel (0) target = $region77
    $region76: #{tpu_custom_call.1} parent=1 // pred_region
      %120 = dma.done [#allocation10], 16
    $region77: #{tpu_custom_call.1} parent=1 // pred_fallthru
      _
    // Predicated region
    $region78: #{tpu_custom_call.1} parent=1 // pred_check
      _
    $region79: #{tpu_custom_call.1} parent=1 // pred_check_branch
      %122 = sbr.rel (0) target = $region81
    $region80: #{tpu_custom_call.1} parent=1 // pred_region
      %123 = dma.done [#allocation13], 16
    $region81: #{tpu_custom_call.1} parent=1 // pred_fallthru
      _
    %v125 = vld [vmem:[%s0] sm:$0xf]
    %v126 = vld [vmem:[%s0 + $0x4] sm:$0xf]
    %v127 = vld [vmem:[%s0 + $0x8] sm:$0xf]
    %v128 = vld [vmem:[%s0 + $0xc] sm:$0xf]
    %v129 = vld [vmem:[%s0 + $0x10] sm:$0xf]
    %v130 = vld [vmem:[%s0 + $0x14] sm:$0xf]
    %v131 = vld [vmem:[%s0 + $0x18] sm:$0xf]
    %v132 = vld [vmem:[%s0 + $0x1c] sm:$0xf]
    %v133 = vld [vmem:[%s1] sm:$0xf]
    %v134 = vld [vmem:[%s1 + $0x4] sm:$0xf]
    %v135 = vld [vmem:[%s1 + $0x8] sm:$0xf]
    %v136 = vld [vmem:[%s1 + $0xc] sm:$0xf]
    %v137 = vld [vmem:[#allocation3] sm:$0x1]
    %v139 = vlaneseq
    %v140 = vshrl.u32 %v139, 7
    %v141 = vsub.s32 0, %v140
    %v142 = vrot.slane %v137, %v141
    %v152 = vunpack.c.l.b16 %v125
    %v153 = vunpack.c.l.b16 %v126
    %v154 = vunpack.c.l.b16 %v127
    %v155 = vunpack.c.l.b16 %v128
    %v156 = vunpack.c.l.b16 %v129
    %v157 = vunpack.c.l.b16 %v130
    %v158 = vunpack.c.l.b16 %v131
    %v159 = vunpack.c.l.b16 %v132
    %v160 = vpack.c.b16 %v153, %v152
    %v161 = vpack.c.b16 %v155, %v154
    %v162 = vpack.c.b16 %v157, %v156
    %v163 = vpack.c.b16 %v159, %v158
    %v168 = vunpack.c.l.b16 %v133
    %v169 = vunpack.c.l.b16 %v134
    %v170 = vunpack.c.l.b16 %v135
    %v171 = vunpack.c.l.b16 %v136
    %v172 = vpack.c.b16 %v169, %v168
    %v173 = vpack.c.b16 %v171, %v170
    %vm176 = vcmask 261120
    %v178 = vsel %vm176, %v160, 0
    %v181 = vsel %vm176, %v161, 0
    %v184 = vsel %vm176, %v162, 0
    %v187 = vsel %vm176, %v163, 0
    %189 = vmatprep.subr.bf16.mxu0 0
    %190 = vmatpush1.bf16.msra.mxu0 0
    %191 = vmatprep.subr.bf16.mxu0 0
    %192 = vmatpush1.bf16.msra.mxu0 0
    %193 = vmatprep.subr.bf16.mxu0 0
    %194 = vmatpush1.bf16.msra.mxu0 0
    %195 = vmatprep.subr.bf16.mxu0 0
    %196 = vmatpush1.bf16.msra.mxu0 0
    %197 = vmatprep.subr.bf16.mxu0 0
    %198 = vmatpush1.bf16.msra.mxu0 0
    %199 = vmatprep.subr.bf16.mxu0 0
    %200 = vmatpush1.bf16.msra.mxu0 0
    %201 = vmatprep.subr.bf16.mxu0 0
    %202 = vmatpush1.bf16.msra.mxu0 %v173
    %203 = vmatprep.subr.bf16.mxu0 0
    %204 = vmatpush1.bf16.msra.mxu0 %v172
    %205 = vmatprep.subr.bf16.mxu0 0
    %206 = vmatpush2.bf16.msra.mxu0 0
    %207 = vmatprep.subr.bf16.mxu0 0
    %208 = vmatpush2.bf16.msra.mxu0 0
    %209 = vmatprep.subr.bf16.mxu0 0
    %210 = vmatpush2.bf16.msra.mxu0 0
    %211 = vmatprep.subr.bf16.mxu0 0
    %212 = vmatpush2.bf16.msra.mxu0 0
    %213 = vmatprep.subr.bf16.mxu0 0
    %214 = vmatpush2.bf16.msra.mxu0 0
    %215 = vmatprep.subr.bf16.mxu0 0
    %216 = vmatpush2.bf16.msra.mxu0 0
    %217 = vmatprep.subr.bf16.mxu0 0
    %218 = vmatpush2.bf16.msra.mxu0 0
    %219 = vmatprep.subr.bf16.mxu0 0
    %220 = vmatpush2.bf16.msra.mxu0 0
    %221 = vmatprep.mubr.bf16.mxu0 0
    %222 = vmatmul.mubr.bf16.gmra.mxu0 %v178
    %v223 = vpop.f32.mrf.mxu0
    %v224 = vadd.f32 %v142, %v223
    %v225 = vpop.f32.mrf.mxu0
    %v226 = vpop.f32.mrf.mxu0
    %v227 = vadd.f32 %v142, %v226
    %v228 = vpop.f32.mrf.mxu0
    %229 = vmatprep.mubr.bf16.mxu0 0
    %230 = vmatmul.mubr.bf16.gmra.mxu0 %v181
    %v231 = vpop.f32.mrf.mxu0
    %v232 = vadd.f32 %v142, %v231
    %v233 = vpop.f32.mrf.mxu0
    %v234 = vpop.f32.mrf.mxu0
    %v235 = vadd.f32 %v142, %v234
    %v236 = vpop.f32.mrf.mxu0
    %237 = vmatprep.mubr.bf16.mxu0 0
    %238 = vmatmul.mubr.bf16.gmra.mxu0 %v184
    %v239 = vpop.f32.mrf.mxu0
    %v240 = vadd.f32 %v142, %v239
    %v241 = vpop.f32.mrf.mxu0
    %v242 = vpop.f32.mrf.mxu0
    %v243 = vadd.f32 %v142, %v242
    %v244 = vpop.f32.mrf.mxu0
    %245 = vmatprep.mubr.bf16.mxu0 0
    %246 = vmatmul.mubr.bf16.gmra.mxu0 %v187
    %v247 = vpop.f32.mrf.mxu0
    %v248 = vadd.f32 %v142, %v247
    %v249 = vpop.f32.mrf.mxu0
    %v250 = vpop.f32.mrf.mxu0
    %v251 = vadd.f32 %v142, %v250
    %v252 = vpop.f32.mrf.mxu0
    %253 = vdwg.mxu0
    %v254 = vlaneseq
    %v255 = vshrl.u32 %v254, 7
    %v256 = vsub.s32 0, %v255
    %v257 = vrot.slane %v224, %v256
    %v258 = vlaneseq
    %v259 = vshrl.u32 %v258, 7
    %v260 = vsub.s32 0, %v259
    %v261 = vrot.slane %v227, %v260
    %v262 = vlaneseq
    %v263 = vshrl.u32 %v262, 7
    %v264 = vsub.s32 0, %v263
    %v265 = vrot.slane %v232, %v264
    %v266 = vlaneseq
    %v267 = vshrl.u32 %v266, 7
    %v268 = vsub.s32 0, %v267
    %v269 = vrot.slane %v235, %v268
    %v270 = vlaneseq
    %v271 = vshrl.u32 %v270, 7
    %v272 = vsub.s32 0, %v271
    %v273 = vrot.slane %v240, %v272
    %v274 = vlaneseq
    %v275 = vshrl.u32 %v274, 7
    %v276 = vsub.s32 0, %v275
    %v277 = vrot.slane %v243, %v276
    %v278 = vlaneseq
    %v279 = vshrl.u32 %v278, 7
    %v280 = vsub.s32 0, %v279
    %v281 = vrot.slane %v248, %v280
    %v282 = vlaneseq
    %v283 = vshrl.u32 %v282, 7
    %v284 = vsub.s32 0, %v283
    %v285 = vrot.slane %v251, %v284
    %294 = vrot.lane.b32.xlu0 %v257, 64
    %v295 = vpop.permute.xlu0 %294
    %296 = vrot.lane.b32.xlu0 %v261, 64
    %v297 = vpop.permute.xlu0 %296
    %298 = vrot.lane.b32.xlu0 %v265, 64
    %v299 = vpop.permute.xlu0 %298
    %300 = vrot.lane.b32.xlu0 %v269, 64
    %v301 = vpop.permute.xlu0 %300
    %302 = vrot.lane.b32.xlu0 %v273, 64
    %v303 = vpop.permute.xlu0 %302
    %304 = vrot.lane.b32.xlu0 %v277, 64
    %v305 = vpop.permute.xlu0 %304
    %306 = vrot.lane.b32.xlu0 %v281, 64
    %v307 = vpop.permute.xlu0 %306
    %308 = vrot.lane.b32.xlu0 %v285, 64
    %v309 = vpop.permute.xlu0 %308
    %v318 = vmul.f32 %v224, %v295
    %v319 = vmul.f32 %v227, %v297
    %v320 = vmul.f32 %v232, %v299
    %v321 = vmul.f32 %v235, %v301
    %v322 = vmul.f32 %v240, %v303
    %v323 = vmul.f32 %v243, %v305
    %v324 = vmul.f32 %v248, %v307
    %v325 = vmul.f32 %v251, %v309
    %vm326 = vcmask 130048
    %v327 = vsel %vm326, %v318, 0.0
    %328 = vadd.xlane.f32.xlu0 %v327
    %v329 = vpop.xlane.xlu0 %328
    %v330 = vsel %vm326, %v319, 0.0
    %331 = vadd.xlane.f32.xlu0 %v330
    %v332 = vpop.xlane.xlu0 %331
    %v333 = vsel %vm326, %v320, 0.0
    %334 = vadd.xlane.f32.xlu0 %v333
    %v335 = vpop.xlane.xlu0 %334
    %v336 = vsel %vm326, %v321, 0.0
    %337 = vadd.xlane.f32.xlu0 %v336
    %v338 = vpop.xlane.xlu0 %337
    %v339 = vsel %vm326, %v322, 0.0
    %340 = vadd.xlane.f32.xlu0 %v339
    %v341 = vpop.xlane.xlu0 %340
    %v342 = vsel %vm326, %v323, 0.0
    %343 = vadd.xlane.f32.xlu0 %v342
    %v344 = vpop.xlane.xlu0 %343
    %v345 = vsel %vm326, %v324, 0.0
    %346 = vadd.xlane.f32.xlu0 %v345
    %v347 = vpop.xlane.xlu0 %346
    %v348 = vsel %vm326, %v325, 0.0
    %349 = vadd.xlane.f32.xlu0 %v348
    %v350 = vpop.xlane.xlu0 %349
    %359 = vrot.lane.b32.xlu0 %v318, 112
    %v360 = vpop.permute.xlu0 %359
    %361 = vrot.lane.b32.xlu0 %v319, 112
    %v362 = vpop.permute.xlu0 %361
    %363 = vrot.lane.b32.xlu0 %v320, 112
    %v364 = vpop.permute.xlu0 %363
    %365 = vrot.lane.b32.xlu0 %v321, 112
    %v366 = vpop.permute.xlu0 %365
    %367 = vrot.lane.b32.xlu0 %v322, 112
    %v368 = vpop.permute.xlu0 %367
    %369 = vrot.lane.b32.xlu0 %v323, 112
    %v370 = vpop.permute.xlu0 %369
    %371 = vrot.lane.b32.xlu0 %v324, 112
    %v372 = vpop.permute.xlu0 %371
    %373 = vrot.lane.b32.xlu0 %v325, 112
    %v374 = vpop.permute.xlu0 %373
    %v383 = vsel %vm326, %v360, 0.0
    %384 = vadd.xlane.f32.xlu0 %v383
    %v385 = vpop.xlane.xlu0 %384
    %v386 = vsel %vm326, %v362, 0.0
    %387 = vadd.xlane.f32.xlu0 %v386
    %v388 = vpop.xlane.xlu0 %387
    %v389 = vsel %vm326, %v364, 0.0
    %390 = vadd.xlane.f32.xlu0 %v389
    %v391 = vpop.xlane.xlu0 %390
    %v392 = vsel %vm326, %v366, 0.0
    %393 = vadd.xlane.f32.xlu0 %v392
    %v394 = vpop.xlane.xlu0 %393
    %v395 = vsel %vm326, %v368, 0.0
    %396 = vadd.xlane.f32.xlu0 %v395
    %v397 = vpop.xlane.xlu0 %396
    %v398 = vsel %vm326, %v370, 0.0
    %399 = vadd.xlane.f32.xlu0 %v398
    %v400 = vpop.xlane.xlu0 %399
    %v401 = vsel %vm326, %v372, 0.0
    %402 = vadd.xlane.f32.xlu0 %v401
    %v403 = vpop.xlane.xlu0 %402
    %v404 = vsel %vm326, %v374, 0.0
    %405 = vadd.xlane.f32.xlu0 %v404
    %v406 = vpop.xlane.xlu0 %405
    %v407 = vrot.slane %v329, 4
    %v408 = vmax.f32 %v329, %v407
    %v409 = vrot.slane %v408, 2
    %v410 = vmax.f32 %v408, %v409
    %v411 = vrot.slane %v410, 1
    %v412 = vmax.f32 %v410, %v411
    %v413 = vrot.slane %v332, 4
    %v414 = vmax.f32 %v332, %v413
    %v415 = vrot.slane %v414, 2
    %v416 = vmax.f32 %v414, %v415
    %v417 = vrot.slane %v416, 1
    %v418 = vmax.f32 %v416, %v417
    %v419 = vrot.slane %v335, 4
    %v420 = vmax.f32 %v335, %v419
    %v421 = vrot.slane %v420, 2
    %v422 = vmax.f32 %v420, %v421
    %v423 = vrot.slane %v422, 1
    %v424 = vmax.f32 %v422, %v423
    %v425 = vrot.slane %v338, 4
    %v426 = vmax.f32 %v338, %v425
    %v427 = vrot.slane %v426, 2
    %v428 = vmax.f32 %v426, %v427
    %v429 = vrot.slane %v428, 1
    %v430 = vmax.f32 %v428, %v429
    %v431 = vrot.slane %v341, 4
    %v432 = vmax.f32 %v341, %v431
    %v433 = vrot.slane %v432, 2
    %v434 = vmax.f32 %v432, %v433
    %v435 = vrot.slane %v434, 1
    %v436 = vmax.f32 %v434, %v435
    %v437 = vrot.slane %v344, 4
    %v438 = vmax.f32 %v344, %v437
    %v439 = vrot.slane %v438, 2
    %v440 = vmax.f32 %v438, %v439
    %v441 = vrot.slane %v440, 1
    %v442 = vmax.f32 %v440, %v441
    %v443 = vrot.slane %v347, 4
    %v444 = vmax.f32 %v347, %v443
    %v445 = vrot.slane %v444, 2
    %v446 = vmax.f32 %v444, %v445
    %v447 = vrot.slane %v446, 1
    %v448 = vmax.f32 %v446, %v447
    %v449 = vrot.slane %v350, 4
    %v450 = vmax.f32 %v350, %v449
    %v451 = vrot.slane %v450, 2
    %v452 = vmax.f32 %v450, %v451
    %v453 = vrot.slane %v452, 1
    %v454 = vmax.f32 %v452, %v453
    %v455 = vsub.f32 %v329, %v412
    %v456 = vsub.f32 %v332, %v418
    %v457 = vsub.f32 %v335, %v424
    %v458 = vsub.f32 %v338, %v430
    %v459 = vsub.f32 %v341, %v436
    %v460 = vsub.f32 %v344, %v442
    %v461 = vsub.f32 %v347, %v448
    %v462 = vsub.f32 %v350, %v454
    %v463 = vmul.f32 %v455, 1.442695
    %v464 = vpow.pop %v463
    %v465 = vmul.f32 %v456, 1.442695
    %v466 = vpow.pop %v465
    %v467 = vmul.f32 %v457, 1.442695
    %v468 = vpow.pop %v467
    %v469 = vmul.f32 %v458, 1.442695
    %v470 = vpow.pop %v469
    %v471 = vmul.f32 %v459, 1.442695
    %v472 = vpow.pop %v471
    %v473 = vmul.f32 %v460, 1.442695
    %v474 = vpow.pop %v473
    %v475 = vmul.f32 %v461, 1.442695
    %v476 = vpow.pop %v475
    %v477 = vmul.f32 %v462, 1.442695
    %v478 = vpow.pop %v477
    %v479 = vrot.slane %v464, 4
    %v480 = vadd.f32 %v464, %v479
    %v481 = vrot.slane %v480, 2
    %v482 = vadd.f32 %v480, %v481
    %v483 = vrot.slane %v482, 1
    %v484 = vadd.f32 %v482, %v483
    %v485 = vrot.slane %v466, 4
    %v486 = vadd.f32 %v466, %v485
    %v487 = vrot.slane %v486, 2
    %v488 = vadd.f32 %v486, %v487
    %v489 = vrot.slane %v488, 1
    %v490 = vadd.f32 %v488, %v489
    %v491 = vrot.slane %v468, 4
    %v492 = vadd.f32 %v468, %v491
    %v493 = vrot.slane %v492, 2
    %v494 = vadd.f32 %v492, %v493
    %v495 = vrot.slane %v494, 1
    %v496 = vadd.f32 %v494, %v495
    %v497 = vrot.slane %v470, 4
    %v498 = vadd.f32 %v470, %v497
    %v499 = vrot.slane %v498, 2
    %v500 = vadd.f32 %v498, %v499
    %v501 = vrot.slane %v500, 1
    %v502 = vadd.f32 %v500, %v501
    %v503 = vrot.slane %v472, 4
    %v504 = vadd.f32 %v472, %v503
    %v505 = vrot.slane %v504, 2
    %v506 = vadd.f32 %v504, %v505
    %v507 = vrot.slane %v506, 1
    %v508 = vadd.f32 %v506, %v507
    %v509 = vrot.slane %v474, 4
    %v510 = vadd.f32 %v474, %v509
    %v511 = vrot.slane %v510, 2
    %v512 = vadd.f32 %v510, %v511
    %v513 = vrot.slane %v512, 1
    %v514 = vadd.f32 %v512, %v513
    %v515 = vrot.slane %v476, 4
    %v516 = vadd.f32 %v476, %v515
    %v517 = vrot.slane %v516, 2
    %v518 = vadd.f32 %v516, %v517
    %v519 = vrot.slane %v518, 1
    %v520 = vadd.f32 %v518, %v519
    %v521 = vrot.slane %v478, 4
    %v522 = vadd.f32 %v478, %v521
    %v523 = vrot.slane %v522, 2
    %v524 = vadd.f32 %v522, %v523
    %v525 = vrot.slane %v524, 1
    %v526 = vadd.f32 %v524, %v525
    %v527 = vrcp.pop %v484
    %v528 = vmul.f32 %v464, %v527
    %v529 = vrcp.pop %v490
    %v530 = vmul.f32 %v466, %v529
    %v531 = vrcp.pop %v496
    %v532 = vmul.f32 %v468, %v531
    %v533 = vrcp.pop %v502
    %v534 = vmul.f32 %v470, %v533
    %v535 = vrcp.pop %v508
    %v536 = vmul.f32 %v472, %v535
    %v537 = vrcp.pop %v514
    %v538 = vmul.f32 %v474, %v537
    %v539 = vrcp.pop %v520
    %v540 = vmul.f32 %v476, %v539
    %v541 = vrcp.pop %v526
    %v542 = vmul.f32 %v478, %v541
    %v543 = vmul.f32 %v528, %v224
    %v544 = vmul.f32 %v530, %v227
    %v545 = vmul.f32 %v532, %v232
    %v546 = vmul.f32 %v534, %v235
    %v547 = vmul.f32 %v536, %v240
    %v548 = vmul.f32 %v538, %v243
    %v549 = vmul.f32 %v540, %v248
    %v550 = vmul.f32 %v542, %v251
    %vm551 = vcmask 392448
    %v552 = vsel %vm551, %v543, 0.0
    %v553 = vrot.slane %v552, 4
    %v554 = vadd.f32 %v552, %v553
    %v555 = vrot.slane %v554, 2
    %v556 = vadd.f32 %v554, %v555
    %v557 = vrot.slane %v556, 1
    %v558 = vadd.f32 %v556, %v557
    %v559 = vsel %vm551, %v544, 0.0
    %v560 = vrot.slane %v559, 4
    %v561 = vadd.f32 %v559, %v560
    %v562 = vrot.slane %v561, 2
    %v563 = vadd.f32 %v561, %v562
    %v564 = vrot.slane %v563, 1
    %v565 = vadd.f32 %v563, %v564
    %v566 = vsel %vm551, %v545, 0.0
    %v567 = vrot.slane %v566, 4
    %v568 = vadd.f32 %v566, %v567
    %v569 = vrot.slane %v568, 2
    %v570 = vadd.f32 %v568, %v569
    %v571 = vrot.slane %v570, 1
    %v572 = vadd.f32 %v570, %v571
    %v573 = vsel %vm551, %v546, 0.0
    %v574 = vrot.slane %v573, 4
    %v575 = vadd.f32 %v573, %v574
    %v576 = vrot.slane %v575, 2
    %v577 = vadd.f32 %v575, %v576
    %v578 = vrot.slane %v577, 1
    %v579 = vadd.f32 %v577, %v578
    %v580 = vsel %vm551, %v547, 0.0
    %v581 = vrot.slane %v580, 4
    %v582 = vadd.f32 %v580, %v581
    %v583 = vrot.slane %v582, 2
    %v584 = vadd.f32 %v582, %v583
    %v585 = vrot.slane %v584, 1
    %v586 = vadd.f32 %v584, %v585
    %v587 = vsel %vm551, %v548, 0.0
    %v588 = vrot.slane %v587, 4
    %v589 = vadd.f32 %v587, %v588
    %v590 = vrot.slane %v589, 2
    %v591 = vadd.f32 %v589, %v590
    %v592 = vrot.slane %v591, 1
    %v593 = vadd.f32 %v591, %v592
    %v594 = vsel %vm551, %v549, 0.0
    %v595 = vrot.slane %v594, 4
    %v596 = vadd.f32 %v594, %v595
    %v597 = vrot.slane %v596, 2
    %v598 = vadd.f32 %v596, %v597
    %v599 = vrot.slane %v598, 1
    %v600 = vadd.f32 %v598, %v599
    %v601 = vsel %vm551, %v550, 0.0
    %v602 = vrot.slane %v601, 4
    %v603 = vadd.f32 %v601, %v602
    %v604 = vrot.slane %v603, 2
    %v605 = vadd.f32 %v603, %v604
    %v606 = vrot.slane %v605, 1
    %v607 = vadd.f32 %v605, %v606
    %v608 = vrot.slane %v385, 4
    %v609 = vmax.f32 %v385, %v608
    %v610 = vrot.slane %v609, 2
    %v611 = vmax.f32 %v609, %v610
    %v612 = vrot.slane %v611, 1
    %v613 = vmax.f32 %v611, %v612
    %v614 = vrot.slane %v388, 4
    %v615 = vmax.f32 %v388, %v614
    %v616 = vrot.slane %v615, 2
    %v617 = vmax.f32 %v615, %v616
    %v618 = vrot.slane %v617, 1
    %v619 = vmax.f32 %v617, %v618
    %v620 = vrot.slane %v391, 4
    %v621 = vmax.f32 %v391, %v620
    %v622 = vrot.slane %v621, 2
    %v623 = vmax.f32 %v621, %v622
    %v624 = vrot.slane %v623, 1
    %v625 = vmax.f32 %v623, %v624
    %v626 = vrot.slane %v394, 4
    %v627 = vmax.f32 %v394, %v626
    %v628 = vrot.slane %v627, 2
    %v629 = vmax.f32 %v627, %v628
    %v630 = vrot.slane %v629, 1
    %v631 = vmax.f32 %v629, %v630
    %v632 = vrot.slane %v397, 4
    %v633 = vmax.f32 %v397, %v632
    %v634 = vrot.slane %v633, 2
    %v635 = vmax.f32 %v633, %v634
    %v636 = vrot.slane %v635, 1
    %v637 = vmax.f32 %v635, %v636
    %v638 = vrot.slane %v400, 4
    %v639 = vmax.f32 %v400, %v638
    %v640 = vrot.slane %v639, 2
    %v641 = vmax.f32 %v639, %v640
    %v642 = vrot.slane %v641, 1
    %v643 = vmax.f32 %v641, %v642
    %v644 = vrot.slane %v403, 4
    %v645 = vmax.f32 %v403, %v644
    %v646 = vrot.slane %v645, 2
    %v647 = vmax.f32 %v645, %v646
    %v648 = vrot.slane %v647, 1
    %v649 = vmax.f32 %v647, %v648
    %v650 = vrot.slane %v406, 4
    %v651 = vmax.f32 %v406, %v650
    %v652 = vrot.slane %v651, 2
    %v653 = vmax.f32 %v651, %v652
    %v654 = vrot.slane %v653, 1
    %v655 = vmax.f32 %v653, %v654
    %v656 = vsub.f32 %v385, %v613
    %v657 = vsub.f32 %v388, %v619
    %v658 = vsub.f32 %v391, %v625
    %v659 = vsub.f32 %v394, %v631
    %v660 = vsub.f32 %v397, %v637
    %v661 = vsub.f32 %v400, %v643
    %v662 = vsub.f32 %v403, %v649
    %v663 = vsub.f32 %v406, %v655
    %v664 = vmul.f32 %v656, 1.442695
    %v665 = vpow.pop %v664
    %v666 = vmul.f32 %v657, 1.442695
    %v667 = vpow.pop %v666
    %v668 = vmul.f32 %v658, 1.442695
    %v669 = vpow.pop %v668
    %v670 = vmul.f32 %v659, 1.442695
    %v671 = vpow.pop %v670
    %v672 = vmul.f32 %v660, 1.442695
    %v673 = vpow.pop %v672
    %v674 = vmul.f32 %v661, 1.442695
    %v675 = vpow.pop %v674
    %v676 = vmul.f32 %v662, 1.442695
    %v677 = vpow.pop %v676
    %v678 = vmul.f32 %v663, 1.442695
    %v679 = vpow.pop %v678
    %v680 = vrot.slane %v665, 4
    %v681 = vadd.f32 %v665, %v680
    %v682 = vrot.slane %v681, 2
    %v683 = vadd.f32 %v681, %v682
    %v684 = vrot.slane %v683, 1
    %v685 = vadd.f32 %v683, %v684
    %v686 = vrot.slane %v667, 4
    %v687 = vadd.f32 %v667, %v686
    %v688 = vrot.slane %v687, 2
    %v689 = vadd.f32 %v687, %v688
    %v690 = vrot.slane %v689, 1
    %v691 = vadd.f32 %v689, %v690
    %v692 = vrot.slane %v669, 4
    %v693 = vadd.f32 %v669, %v692
    %v694 = vrot.slane %v693, 2
    %v695 = vadd.f32 %v693, %v694
    %v696 = vrot.slane %v695, 1
    %v697 = vadd.f32 %v695, %v696
    %v698 = vrot.slane %v671, 4
    %v699 = vadd.f32 %v671, %v698
    %v700 = vrot.slane %v699, 2
    %v701 = vadd.f32 %v699, %v700
    %v702 = vrot.slane %v701, 1
    %v703 = vadd.f32 %v701, %v702
    %v704 = vrot.slane %v673, 4
    %v705 = vadd.f32 %v673, %v704
    %v706 = vrot.slane %v705, 2
    %v707 = vadd.f32 %v705, %v706
    %v708 = vrot.slane %v707, 1
    %v709 = vadd.f32 %v707, %v708
    %v710 = vrot.slane %v675, 4
    %v711 = vadd.f32 %v675, %v710
    %v712 = vrot.slane %v711, 2
    %v713 = vadd.f32 %v711, %v712
    %v714 = vrot.slane %v713, 1
    %v715 = vadd.f32 %v713, %v714
    %v716 = vrot.slane %v677, 4
    %v717 = vadd.f32 %v677, %v716
    %v718 = vrot.slane %v717, 2
    %v719 = vadd.f32 %v717, %v718
    %v720 = vrot.slane %v719, 1
    %v721 = vadd.f32 %v719, %v720
    %v722 = vrot.slane %v679, 4
    %v723 = vadd.f32 %v679, %v722
    %v724 = vrot.slane %v723, 2
    %v725 = vadd.f32 %v723, %v724
    %v726 = vrot.slane %v725, 1
    %v727 = vadd.f32 %v725, %v726
    %v728 = vrcp.pop %v685
    %v729 = vmul.f32 %v665, %v728
    %v730 = vrcp.pop %v691
    %v731 = vmul.f32 %v667, %v730
    %v732 = vrcp.pop %v697
    %v733 = vmul.f32 %v669, %v732
    %v734 = vrcp.pop %v703
    %v735 = vmul.f32 %v671, %v734
    %v736 = vrcp.pop %v709
    %v737 = vmul.f32 %v673, %v736
    %v738 = vrcp.pop %v715
    %v739 = vmul.f32 %v675, %v738
    %v740 = vrcp.pop %v721
    %v741 = vmul.f32 %v677, %v740
    %v742 = vrcp.pop %v727
    %v743 = vmul.f32 %v679, %v742
    %v744 = vmul.f32 %v729, %v224
    %v745 = vmul.f32 %v731, %v227
    %v746 = vmul.f32 %v733, %v232
    %v747 = vmul.f32 %v735, %v235
    %v748 = vmul.f32 %v737, %v240
    %v749 = vmul.f32 %v739, %v243
    %v750 = vmul.f32 %v741, %v248
    %v751 = vmul.f32 %v743, %v251
    %vm752 = vcmask 523648
    %v753 = vsel %vm752, %v744, 0.0
    %v754 = vrot.slane %v753, 4
    %v755 = vadd.f32 %v753, %v754
    %v756 = vrot.slane %v755, 2
    %v757 = vadd.f32 %v755, %v756
    %v758 = vrot.slane %v757, 1
    %v759 = vadd.f32 %v757, %v758
    %v760 = vsel %vm752, %v745, 0.0
    %v761 = vrot.slane %v760, 4
    %v762 = vadd.f32 %v760, %v761
    %v763 = vrot.slane %v762, 2
    %v764 = vadd.f32 %v762, %v763
    %v765 = vrot.slane %v764, 1
    %v766 = vadd.f32 %v764, %v765
    %v767 = vsel %vm752, %v746, 0.0
    %v768 = vrot.slane %v767, 4
    %v769 = vadd.f32 %v767, %v768
    %v770 = vrot.slane %v769, 2
    %v771 = vadd.f32 %v769, %v770
    %v772 = vrot.slane %v771, 1
    %v773 = vadd.f32 %v771, %v772
    %v774 = vsel %vm752, %v747, 0.0
    %v775 = vrot.slane %v774, 4
    %v776 = vadd.f32 %v774, %v775
    %v777 = vrot.slane %v776, 2
    %v778 = vadd.f32 %v776, %v777
    %v779 = vrot.slane %v778, 1
    %v780 = vadd.f32 %v778, %v779
    %v781 = vsel %vm752, %v748, 0.0
    %v782 = vrot.slane %v781, 4
    %v783 = vadd.f32 %v781, %v782
    %v784 = vrot.slane %v783, 2
    %v785 = vadd.f32 %v783, %v784
    %v786 = vrot.slane %v785, 1
    %v787 = vadd.f32 %v785, %v786
    %v788 = vsel %vm752, %v749, 0.0
    %v789 = vrot.slane %v788, 4
    %v790 = vadd.f32 %v788, %v789
    %v791 = vrot.slane %v790, 2
    %v792 = vadd.f32 %v790, %v791
    %v793 = vrot.slane %v792, 1
    %v794 = vadd.f32 %v792, %v793
    %v795 = vsel %vm752, %v750, 0.0
    %v796 = vrot.slane %v795, 4
    %v797 = vadd.f32 %v795, %v796
    %v798 = vrot.slane %v797, 2
    %v799 = vadd.f32 %v797, %v798
    %v800 = vrot.slane %v799, 1
    %v801 = vadd.f32 %v799, %v800
    %v802 = vsel %vm752, %v751, 0.0
    %v803 = vrot.slane %v802, 4
    %v804 = vadd.f32 %v802, %v803
    %v805 = vrot.slane %v804, 2
    %v806 = vadd.f32 %v804, %v805
    %v807 = vrot.slane %v806, 1
    %v808 = vadd.f32 %v806, %v807
    %v809 = vpack.c.bf16 %v558, %v558
    %v810 = vpack.c.bf16 %v565, %v565
    %v811 = vpack.c.bf16 %v572, %v572
    %v812 = vpack.c.bf16 %v579, %v579
    %v813 = vpack.c.bf16 %v586, %v586
    %v814 = vpack.c.bf16 %v593, %v593
    %v815 = vpack.c.bf16 %v600, %v600
    %v816 = vpack.c.bf16 %v607, %v607
    %v817 = vld [vmem:[#allocation6] sm:$0xf]
    %v818 = vld [vmem:[#allocation6 + $0x4] sm:$0xf]
    %v819 = vpack.c.bf16 %v759, %v759
    %v820 = vpack.c.bf16 %v766, %v766
    %v821 = vpack.c.bf16 %v773, %v773
    %v822 = vpack.c.bf16 %v780, %v780
    %v823 = vpack.c.bf16 %v787, %v787
    %v824 = vpack.c.bf16 %v794, %v794
    %v825 = vpack.c.bf16 %v801, %v801
    %v826 = vpack.c.bf16 %v808, %v808
    %v827 = vld [vmem:[#allocation8] sm:$0xf]
    %v828 = vld [vmem:[#allocation8 + $0x4] sm:$0xf]
    %v837 = vunpack.c.l.b16 %v819
    %v838 = vunpack.c.l.b16 %v820
    %v839 = vunpack.c.l.b16 %v821
    %v840 = vunpack.c.l.b16 %v822
    %v841 = vunpack.c.l.b16 %v823
    %v842 = vunpack.c.l.b16 %v824
    %v843 = vunpack.c.l.b16 %v825
    %v844 = vunpack.c.l.b16 %v826
    %vm845 = vcmask 1041409
    %v846 = vsel %vm845, %v838, %v837
    %vm847 = vcmask 1042434
    %v848 = vsel %vm847, %v839, %v846
    %vm849 = vcmask 1043459
    %v850 = vsel %vm849, %v840, %v848
    %vm851 = vcmask 1044484
    %v852 = vsel %vm851, %v841, %v850
    %vm853 = vcmask 1045509
    %v854 = vsel %vm853, %v842, %v852
    %vm855 = vcmask 1046534
    %v856 = vsel %vm855, %v843, %v854
    %vm857 = vcmask 1047559
    %v858 = vsel %vm857, %v844, %v856
    %v859 = vpack.c.b16 %v858, %v858
    %860 = vrot.lane.b32.xlu0 %v859, 80
    %v861 = vpop.permute.xlu0 %860
    %v864 = vunpack.c.l.b16 %v827
    %v865 = vunpack.c.l.b16 %v828
    %v866 = vpack.c.b16 %v865, %v864
    %v869 = vsel %vm326, %v861, 0
    %871 = vmatprep.subr.bf16.mxu0 0
    %872 = vmatpush1.bf16.msra.mxu0 0
    %873 = vmatprep.subr.bf16.mxu0 0
    %874 = vmatpush1.bf16.msra.mxu0 0
    %875 = vmatprep.subr.bf16.mxu0 0
    %876 = vmatpush1.bf16.msra.mxu0 0
    %877 = vmatprep.subr.bf16.mxu0 0
    %878 = vmatpush1.bf16.msra.mxu0 0
    %879 = vmatprep.subr.bf16.mxu0 0
    %880 = vmatpush1.bf16.msra.mxu0 0
    %881 = vmatprep.subr.bf16.mxu0 0
    %882 = vmatpush1.bf16.msra.mxu0 0
    %883 = vmatprep.subr.bf16.mxu0 0
    %884 = vmatpush1.bf16.msra.mxu0 0
    %885 = vmatprep.subr.bf16.mxu0 0
    %886 = vmatpush1.bf16.msra.mxu0 %v866
    %887 = vmatprep.subr.bf16.mxu0 0
    %888 = vmatpush2.bf16.msra.mxu0 0
    %889 = vmatprep.subr.bf16.mxu0 0
    %890 = vmatpush2.bf16.msra.mxu0 0
    %891 = vmatprep.subr.bf16.mxu0 0
    %892 = vmatpush2.bf16.msra.mxu0 0
    %893 = vmatprep.subr.bf16.mxu0 0
    %894 = vmatpush2.bf16.msra.mxu0 0
    %895 = vmatprep.subr.bf16.mxu0 0
    %896 = vmatpush2.bf16.msra.mxu0 0
    %897 = vmatprep.subr.bf16.mxu0 0
    %898 = vmatpush2.bf16.msra.mxu0 0
    %899 = vmatprep.subr.bf16.mxu0 0
    %900 = vmatpush2.bf16.msra.mxu0 0
    %901 = vmatprep.subr.bf16.mxu0 0
    %902 = vmatpush2.bf16.msra.mxu0 0
    %903 = vmatprep.mubr.bf16.mxu0 0
    %904 = vmatmul.mubr.bf16.gmra.mxu0 %v869
    %v905 = vpop.f32.mrf.mxu0
    %v906 = vadd.f32 0.0, %v905
    %v907 = vpop.f32.mrf.mxu0
    %v908 = vpop.f32.mrf.mxu0
    %v909 = vpop.f32.mrf.mxu0
    %910 = vdwg.mxu0
    %v919 = vunpack.c.l.b16 %v809
    %v920 = vunpack.c.l.b16 %v810
    %v921 = vunpack.c.l.b16 %v811
    %v922 = vunpack.c.l.b16 %v812
    %v923 = vunpack.c.l.b16 %v813
    %v924 = vunpack.c.l.b16 %v814
    %v925 = vunpack.c.l.b16 %v815
    %v926 = vunpack.c.l.b16 %v816
    %v927 = vsel %vm845, %v920, %v919
    %v928 = vsel %vm847, %v921, %v927
    %v929 = vsel %vm849, %v922, %v928
    %v930 = vsel %vm851, %v923, %v929
    %v931 = vsel %vm853, %v924, %v930
    %v932 = vsel %vm855, %v925, %v931
    %v933 = vsel %vm857, %v926, %v932
    %v934 = vpack.c.b16 %v933, %v933
    %935 = vrot.lane.b32.xlu0 %v934, 96
    %v936 = vpop.permute.xlu0 %935
    %v939 = vunpack.c.l.b16 %v817
    %v940 = vunpack.c.l.b16 %v818
    %v941 = vpack.c.b16 %v940, %v939
    %v944 = vsel %vm326, %v936, 0
    %946 = vmatprep.subr.bf16.mxu0 0
    %947 = vmatpush1.bf16.msra.mxu0 0
    %948 = vmatprep.subr.bf16.mxu0 0
    %949 = vmatpush1.bf16.msra.mxu0 0
    %950 = vmatprep.subr.bf16.mxu0 0
    %951 = vmatpush1.bf16.msra.mxu0 0
    %952 = vmatprep.subr.bf16.mxu0 0
    %953 = vmatpush1.bf16.msra.mxu0 0
    %954 = vmatprep.subr.bf16.mxu0 0
    %955 = vmatpush1.bf16.msra.mxu0 0
    %956 = vmatprep.subr.bf16.mxu0 0
    %957 = vmatpush1.bf16.msra.mxu0 0
    %958 = vmatprep.subr.bf16.mxu0 0
    %959 = vmatpush1.bf16.msra.mxu0 0
    %960 = vmatprep.subr.bf16.mxu0 0
    %961 = vmatpush1.bf16.msra.mxu0 %v941
    %962 = vmatprep.subr.bf16.mxu0 0
    %963 = vmatpush2.bf16.msra.mxu0 0
    %964 = vmatprep.subr.bf16.mxu0 0
    %965 = vmatpush2.bf16.msra.mxu0 0
    %966 = vmatprep.subr.bf16.mxu0 0
    %967 = vmatpush2.bf16.msra.mxu0 0
    %968 = vmatprep.subr.bf16.mxu0 0
    %969 = vmatpush2.bf16.msra.mxu0 0
    %970 = vmatprep.subr.bf16.mxu0 0
    %971 = vmatpush2.bf16.msra.mxu0 0
    %972 = vmatprep.subr.bf16.mxu0 0
    %973 = vmatpush2.bf16.msra.mxu0 0
    %974 = vmatprep.subr.bf16.mxu0 0
    %975 = vmatpush2.bf16.msra.mxu0 0
    %976 = vmatprep.subr.bf16.mxu0 0
    %977 = vmatpush2.bf16.msra.mxu0 0
    %978 = vmatprep.mubr.bf16.mxu0 0
    %979 = vmatmul.mubr.bf16.gmra.mxu0 %v944
    %v980 = vpop.f32.mrf.mxu0
    %v981 = vadd.f32 %v906, %v980
    %v982 = vpop.f32.mrf.mxu0
    %v983 = vpop.f32.mrf.mxu0
    %v984 = vpop.f32.mrf.mxu0
    %985 = vdwg.mxu0
    %v986 = vld [vmem:[#allocation9] sm:$0x1]
    %v988 = vlaneseq
    %v989 = vshrl.u32 %v988, 7
    %v990 = vsub.s32 0, %v989
    %v991 = vrot.slane %v986, %v990
    %v993 = vadd.f32 %v981, %v991
    %v994 = vld [vmem:[#allocation11] sm:$0x1]
    %v995 = vld [vmem:[#allocation12] sm:$0x1]
    %v996 = vunpack.c.l.bf16 %v125
    %v997 = vunpack.c.l.bf16 %v126
    %v998 = vunpack.c.l.bf16 %v127
    %v999 = vunpack.c.l.bf16 %v128
    %v1000 = vunpack.c.l.bf16 %v129
    %v1001 = vunpack.c.l.bf16 %v130
    %v1002 = vunpack.c.l.bf16 %v131
    %v1003 = vunpack.c.l.bf16 %v132
    %v1012 = vrot.slane %v997, 7
    %v1013 = vsel %vm845, %v1012, %v996
    %v1014 = vrot.slane %v998, 6
    %v1015 = vsel %vm847, %v1014, %v1013
    %v1016 = vrot.slane %v999, 5
    %v1017 = vsel %vm849, %v1016, %v1015
    %v1018 = vrot.slane %v1000, 4
    %v1019 = vsel %vm851, %v1018, %v1017
    %v1020 = vrot.slane %v1001, 3
    %v1021 = vsel %vm853, %v1020, %v1019
    %v1022 = vrot.slane %v1002, 2
    %v1023 = vsel %vm855, %v1022, %v1021
    %v1024 = vrot.slane %v1003, 1
    %v1025 = vsel %vm857, %v1024, %v1023
    %v1027 = vadd.f32 %v993, %v1025
    %v1028 = vsel %vm176, %v1027, 0.0
    %1029 = vadd.xlane.f32.xlu0 %v1028
    %v1030 = vpop.xlane.xlu0 %1029
    %v1031 = vrcp.pop 32.0
    %v1032 = vmul.f32 %v1030, %v1031
    %v1033 = vsub.f32 %v1027, %v1032
    %v1034 = vmul.f32 %v1033, %v1033
    %v1035 = vsel %vm176, %v1034, 0.0
    %1036 = vadd.xlane.f32.xlu0 %v1035
    %v1037 = vpop.xlane.xlu0 %1036
    %v1038 = vmul.f32 %v1037, %v1031
    %v1039 = vadd.f32 %v1038, 1e-05
    %v1040 = vrsqrt.pop %v1039
    %v1041 = vmul.f32 %v1033, %v1040
    %v1043 = vlaneseq
    %v1044 = vshrl.u32 %v1043, 7
    %v1045 = vsub.s32 0, %v1044
    %v1046 = vrot.slane %v994, %v1045
    %v1048 = vmul.f32 %v1041, %v1046
    %v1050 = vlaneseq
    %v1051 = vshrl.u32 %v1050, 7
    %v1052 = vsub.s32 0, %v1051
    %v1053 = vrot.slane %v995, %v1052
    %v1055 = vadd.f32 %v1048, %v1053
    %v1056 = vpack.c.bf16 %v1055, %v1055
    %v1057 = vld [vmem:[%s8] sm:$0xf]
    %v1058 = vld [vmem:[%s8 + $0x4] sm:$0xf]
    %v1059 = vld [vmem:[%s8 + $0x8] sm:$0xf]
    %v1060 = vld [vmem:[%s8 + $0xc] sm:$0xf]
    %v1061 = vld [vmem:[%s9] sm:$0x1]
    %v1063 = vlaneseq
    %v1064 = vshrl.u32 %v1063, 7
    %v1065 = vsub.s32 0, %v1064
    %v1066 = vrot.slane %v1061, %v1065
    %v1072 = vunpack.c.l.b16 %v1057
    %v1073 = vunpack.c.l.b16 %v1058
    %v1074 = vunpack.c.l.b16 %v1059
    %v1075 = vunpack.c.l.b16 %v1060
    %v1076 = vpack.c.b16 %v1073, %v1072
    %v1077 = vpack.c.b16 %v1075, %v1074
    %v1081 = vsel %vm176, %v1056, 0
    %1083 = vmatprep.subr.bf16.mxu0 0
    %1084 = vmatpush1.bf16.msra.mxu0 0
    %1085 = vmatprep.subr.bf16.mxu0 0
    %1086 = vmatpush1.bf16.msra.mxu0 0
    %1087 = vmatprep.subr.bf16.mxu0 0
    %1088 = vmatpush1.bf16.msra.mxu0 0
    %1089 = vmatprep.subr.bf16.mxu0 0
    %1090 = vmatpush1.bf16.msra.mxu0 0
    %1091 = vmatprep.subr.bf16.mxu0 0
    %1092 = vmatpush1.bf16.msra.mxu0 0
    %1093 = vmatprep.subr.bf16.mxu0 0
    %1094 = vmatpush1.bf16.msra.mxu0 0
    %1095 = vmatprep.subr.bf16.mxu0 0
    %1096 = vmatpush1.bf16.msra.mxu0 %v1077
    %1097 = vmatprep.subr.bf16.mxu0 0
    %1098 = vmatpush1.bf16.msra.mxu0 %v1076
    %1099 = vmatprep.subr.bf16.mxu0 0
    %1100 = vmatpush2.bf16.msra.mxu0 0
    %1101 = vmatprep.subr.bf16.mxu0 0
    %1102 = vmatpush2.bf16.msra.mxu0 0
    %1103 = vmatprep.subr.bf16.mxu0 0
    %1104 = vmatpush2.bf16.msra.mxu0 0
    %1105 = vmatprep.subr.bf16.mxu0 0
    %1106 = vmatpush2.bf16.msra.mxu0 0
    %1107 = vmatprep.subr.bf16.mxu0 0
    %1108 = vmatpush2.bf16.msra.mxu0 0
    %1109 = vmatprep.subr.bf16.mxu0 0
    %1110 = vmatpush2.bf16.msra.mxu0 0
    %1111 = vmatprep.subr.bf16.mxu0 0
    %1112 = vmatpush2.bf16.msra.mxu0 0
    %1113 = vmatprep.subr.bf16.mxu0 0
    %1114 = vmatpush2.bf16.msra.mxu0 0
    %1115 = vmatprep.mubr.bf16.mxu0 0
    %1116 = vmatmul.mubr.bf16.gmra.mxu0 %v1081
    %v1117 = vpop.f32.mrf.mxu0
    %v1118 = vadd.f32 %v1066, %v1117
    %v1119 = vpop.f32.mrf.mxu0
    %v1120 = vpop.f32.mrf.mxu0
    %v1121 = vpop.f32.mrf.mxu0
    %1122 = vdwg.mxu0
    %v1123 = vmax.f32 %v1118, 0.0
    %v1124 = vpack.c.bf16 %v1123, %v1123
    %v1125 = vld [vmem:[%s10] sm:$0xf]
    %v1126 = vld [vmem:[%s10 + $0x4] sm:$0xf]
    %v1127 = vld [vmem:[%s10 + $0x8] sm:$0xf]
    %v1128 = vld [vmem:[%s10 + $0xc] sm:$0xf]
    %v1129 = vld [vmem:[%s10 + $0x10] sm:$0xf]
    %v1130 = vld [vmem:[%s10 + $0x14] sm:$0xf]
    %v1131 = vld [vmem:[%s10 + $0x18] sm:$0xf]
    %v1132 = vld [vmem:[%s10 + $0x1c] sm:$0xf]
    %v1133 = vld [vmem:[%s11] sm:$0x1]
    %v1135 = vlaneseq
    %v1136 = vshrl.u32 %v1135, 7
    %v1137 = vsub.s32 0, %v1136
    %v1138 = vrot.slane %v1133, %v1137
    %v1148 = vunpack.c.l.b16 %v1125
    %v1149 = vunpack.c.l.b16 %v1126
    %v1150 = vunpack.c.l.b16 %v1127
    %v1151 = vunpack.c.l.b16 %v1128
    %v1152 = vunpack.c.l.b16 %v1129
    %v1153 = vunpack.c.l.b16 %v1130
    %v1154 = vunpack.c.l.b16 %v1131
    %v1155 = vunpack.c.l.b16 %v1132
    %v1156 = vpack.c.b16 %v1149, %v1148
    %v1157 = vpack.c.b16 %v1151, %v1150
    %v1158 = vpack.c.b16 %v1153, %v1152
    %v1159 = vpack.c.b16 %v1155, %v1154
    %vm1164 = vcmask 523264
    %v1166 = vsel %vm1164, %v1124, 0
    %1168 = vmatprep.subr.bf16.mxu0 0
    %1169 = vmatpush1.bf16.msra.mxu0 0
    %1170 = vmatprep.subr.bf16.mxu0 0
    %1171 = vmatpush1.bf16.msra.mxu0 0
    %1172 = vmatprep.subr.bf16.mxu0 0
    %1173 = vmatpush1.bf16.msra.mxu0 0
    %1174 = vmatprep.subr.bf16.mxu0 0
    %1175 = vmatpush1.bf16.msra.mxu0 0
    %1176 = vmatprep.subr.bf16.mxu0 0
    %1177 = vmatpush1.bf16.msra.mxu0 %v1159
    %1178 = vmatprep.subr.bf16.mxu0 0
    %1179 = vmatpush1.bf16.msra.mxu0 %v1158
    %1180 = vmatprep.subr.bf16.mxu0 0
    %1181 = vmatpush1.bf16.msra.mxu0 %v1157
    %1182 = vmatprep.subr.bf16.mxu0 0
    %1183 = vmatpush1.bf16.msra.mxu0 %v1156
    %1184 = vmatprep.subr.bf16.mxu0 0
    %1185 = vmatpush2.bf16.msra.mxu0 0
    %1186 = vmatprep.subr.bf16.mxu0 0
    %1187 = vmatpush2.bf16.msra.mxu0 0
    %1188 = vmatprep.subr.bf16.mxu0 0
    %1189 = vmatpush2.bf16.msra.mxu0 0
    %1190 = vmatprep.subr.bf16.mxu0 0
    %1191 = vmatpush2.bf16.msra.mxu0 0
    %1192 = vmatprep.subr.bf16.mxu0 0
    %1193 = vmatpush2.bf16.msra.mxu0 0
    %1194 = vmatprep.subr.bf16.mxu0 0
    %1195 = vmatpush2.bf16.msra.mxu0 0
    %1196 = vmatprep.subr.bf16.mxu0 0
    %1197 = vmatpush2.bf16.msra.mxu0 0
    %1198 = vmatprep.subr.bf16.mxu0 0
    %1199 = vmatpush2.bf16.msra.mxu0 0
    %1200 = vmatprep.mubr.bf16.mxu0 0
    %1201 = vmatmul.mubr.bf16.gmra.mxu0 %v1166
    %v1202 = vpop.f32.mrf.mxu0
    %v1203 = vadd.f32 %v1138, %v1202
    %v1204 = vpop.f32.mrf.mxu0
    %v1205 = vpop.f32.mrf.mxu0
    %v1206 = vpop.f32.mrf.mxu0
    %1207 = vdwg.mxu0
    %v1208 = vadd.f32 %v1203, %v1055
    %v1209 = vsel %vm176, %v1208, 0.0
    %1210 = vadd.xlane.f32.xlu0 %v1209
    %v1211 = vpop.xlane.xlu0 %1210
    %v1212 = vmul.f32 %v1211, %v1031
    %v1213 = vsub.f32 %v1208, %v1212
    %v1214 = vmul.f32 %v1213, %v1213
    %v1215 = vsel %vm176, %v1214, 0.0
    %1216 = vadd.xlane.f32.xlu0 %v1215
    %v1217 = vpop.xlane.xlu0 %1216
    %v1218 = vmul.f32 %v1217, %v1031
    %v1219 = vadd.f32 %v1218, 1e-05
    %v1220 = vrsqrt.pop %v1219
    %v1221 = vmul.f32 %v1213, %v1220
    %v1222 = vmul.f32 %v1221, %v1046
    %v1223 = vadd.f32 %v1222, %v1053
    %v1224 = vld [vmem:[%s12] sm:$0x1]
    %v1226 = vlaneseq
    %v1227 = vshrl.u32 %v1226, 7
    %v1228 = vsub.s32 0, %v1227
    %v1229 = vrot.slane %v1224, %v1228
    %v1231 = vmul.f32 %v1223, %v1229
    %v1232 = vsel %vm176, %v1231, 0.0
    %1233 = vadd.xlane.f32.xlu0 %v1232
    %v1234 = vpop.xlane.xlu0 %1233
    %v1235 = vld [vmem:[#allocation2] sm:$0x1]
    %v1237 = vlaneseq
    %v1238 = vshrl.u32 %v1237, 7
    %v1239 = vsub.s32 0, %v1238
    %v1240 = vrot.slane %v1235, %v1239
    %v1242 = vadd.f32 %v1234, %v1240
    %v1243 = vxor.u32 %v1242, 2147483648
    %v1244 = vmul.f32 %v1243, 1.442695
    %v1245 = vpow.pop %v1244
    %v1246 = vadd.f32 %v1245, 1.0
    %v1247 = vrcp.pop %v1246
    %v1248 = vmul.f32 1.0, %v1247
    %1250 = vset.pattern.permute.xlu0 0
    %1251 = vperm.xlu0 %1250, %v1248
    %v1252 = vpop.permute.xlu0 %1251
    %v1253 = vlaneseq
    %v1254 = vand.u32 %v1253, 127
    %v1255 = vlaneseq
    %v1256 = vshrl.u32 %v1255, 7
    %v1257 = vsub.s32 %v1254, %v1256
    %v1258 = vrot.slane %v1252, %v1257
    %vm1260 = vcmask 57344
    %1261 = vst.msk [vmem:[#allocation14] sm:$0x1] %vm1260, %v1258
    // Predicated region
    $region82: #{tpu_custom_call.1} parent=1 // pred_check
      _
    $region83: #{tpu_custom_call.1} parent=1 // pred_check_branch
      %1263 = sbr.rel (0) target = $region85
    $region84: #{tpu_custom_call.1} parent=1 // pred_region
      %s1265 = ssub.s32 16, 16
      %1266 = vsyncadd [#allocation5], %s1265
      %s1268 = sshll.u32 [#allocation14], 4
      %s1269 = int_to_ptr.vmem [resolvable:$true] %s1268
      %1271 = dma.vmem_to_hbm [thread:$0]  %s1269, 16, %s14, [#allocation5]
    $region85: #{tpu_custom_call.1} parent=1 // pred_fallthru
      _
    // Predicated region
    $region86: #{tpu_custom_call.1} parent=1 // pred_check
      _
    $region87: #{tpu_custom_call.1} parent=1 // pred_check_branch
      %1273 = sbr.rel (0) target = $region89
    $region88: #{tpu_custom_call.1} parent=1 // pred_region
      %1274 = dma.done [#allocation5], 16
    $region89: #{tpu_custom_call.1} parent=1 // pred_fallthru
      _
    %1275 = vsyncpa [#allocation4], 1
    %1276 = vsyncpa [#allocation7], 1
    %1277 = vsyncpa [#allocation10], 1
    %1278 = vsyncpa [#allocation13], 1
    %1279 = vsyncpa [#allocation5], 1

// kernel: tpu_custom_call.1
$region0: #{tpu_custom_call.1}
  #allocation0 [shape = 'u32[]', space=smem, size = 0x4, offset = 0x4, fixed_abs, tag = 'smem constant byte address 0x4 - core index']
  #allocation1 [shape = 'u32[144,128]{1,0:T(1,128)}', space=vmem, size = 0x12000, scoped, tag = 'internal scratch']
  #allocation2 [shape = 'f32[1,1]{1,0:T(1,128)S(1)}', space=vmem, size = 0x200, scoped, tag = 'scoped memory for tpu_custom_call.1']
  %s0 = inlined_call_operand.vmem [shape: bf16[8,8,32], index: 0, kind: input, shape index: {}]
  %s1 = inlined_call_operand.vmem [shape: bf16[32,96], index: 1, kind: input, shape index: {}]
  %s2 = inlined_call_operand.hbm [shape: f32[1,96], index: 2, kind: input, shape index: {}]
  %s3 = inlined_call_operand.hbm [shape: bf16[16,32], index: 3, kind: input, shape index: {}]
  %s4 = inlined_call_operand.hbm [shape: bf16[16,32], index: 4, kind: input, shape index: {}]
  %s5 = inlined_call_operand.hbm [shape: f32[1,32], index: 5, kind: input, shape index: {}]
  %s6 = inlined_call_operand.hbm [shape: f32[1,32], index: 6, kind: input, shape index: {}]
  %s7 = inlined_call_operand.hbm [shape: f32[1,32], index: 7, kind: input, shape index: {}]
  %s8 = inlined_call_operand.vmem [shape: bf16[32,64], index: 8, kind: input, shape index: {}]
  %s9 = inlined_call_operand.vmem [shape: f32[1,64], index: 9, kind: input, shape index: {}]
  %s10 = inlined_call_operand.vmem [shape: bf16[64,32], index: 10, kind: input, shape index: {}]
  %s11 = inlined_call_operand.vmem [shape: f32[1,32], index: 11, kind: input, shape index: {}]
  %s12 = inlined_call_operand.vmem [shape: f32[1,32], index: 12, kind: input, shape index: {}]
  %s13 = inlined_call_operand.<no memory space> [shape: f32[1,1], index: 13, kind: input, shape index: {}]
  %s14 = inlined_call_operand.vmem [shape: f32[8,1], index: 14, kind: output, shape index: {}]
  %s15 = sld [smem:[#allocation0]]
  $region90: #{tpu_custom_call.1} parent=0
    _
  %s17 = ssub.s32 1, %s15
  %s18 = scalar_select 0, %s17, %s15
  %v19 = vstv %s13
  %20 = vst [vmem:[#allocation2] sm:$0x1] %v19
  $region1: #{tpu_custom_call.1} parent=0
    #allocation3 [shape = 'u8[512]{0}', space=vmem, size = 0x400, scoped, tag = 'input window, operand 2, single buffered']
    #allocation4 [shape = 's32[1]{0}', space=sflag, size = 0x4, scoped, tag = 'scoped memory for tpu_custom_call.1']
    #allocation5 [shape = 'u8[4096]{0}', space=vmem, size = 0x1000, scoped, tag = 'input window, operand 3, single buffered']
    #allocation6 [shape = 's32[1]{0}', space=sflag, size = 0x4, scoped, tag = 'scoped memory for tpu_custom_call.1']
    #allocation7 [shape = 'u8[4096]{0}', space=vmem, size = 0x1000, scoped, tag = 'input window, operand 4, single buffered']
    #allocation8 [shape = 'u8[512]{0}', space=vmem, size = 0x400, scoped, tag = 'input window, operand 5, single buffered']
    #allocation9 [shape = 's32[1]{0}', space=sflag, size = 0x4, scoped, tag = 'scoped memory for tpu_custom_call.1']
    #allocation10 [shape = 'u8[512]{0}', space=vmem, size = 0x400, scoped, tag = 'input window, operand 6, single buffered']
    #allocation11 [shape = 'u8[512]{0}', space=vmem, size = 0x400, scoped, tag = 'input window, operand 7, single buffered']
    #allocation12 [shape = 's32[1]{0}', space=sflag, size = 0x4, scoped, tag = 'scoped memory for tpu_custom_call.1']
    %21 = vsyncpa [#allocation4], 0
    %22 = vsyncpa [#allocation6], 0
    %23 = vsyncpa [#allocation9], 0
    %24 = vsyncpa [#allocation12], 0
    // Predicated region
    $region2: #{tpu_custom_call.1} parent=1 // pred_check
      _
    $region3: #{tpu_custom_call.1} parent=1 // pred_check_branch
      %26 = sbr.rel (0) target = $region5
    $region4: #{tpu_custom_call.1} parent=1 // pred_region
      _
    $region5: #{tpu_custom_call.1} parent=1 // pred_fallthru
      _
    // Predicated region
    $region6: #{tpu_custom_call.1} parent=1 // pred_check
      _
    $region7: #{tpu_custom_call.1} parent=1 // pred_check_branch
      %28 = sbr.rel (0) target = $region9
    $region8: #{tpu_custom_call.1} parent=1 // pred_region
      _
    $region9: #{tpu_custom_call.1} parent=1 // pred_fallthru
      _
    // Predicated region
    $region10: #{tpu_custom_call.1} parent=1 // pred_check
      _
    $region11: #{tpu_custom_call.1} parent=1 // pred_check_branch
      %30 = sbr.rel (0) target = $region13
    $region12: #{tpu_custom_call.1} parent=1 // pred_region
      %s32 = ssub.s32 16, 16
      %33 = vsyncadd [#allocation4], %s32
      %s35 = sshll.u32 [#allocation3], 4
      %s36 = int_to_ptr.vmem [resolvable:$true] %s35
      %38 = dma.hbm_to_vmem [thread:$0]  %s2, 16, %s36, [#allocation4]
    $region13: #{tpu_custom_call.1} parent=1 // pred_fallthru
      _
    // Predicated region
    $region14: #{tpu_custom_call.1} parent=1 // pred_check
      _
    $region15: #{tpu_custom_call.1} parent=1 // pred_check_branch
      %40 = sbr.rel (0) target = $region17
    $region16: #{tpu_custom_call.1} parent=1 // pred_region
      %s42 = ssub.s32 128, 128
      %43 = vsyncadd [#allocation6], %s42
      %s44 = sshll.u32 [#allocation5], 4
      %s45 = int_to_ptr.vmem [resolvable:$true] %s44
      %50 = dma.hbm_to_vmem [thread:$0]  %s3, 128, %s45, [#allocation6], 64, 64, 4
    $region17: #{tpu_custom_call.1} parent=1 // pred_fallthru
      _
    // Predicated region
    $region18: #{tpu_custom_call.1} parent=1 // pred_check
      _
    $region19: #{tpu_custom_call.1} parent=1 // pred_check_branch
      %52 = sbr.rel (0) target = $region21
    $region20: #{tpu_custom_call.1} parent=1 // pred_region
      %s54 = ssub.s32 128, 128
      %55 = vsyncadd [#allocation6], %s54
      %s56 = sshll.u32 [#allocation7], 4
      %s57 = int_to_ptr.vmem [resolvable:$true] %s56
      %62 = dma.hbm_to_vmem [thread:$0]  %s4, 128, %s57, [#allocation6], 64, 64, 4
    $region21: #{tpu_custom_call.1} parent=1 // pred_fallthru
      _
    // Predicated region
    $region22: #{tpu_custom_call.1} parent=1 // pred_check
      _
    $region23: #{tpu_custom_call.1} parent=1 // pred_check_branch
      %64 = sbr.rel (0) target = $region25
    $region24: #{tpu_custom_call.1} parent=1 // pred_region
      %s66 = ssub.s32 16, 16
      %67 = vsyncadd [#allocation9], %s66
      %s69 = sshll.u32 [#allocation8], 4
      %s70 = int_to_ptr.vmem [resolvable:$true] %s69
      %72 = dma.hbm_to_vmem [thread:$0]  %s5, 16, %s70, [#allocation9]
    $region25: #{tpu_custom_call.1} parent=1 // pred_fallthru
      _
    // Predicated region
    $region26: #{tpu_custom_call.1} parent=1 // pred_check
      _
    $region27: #{tpu_custom_call.1} parent=1 // pred_check_branch
      %74 = sbr.rel (0) target = $region29
    $region28: #{tpu_custom_call.1} parent=1 // pred_region
      %s76 = ssub.s32 16, 16
      %77 = vsyncadd [#allocation9], %s76
      %s79 = sshll.u32 [#allocation10], 4
      %s80 = int_to_ptr.vmem [resolvable:$true] %s79
      %82 = dma.hbm_to_vmem [thread:$0]  %s6, 16, %s80, [#allocation9]
    $region29: #{tpu_custom_call.1} parent=1 // pred_fallthru
      _
    // Predicated region
    $region30: #{tpu_custom_call.1} parent=1 // pred_check
      _
    $region31: #{tpu_custom_call.1} parent=1 // pred_check_branch
      %84 = sbr.rel (0) target = $region33
    $region32: #{tpu_custom_call.1} parent=1 // pred_region
      %s86 = ssub.s32 16, 16
      %87 = vsyncadd [#allocation12], %s86
      %s89 = sshll.u32 [#allocation11], 4
      %s90 = int_to_ptr.vmem [resolvable:$true] %s89
      %92 = dma.hbm_to_vmem [thread:$0]  %s7, 16, %s90, [#allocation12]
    $region33: #{tpu_custom_call.1} parent=1 // pred_fallthru
      _
    // Predicated region
    $region34: #{tpu_custom_call.1} parent=1 // pred_check
      _
    $region35: #{tpu_custom_call.1} parent=1 // pred_check_branch
      %94 = sbr.rel (0) target = $region37
    $region36: #{tpu_custom_call.1} parent=1 // pred_region
      _
    $region37: #{tpu_custom_call.1} parent=1 // pred_fallthru
      _
    // Predicated region
    $region38: #{tpu_custom_call.1} parent=1 // pred_check
      _
    $region39: #{tpu_custom_call.1} parent=1 // pred_check_branch
      %96 = sbr.rel (0) target = $region41
    $region40: #{tpu_custom_call.1} parent=1 // pred_region
      _
    $region41: #{tpu_custom_call.1} parent=1 // pred_fallthru
      _
    // Predicated region
    $region42: #{tpu_custom_call.1} parent=1 // pred_check
      _
    $region43: #{tpu_custom_call.1} parent=1 // pred_check_branch
      %98 = sbr.rel (0) target = $region45
    $region44: #{tpu_custom_call.1} parent=1 // pred_region
      _
    $region45: #{tpu_custom_call.1} parent=1 // pred_fallthru
      _
    // Predicated region
    $region46: #{tpu_custom_call.1} parent=1 // pred_check
      _
    $region47: #{tpu_custom_call.1} parent=1 // pred_check_branch
      %100 = sbr.rel (0) target = $region49
    $region48: #{tpu_custom_call.1} parent=1 // pred_region
      _
    $region49: #{tpu_custom_call.1} parent=1 // pred_fallthru
      _
    // Predicated region
    $region50: #{tpu_custom_call.1} parent=1 // pred_check
      _
    $region51: #{tpu_custom_call.1} parent=1 // pred_check_branch
      %102 = sbr.rel (0) target = $region53
    $region52: #{tpu_custom_call.1} parent=1 // pred_region
      _
    $region53: #{tpu_custom_call.1} parent=1 // pred_fallthru
      _
    // Predicated region
    $region54: #{tpu_custom_call.1} parent=1 // pred_check
      _
    $region55: #{tpu_custom_call.1} parent=1 // pred_check_branch
      %104 = sbr.rel (0) target = $region57
    $region56: #{tpu_custom_call.1} parent=1 // pred_region
      _
    $region57: #{tpu_custom_call.1} parent=1 // pred_fallthru
      _
    // Predicated region
    $region58: #{tpu_custom_call.1} parent=1 // pred_check
      _
    $region59: #{tpu_custom_call.1} parent=1 // pred_check_branch
      %106 = sbr.rel (0) target = $region61
    $region60: #{tpu_custom_call.1} parent=1 // pred_region
      %107 = dma.done [#allocation4], 16
    $region61: #{tpu_custom_call.1} parent=1 // pred_fallthru
      _
    // Predicated region
    $region62: #{tpu_custom_call.1} parent=1 // pred_check
      _
    $region63: #{tpu_custom_call.1} parent=1 // pred_check_branch
      %109 = sbr.rel (0) target = $region65
    $region64: #{tpu_custom_call.1} parent=1 // pred_region
      %110 = dma.done [#allocation6], 128
    $region65: #{tpu_custom_call.1} parent=1 // pred_fallthru
      _
    // Predicated region
    $region66: #{tpu_custom_call.1} parent=1 // pred_check
      _
    $region67: #{tpu_custom_call.1} parent=1 // pred_check_branch
      %112 = sbr.rel (0) target = $region69
    $region68: #{tpu_custom_call.1} parent=1 // pred_region
      %113 = dma.done [#allocation6], 128
    $region69: #{tpu_custom_call.1} parent=1 // pred_fallthru
      _
    // Predicated region
    $region70: #{tpu_custom_call.1} parent=1 // pred_check
      _
    $region71: #{tpu_custom_call.1} parent=1 // pred_check_branch
      %115 = sbr.rel (0) target = $region73
    $region72: #{tpu_custom_call.1} parent=1 // pred_region
      %116 = dma.done [#allocation9], 16
    $region73: #{tpu_custom_call.1} parent=1 // pred_fallthru
      _
    // Predicated region
    $region74: #{tpu_custom_call.1} parent=1 // pred_check
      _
    $region75: #{tpu_custom_call.1} parent=1 // pred_check_branch
      %118 = sbr.rel (0) target = $region77
    $region76: #{tpu_custom_call.1} parent=1 // pred_region
      %119 = dma.done [#allocation9], 16
    $region77: #{tpu_custom_call.1} parent=1 // pred_fallthru
      _
    // Predicated region
    $region78: #{tpu_custom_call.1} parent=1 // pred_check
      _
    $region79: #{tpu_custom_call.1} parent=1 // pred_check_branch
      %121 = sbr.rel (0) target = $region81
    $region80: #{tpu_custom_call.1} parent=1 // pred_region
      %122 = dma.done [#allocation12], 16
    $region81: #{tpu_custom_call.1} parent=1 // pred_fallthru
      _
    %v124 = vld [vmem:[%s0] sm:$0xf]
    %v125 = vld [vmem:[%s0 + $0x4] sm:$0xf]
    %v126 = vld [vmem:[%s0 + $0x8] sm:$0xf]
    %v127 = vld [vmem:[%s0 + $0xc] sm:$0xf]
    %v128 = vld [vmem:[%s0 + $0x10] sm:$0xf]
    %v129 = vld [vmem:[%s0 + $0x14] sm:$0xf]
    %v130 = vld [vmem:[%s0 + $0x18] sm:$0xf]
    %v131 = vld [vmem:[%s0 + $0x1c] sm:$0xf]
    %v132 = vld [vmem:[%s1] sm:$0xf]
    %v133 = vld [vmem:[%s1 + $0x4] sm:$0xf]
    %v134 = vld [vmem:[%s1 + $0x8] sm:$0xf]
    %v135 = vld [vmem:[%s1 + $0xc] sm:$0xf]
    %v136 = vld [vmem:[#allocation3] sm:$0x1]
    %v138 = vlaneseq
    %v139 = vshrl.u32 %v138, 7
    %v140 = vsub.s32 0, %v139
    %v141 = vrot.slane %v136, %v140
    %v151 = vunpack.c.l.b16 %v124
    %v152 = vunpack.c.l.b16 %v125
    %v153 = vunpack.c.l.b16 %v126
    %v154 = vunpack.c.l.b16 %v127
    %v155 = vunpack.c.l.b16 %v128
    %v156 = vunpack.c.l.b16 %v129
    %v157 = vunpack.c.l.b16 %v130
    %v158 = vunpack.c.l.b16 %v131
    %v159 = vpack.c.b16 %v152, %v151
    %v160 = vpack.c.b16 %v154, %v153
    %v161 = vpack.c.b16 %v156, %v155
    %v162 = vpack.c.b16 %v158, %v157
    %v167 = vunpack.c.l.b16 %v132
    %v168 = vunpack.c.l.b16 %v133
    %v169 = vunpack.c.l.b16 %v134
    %v170 = vunpack.c.l.b16 %v135
    %v171 = vpack.c.b16 %v168, %v167
    %v172 = vpack.c.b16 %v170, %v169
    %vm175 = vcmask 261120
    %v177 = vsel %vm175, %v159, 0
    %v180 = vsel %vm175, %v160, 0
    %v183 = vsel %vm175, %v161, 0
    %v186 = vsel %vm175, %v162, 0
    %188 = vmatprep.subr.bf16.mxu0 0
    %189 = vmatpush1.bf16.msra.mxu0 0
    %190 = vmatprep.subr.bf16.mxu0 0
    %191 = vmatpush1.bf16.msra.mxu0 0
    %192 = vmatprep.subr.bf16.mxu0 0
    %193 = vmatpush1.bf16.msra.mxu0 0
    %194 = vmatprep.subr.bf16.mxu0 0
    %195 = vmatpush1.bf16.msra.mxu0 0
    %196 = vmatprep.subr.bf16.mxu0 0
    %197 = vmatpush1.bf16.msra.mxu0 0
    %198 = vmatprep.subr.bf16.mxu0 0
    %199 = vmatpush1.bf16.msra.mxu0 0
    %200 = vmatprep.subr.bf16.mxu0 0
    %201 = vmatpush1.bf16.msra.mxu0 %v172
    %202 = vmatprep.subr.bf16.mxu0 0
    %203 = vmatpush1.bf16.msra.mxu0 %v171
    %204 = vmatprep.subr.bf16.mxu0 0
    %205 = vmatpush2.bf16.msra.mxu0 0
    %206 = vmatprep.subr.bf16.mxu0 0
    %207 = vmatpush2.bf16.msra.mxu0 0
    %208 = vmatprep.subr.bf16.mxu0 0
    %209 = vmatpush2.bf16.msra.mxu0 0
    %210 = vmatprep.subr.bf16.mxu0 0
    %211 = vmatpush2.bf16.msra.mxu0 0
    %212 = vmatprep.subr.bf16.mxu0 0
    %213 = vmatpush2.bf16.msra.mxu0 0
    %214 = vmatprep.subr.bf16.mxu0 0
    %215 = vmatpush2.bf16.msra.mxu0 0
    %216 = vmatprep.subr.bf16.mxu0 0
    %217 = vmatpush2.bf16.msra.mxu0 0
    %218 = vmatprep.subr.bf16.mxu0 0
    %219 = vmatpush2.bf16.msra.mxu0 0
    %220 = vmatprep.mubr.bf16.mxu0 0
    %221 = vmatmul.mubr.bf16.gmra.mxu0 %v177
    %v222 = vpop.f32.mrf.mxu0
    %v223 = vadd.f32 %v141, %v222
    %v224 = vpop.f32.mrf.mxu0
    %v225 = vpop.f32.mrf.mxu0
    %v226 = vadd.f32 %v141, %v225
    %v227 = vpop.f32.mrf.mxu0
    %228 = vmatprep.mubr.bf16.mxu0 0
    %229 = vmatmul.mubr.bf16.gmra.mxu0 %v180
    %v230 = vpop.f32.mrf.mxu0
    %v231 = vadd.f32 %v141, %v230
    %v232 = vpop.f32.mrf.mxu0
    %v233 = vpop.f32.mrf.mxu0
    %v234 = vadd.f32 %v141, %v233
    %v235 = vpop.f32.mrf.mxu0
    %236 = vmatprep.mubr.bf16.mxu0 0
    %237 = vmatmul.mubr.bf16.gmra.mxu0 %v183
    %v238 = vpop.f32.mrf.mxu0
    %v239 = vadd.f32 %v141, %v238
    %v240 = vpop.f32.mrf.mxu0
    %v241 = vpop.f32.mrf.mxu0
    %v242 = vadd.f32 %v141, %v241
    %v243 = vpop.f32.mrf.mxu0
    %244 = vmatprep.mubr.bf16.mxu0 0
    %245 = vmatmul.mubr.bf16.gmra.mxu0 %v186
    %v246 = vpop.f32.mrf.mxu0
    %v247 = vadd.f32 %v141, %v246
    %v248 = vpop.f32.mrf.mxu0
    %v249 = vpop.f32.mrf.mxu0
    %v250 = vadd.f32 %v141, %v249
    %v251 = vpop.f32.mrf.mxu0
    %252 = vdwg.mxu0
    %v253 = vlaneseq
    %v254 = vshrl.u32 %v253, 7
    %v255 = vsub.s32 0, %v254
    %v256 = vrot.slane %v223, %v255
    %v257 = vlaneseq
    %v258 = vshrl.u32 %v257, 7
    %v259 = vsub.s32 0, %v258
    %v260 = vrot.slane %v226, %v259
    %v261 = vlaneseq
    %v262 = vshrl.u32 %v261, 7
    %v263 = vsub.s32 0, %v262
    %v264 = vrot.slane %v231, %v263
    %v265 = vlaneseq
    %v266 = vshrl.u32 %v265, 7
    %v267 = vsub.s32 0, %v266
    %v268 = vrot.slane %v234, %v267
    %v269 = vlaneseq
    %v270 = vshrl.u32 %v269, 7
    %v271 = vsub.s32 0, %v270
    %v272 = vrot.slane %v239, %v271
    %v273 = vlaneseq
    %v274 = vshrl.u32 %v273, 7
    %v275 = vsub.s32 0, %v274
    %v276 = vrot.slane %v242, %v275
    %v277 = vlaneseq
    %v278 = vshrl.u32 %v277, 7
    %v279 = vsub.s32 0, %v278
    %v280 = vrot.slane %v247, %v279
    %v281 = vlaneseq
    %v282 = vshrl.u32 %v281, 7
    %v283 = vsub.s32 0, %v282
    %v284 = vrot.slane %v250, %v283
    %293 = vrot.lane.b32.xlu0 %v256, 64
    %v294 = vpop.permute.xlu0 %293
    %295 = vrot.lane.b32.xlu0 %v260, 64
    %v296 = vpop.permute.xlu0 %295
    %297 = vrot.lane.b32.xlu0 %v264, 64
    %v298 = vpop.permute.xlu0 %297
    %299 = vrot.lane.b32.xlu0 %v268, 64
    %v300 = vpop.permute.xlu0 %299
    %301 = vrot.lane.b32.xlu0 %v272, 64
    %v302 = vpop.permute.xlu0 %301
    %303 = vrot.lane.b32.xlu0 %v276, 64
    %v304 = vpop.permute.xlu0 %303
    %305 = vrot.lane.b32.xlu0 %v280, 64
    %v306 = vpop.permute.xlu0 %305
    %307 = vrot.lane.b32.xlu0 %v284, 64
    %v308 = vpop.permute.xlu0 %307
    %v317 = vmul.f32 %v223, %v294
    %v318 = vmul.f32 %v226, %v296
    %v319 = vmul.f32 %v231, %v298
    %v320 = vmul.f32 %v234, %v300
    %v321 = vmul.f32 %v239, %v302
    %v322 = vmul.f32 %v242, %v304
    %v323 = vmul.f32 %v247, %v306
    %v324 = vmul.f32 %v250, %v308
    %vm325 = vcmask 130048
    %v326 = vsel %vm325, %v317, 0.0
    %327 = vadd.xlane.f32.xlu0 %v326
    %v328 = vpop.xlane.xlu0 %327
    %v329 = vsel %vm325, %v318, 0.0
    %330 = vadd.xlane.f32.xlu0 %v329
    %v331 = vpop.xlane.xlu0 %330
    %v332 = vsel %vm325, %v319, 0.0
    %333 = vadd.xlane.f32.xlu0 %v332
    %v334 = vpop.xlane.xlu0 %333
    %v335 = vsel %vm325, %v320, 0.0
    %336 = vadd.xlane.f32.xlu0 %v335
    %v337 = vpop.xlane.xlu0 %336
    %v338 = vsel %vm325, %v321, 0.0
    %339 = vadd.xlane.f32.xlu0 %v338
    %v340 = vpop.xlane.xlu0 %339
    %v341 = vsel %vm325, %v322, 0.0
    %342 = vadd.xlane.f32.xlu0 %v341
    %v343 = vpop.xlane.xlu0 %342
    %v344 = vsel %vm325, %v323, 0.0
    %345 = vadd.xlane.f32.xlu0 %v344
    %v346 = vpop.xlane.xlu0 %345
    %v347 = vsel %vm325, %v324, 0.0
    %348 = vadd.xlane.f32.xlu0 %v347
    %v349 = vpop.xlane.xlu0 %348
    %358 = vrot.lane.b32.xlu0 %v317, 112
    %v359 = vpop.permute.xlu0 %358
    %360 = vrot.lane.b32.xlu0 %v318, 112
    %v361 = vpop.permute.xlu0 %360
    %362 = vrot.lane.b32.xlu0 %v319, 112
    %v363 = vpop.permute.xlu0 %362
    %364 = vrot.lane.b32.xlu0 %v320, 112
    %v365 = vpop.permute.xlu0 %364
    %366 = vrot.lane.b32.xlu0 %v321, 112
    %v367 = vpop.permute.xlu0 %366
    %368 = vrot.lane.b32.xlu0 %v322, 112
    %v369 = vpop.permute.xlu0 %368
    %370 = vrot.lane.b32.xlu0 %v323, 112
    %v371 = vpop.permute.xlu0 %370
    %372 = vrot.lane.b32.xlu0 %v324, 112
    %v373 = vpop.permute.xlu0 %372
    %v382 = vsel %vm325, %v359, 0.0
    %383 = vadd.xlane.f32.xlu0 %v382
    %v384 = vpop.xlane.xlu0 %383
    %v385 = vsel %vm325, %v361, 0.0
    %386 = vadd.xlane.f32.xlu0 %v385
    %v387 = vpop.xlane.xlu0 %386
    %v388 = vsel %vm325, %v363, 0.0
    %389 = vadd.xlane.f32.xlu0 %v388
    %v390 = vpop.xlane.xlu0 %389
    %v391 = vsel %vm325, %v365, 0.0
    %392 = vadd.xlane.f32.xlu0 %v391
    %v393 = vpop.xlane.xlu0 %392
    %v394 = vsel %vm325, %v367, 0.0
    %395 = vadd.xlane.f32.xlu0 %v394
    %v396 = vpop.xlane.xlu0 %395
    %v397 = vsel %vm325, %v369, 0.0
    %398 = vadd.xlane.f32.xlu0 %v397
    %v399 = vpop.xlane.xlu0 %398
    %v400 = vsel %vm325, %v371, 0.0
    %401 = vadd.xlane.f32.xlu0 %v400
    %v402 = vpop.xlane.xlu0 %401
    %v403 = vsel %vm325, %v373, 0.0
    %404 = vadd.xlane.f32.xlu0 %v403
    %v405 = vpop.xlane.xlu0 %404
    %v406 = vrot.slane %v328, 4
    %v407 = vmax.f32 %v328, %v406
    %v408 = vrot.slane %v407, 2
    %v409 = vmax.f32 %v407, %v408
    %v410 = vrot.slane %v409, 1
    %v411 = vmax.f32 %v409, %v410
    %v412 = vrot.slane %v331, 4
    %v413 = vmax.f32 %v331, %v412
    %v414 = vrot.slane %v413, 2
    %v415 = vmax.f32 %v413, %v414
    %v416 = vrot.slane %v415, 1
    %v417 = vmax.f32 %v415, %v416
    %v418 = vrot.slane %v334, 4
    %v419 = vmax.f32 %v334, %v418
    %v420 = vrot.slane %v419, 2
    %v421 = vmax.f32 %v419, %v420
    %v422 = vrot.slane %v421, 1
    %v423 = vmax.f32 %v421, %v422
    %v424 = vrot.slane %v337, 4
    %v425 = vmax.f32 %v337, %v424
    %v426 = vrot.slane %v425, 2
    %v427 = vmax.f32 %v425, %v426
    %v428 = vrot.slane %v427, 1
    %v429 = vmax.f32 %v427, %v428
    %v430 = vrot.slane %v340, 4
    %v431 = vmax.f32 %v340, %v430
    %v432 = vrot.slane %v431, 2
    %v433 = vmax.f32 %v431, %v432
    %v434 = vrot.slane %v433, 1
    %v435 = vmax.f32 %v433, %v434
    %v436 = vrot.slane %v343, 4
    %v437 = vmax.f32 %v343, %v436
    %v438 = vrot.slane %v437, 2
    %v439 = vmax.f32 %v437, %v438
    %v440 = vrot.slane %v439, 1
    %v441 = vmax.f32 %v439, %v440
    %v442 = vrot.slane %v346, 4
    %v443 = vmax.f32 %v346, %v442
    %v444 = vrot.slane %v443, 2
    %v445 = vmax.f32 %v443, %v444
    %v446 = vrot.slane %v445, 1
    %v447 = vmax.f32 %v445, %v446
    %v448 = vrot.slane %v349, 4
    %v449 = vmax.f32 %v349, %v448
    %v450 = vrot.slane %v449, 2
    %v451 = vmax.f32 %v449, %v450
    %v452 = vrot.slane %v451, 1
    %v453 = vmax.f32 %v451, %v452
    %v454 = vsub.f32 %v328, %v411
    %v455 = vsub.f32 %v331, %v417
    %v456 = vsub.f32 %v334, %v423
    %v457 = vsub.f32 %v337, %v429
    %v458 = vsub.f32 %v340, %v435
    %v459 = vsub.f32 %v343, %v441
    %v460 = vsub.f32 %v346, %v447
    %v461 = vsub.f32 %v349, %v453
    %v462 = vmul.f32 %v454, 1.442695
    %v463 = vpow.pop %v462
    %v464 = vmul.f32 %v455, 1.442695
    %v465 = vpow.pop %v464
    %v466 = vmul.f32 %v456, 1.442695
    %v467 = vpow.pop %v466
    %v468 = vmul.f32 %v457, 1.442695
    %v469 = vpow.pop %v468
    %v470 = vmul.f32 %v458, 1.442695
    %v471 = vpow.pop %v470
    %v472 = vmul.f32 %v459, 1.442695
    %v473 = vpow.pop %v472
    %v474 = vmul.f32 %v460, 1.442695
    %v475 = vpow.pop %v474
    %v476 = vmul.f32 %v461, 1.442695
    %v477 = vpow.pop %v476
    %v478 = vrot.slane %v463, 4
    %v479 = vadd.f32 %v463, %v478
    %v480 = vrot.slane %v479, 2
    %v481 = vadd.f32 %v479, %v480
    %v482 = vrot.slane %v481, 1
    %v483 = vadd.f32 %v481, %v482
    %v484 = vrot.slane %v465, 4
    %v485 = vadd.f32 %v465, %v484
    %v486 = vrot.slane %v485, 2
    %v487 = vadd.f32 %v485, %v486
    %v488 = vrot.slane %v487, 1
    %v489 = vadd.f32 %v487, %v488
    %v490 = vrot.slane %v467, 4
    %v491 = vadd.f32 %v467, %v490
    %v492 = vrot.slane %v491, 2
    %v493 = vadd.f32 %v491, %v492
    %v494 = vrot.slane %v493, 1
    %v495 = vadd.f32 %v493, %v494
    %v496 = vrot.slane %v469, 4
    %v497 = vadd.f32 %v469, %v496
    %v498 = vrot.slane %v497, 2
    %v499 = vadd.f32 %v497, %v498
    %v500 = vrot.slane %v499, 1
    %v501 = vadd.f32 %v499, %v500
    %v502 = vrot.slane %v471, 4
    %v503 = vadd.f32 %v471, %v502
    %v504 = vrot.slane %v503, 2
    %v505 = vadd.f32 %v503, %v504
    %v506 = vrot.slane %v505, 1
    %v507 = vadd.f32 %v505, %v506
    %v508 = vrot.slane %v473, 4
    %v509 = vadd.f32 %v473, %v508
    %v510 = vrot.slane %v509, 2
    %v511 = vadd.f32 %v509, %v510
    %v512 = vrot.slane %v511, 1
    %v513 = vadd.f32 %v511, %v512
    %v514 = vrot.slane %v475, 4
    %v515 = vadd.f32 %v475, %v514
    %v516 = vrot.slane %v515, 2
    %v517 = vadd.f32 %v515, %v516
    %v518 = vrot.slane %v517, 1
    %v519 = vadd.f32 %v517, %v518
    %v520 = vrot.slane %v477, 4
    %v521 = vadd.f32 %v477, %v520
    %v522 = vrot.slane %v521, 2
    %v523 = vadd.f32 %v521, %v522
    %v524 = vrot.slane %v523, 1
    %v525 = vadd.f32 %v523, %v524
    %v526 = vrcp.pop %v483
    %v527 = vmul.f32 %v463, %v526
    %v528 = vrcp.pop %v489
    %v529 = vmul.f32 %v465, %v528
    %v530 = vrcp.pop %v495
    %v531 = vmul.f32 %v467, %v530
    %v532 = vrcp.pop %v501
    %v533 = vmul.f32 %v469, %v532
    %v534 = vrcp.pop %v507
    %v535 = vmul.f32 %v471, %v534
    %v536 = vrcp.pop %v513
    %v537 = vmul.f32 %v473, %v536
    %v538 = vrcp.pop %v519
    %v539 = vmul.f32 %v475, %v538
    %v540 = vrcp.pop %v525
    %v541 = vmul.f32 %v477, %v540
    %v542 = vmul.f32 %v527, %v223
    %v543 = vmul.f32 %v529, %v226
    %v544 = vmul.f32 %v531, %v231
    %v545 = vmul.f32 %v533, %v234
    %v546 = vmul.f32 %v535, %v239
    %v547 = vmul.f32 %v537, %v242
    %v548 = vmul.f32 %v539, %v247
    %v549 = vmul.f32 %v541, %v250
    %vm550 = vcmask 392448
    %v551 = vsel %vm550, %v542, 0.0
    %v552 = vrot.slane %v551, 4
    %v553 = vadd.f32 %v551, %v552
    %v554 = vrot.slane %v553, 2
    %v555 = vadd.f32 %v553, %v554
    %v556 = vrot.slane %v555, 1
    %v557 = vadd.f32 %v555, %v556
    %v558 = vsel %vm550, %v543, 0.0
    %v559 = vrot.slane %v558, 4
    %v560 = vadd.f32 %v558, %v559
    %v561 = vrot.slane %v560, 2
    %v562 = vadd.f32 %v560, %v561
    %v563 = vrot.slane %v562, 1
    %v564 = vadd.f32 %v562, %v563
    %v565 = vsel %vm550, %v544, 0.0
    %v566 = vrot.slane %v565, 4
    %v567 = vadd.f32 %v565, %v566
    %v568 = vrot.slane %v567, 2
    %v569 = vadd.f32 %v567, %v568
    %v570 = vrot.slane %v569, 1
    %v571 = vadd.f32 %v569, %v570
    %v572 = vsel %vm550, %v545, 0.0
    %v573 = vrot.slane %v572, 4
    %v574 = vadd.f32 %v572, %v573
    %v575 = vrot.slane %v574, 2
    %v576 = vadd.f32 %v574, %v575
    %v577 = vrot.slane %v576, 1
    %v578 = vadd.f32 %v576, %v577
    %v579 = vsel %vm550, %v546, 0.0
    %v580 = vrot.slane %v579, 4
    %v581 = vadd.f32 %v579, %v580
    %v582 = vrot.slane %v581, 2
    %v583 = vadd.f32 %v581, %v582
    %v584 = vrot.slane %v583, 1
    %v585 = vadd.f32 %v583, %v584
    %v586 = vsel %vm550, %v547, 0.0
    %v587 = vrot.slane %v586, 4
    %v588 = vadd.f32 %v586, %v587
    %v589 = vrot.slane %v588, 2
    %v590 = vadd.f32 %v588, %v589
    %v591 = vrot.slane %v590, 1
    %v592 = vadd.f32 %v590, %v591
    %v593 = vsel %vm550, %v548, 0.0
    %v594 = vrot.slane %v593, 4
    %v595 = vadd.f32 %v593, %v594
    %v596 = vrot.slane %v595, 2
    %v597 = vadd.f32 %v595, %v596
    %v598 = vrot.slane %v597, 1
    %v599 = vadd.f32 %v597, %v598
    %v600 = vsel %vm550, %v549, 0.0
    %v601 = vrot.slane %v600, 4
    %v602 = vadd.f32 %v600, %v601
    %v603 = vrot.slane %v602, 2
    %v604 = vadd.f32 %v602, %v603
    %v605 = vrot.slane %v604, 1
    %v606 = vadd.f32 %v604, %v605
    %v607 = vrot.slane %v384, 4
    %v608 = vmax.f32 %v384, %v607
    %v609 = vrot.slane %v608, 2
    %v610 = vmax.f32 %v608, %v609
    %v611 = vrot.slane %v610, 1
    %v612 = vmax.f32 %v610, %v611
    %v613 = vrot.slane %v387, 4
    %v614 = vmax.f32 %v387, %v613
    %v615 = vrot.slane %v614, 2
    %v616 = vmax.f32 %v614, %v615
    %v617 = vrot.slane %v616, 1
    %v618 = vmax.f32 %v616, %v617
    %v619 = vrot.slane %v390, 4
    %v620 = vmax.f32 %v390, %v619
    %v621 = vrot.slane %v620, 2
    %v622 = vmax.f32 %v620, %v621
    %v623 = vrot.slane %v622, 1
    %v624 = vmax.f32 %v622, %v623
    %v625 = vrot.slane %v393, 4
    %v626 = vmax.f32 %v393, %v625
    %v627 = vrot.slane %v626, 2
    %v628 = vmax.f32 %v626, %v627
    %v629 = vrot.slane %v628, 1
    %v630 = vmax.f32 %v628, %v629
    %v631 = vrot.slane %v396, 4
    %v632 = vmax.f32 %v396, %v631
    %v633 = vrot.slane %v632, 2
    %v634 = vmax.f32 %v632, %v633
    %v635 = vrot.slane %v634, 1
    %v636 = vmax.f32 %v634, %v635
    %v637 = vrot.slane %v399, 4
    %v638 = vmax.f32 %v399, %v637
    %v639 = vrot.slane %v638, 2
    %v640 = vmax.f32 %v638, %v639
    %v641 = vrot.slane %v640, 1
    %v642 = vmax.f32 %v640, %v641
    %v643 = vrot.slane %v402, 4
    %v644 = vmax.f32 %v402, %v643
    %v645 = vrot.slane %v644, 2
    %v646 = vmax.f32 %v644, %v645
    %v647 = vrot.slane %v646, 1
    %v648 = vmax.f32 %v646, %v647
    %v649 = vrot.slane %v405, 4
    %v650 = vmax.f32 %v405, %v649
    %v651 = vrot.slane %v650, 2
    %v652 = vmax.f32 %v650, %v651
    %v653 = vrot.slane %v652, 1
    %v654 = vmax.f32 %v652, %v653
    %v655 = vsub.f32 %v384, %v612
    %v656 = vsub.f32 %v387, %v618
    %v657 = vsub.f32 %v390, %v624
    %v658 = vsub.f32 %v393, %v630
    %v659 = vsub.f32 %v396, %v636
    %v660 = vsub.f32 %v399, %v642
    %v661 = vsub.f32 %v402, %v648
    %v662 = vsub.f32 %v405, %v654
    %v663 = vmul.f32 %v655, 1.442695
    %v664 = vpow.pop %v663
    %v665 = vmul.f32 %v656, 1.442695
    %v666 = vpow.pop %v665
    %v667 = vmul.f32 %v657, 1.442695
    %v668 = vpow.pop %v667
    %v669 = vmul.f32 %v658, 1.442695
    %v670 = vpow.pop %v669
    %v671 = vmul.f32 %v659, 1.442695
    %v672 = vpow.pop %v671
    %v673 = vmul.f32 %v660, 1.442695
    %v674 = vpow.pop %v673
    %v675 = vmul.f32 %v661, 1.442695
    %v676 = vpow.pop %v675
    %v677 = vmul.f32 %v662, 1.442695
    %v678 = vpow.pop %v677
    %v679 = vrot.slane %v664, 4
    %v680 = vadd.f32 %v664, %v679
    %v681 = vrot.slane %v680, 2
    %v682 = vadd.f32 %v680, %v681
    %v683 = vrot.slane %v682, 1
    %v684 = vadd.f32 %v682, %v683
    %v685 = vrot.slane %v666, 4
    %v686 = vadd.f32 %v666, %v685
    %v687 = vrot.slane %v686, 2
    %v688 = vadd.f32 %v686, %v687
    %v689 = vrot.slane %v688, 1
    %v690 = vadd.f32 %v688, %v689
    %v691 = vrot.slane %v668, 4
    %v692 = vadd.f32 %v668, %v691
    %v693 = vrot.slane %v692, 2
    %v694 = vadd.f32 %v692, %v693
    %v695 = vrot.slane %v694, 1
    %v696 = vadd.f32 %v694, %v695
    %v697 = vrot.slane %v670, 4
    %v698 = vadd.f32 %v670, %v697
    %v699 = vrot.slane %v698, 2
    %v700 = vadd.f32 %v698, %v699
    %v701 = vrot.slane %v700, 1
    %v702 = vadd.f32 %v700, %v701
    %v703 = vrot.slane %v672, 4
    %v704 = vadd.f32 %v672, %v703
    %v705 = vrot.slane %v704, 2
    %v706 = vadd.f32 %v704, %v705
    %v707 = vrot.slane %v706, 1
    %v708 = vadd.f32 %v706, %v707
    %v709 = vrot.slane %v674, 4
    %v710 = vadd.f32 %v674, %v709
    %v711 = vrot.slane %v710, 2
    %v712 = vadd.f32 %v710, %v711
    %v713 = vrot.slane %v712, 1
    %v714 = vadd.f32 %v712, %v713
    %v715 = vrot.slane %v676, 4
    %v716 = vadd.f32 %v676, %v715
    %v717 = vrot.slane %v716, 2
    %v718 = vadd.f32 %v716, %v717
    %v719 = vrot.slane %v718, 1
    %v720 = vadd.f32 %v718, %v719
    %v721 = vrot.slane %v678, 4
    %v722 = vadd.f32 %v678, %v721
    %v723 = vrot.slane %v722, 2
    %v724 = vadd.f32 %v722, %v723
    %v725 = vrot.slane %v724, 1
    %v726 = vadd.f32 %v724, %v725
    %v727 = vrcp.pop %v684
    %v728 = vmul.f32 %v664, %v727
    %v729 = vrcp.pop %v690
    %v730 = vmul.f32 %v666, %v729
    %v731 = vrcp.pop %v696
    %v732 = vmul.f32 %v668, %v731
    %v733 = vrcp.pop %v702
    %v734 = vmul.f32 %v670, %v733
    %v735 = vrcp.pop %v708
    %v736 = vmul.f32 %v672, %v735
    %v737 = vrcp.pop %v714
    %v738 = vmul.f32 %v674, %v737
    %v739 = vrcp.pop %v720
    %v740 = vmul.f32 %v676, %v739
    %v741 = vrcp.pop %v726
    %v742 = vmul.f32 %v678, %v741
    %v743 = vmul.f32 %v728, %v223
    %v744 = vmul.f32 %v730, %v226
    %v745 = vmul.f32 %v732, %v231
    %v746 = vmul.f32 %v734, %v234
    %v747 = vmul.f32 %v736, %v239
    %v748 = vmul.f32 %v738, %v242
    %v749 = vmul.f32 %v740, %v247
    %v750 = vmul.f32 %v742, %v250
    %vm751 = vcmask 523648
    %v752 = vsel %vm751, %v743, 0.0
    %v753 = vrot.slane %v752, 4
    %v754 = vadd.f32 %v752, %v753
    %v755 = vrot.slane %v754, 2
    %v756 = vadd.f32 %v754, %v755
    %v757 = vrot.slane %v756, 1
    %v758 = vadd.f32 %v756, %v757
    %v759 = vsel %vm751, %v744, 0.0
    %v760 = vrot.slane %v759, 4
    %v761 = vadd.f32 %v759, %v760
    %v762 = vrot.slane %v761, 2
    %v763 = vadd.f32 %v761, %v762
    %v764 = vrot.slane %v763, 1
    %v765 = vadd.f32 %v763, %v764
    %v766 = vsel %vm751, %v745, 0.0
    %v767 = vrot.slane %v766, 4
    %v768 = vadd.f32 %v766, %v767
    %v769 = vrot.slane %v768, 2
    %v770 = vadd.f32 %v768, %v769
    %v771 = vrot.slane %v770, 1
    %v772 = vadd.f32 %v770, %v771
    %v773 = vsel %vm751, %v746, 0.0
    %v774 = vrot.slane %v773, 4
    %v775 = vadd.f32 %v773, %v774
    %v776 = vrot.slane %v775, 2
    %v777 = vadd.f32 %v775, %v776
    %v778 = vrot.slane %v777, 1
    %v779 = vadd.f32 %v777, %v778
    %v780 = vsel %vm751, %v747, 0.0
    %v781 = vrot.slane %v780, 4
    %v782 = vadd.f32 %v780, %v781
    %v783 = vrot.slane %v782, 2
    %v784 = vadd.f32 %v782, %v783
    %v785 = vrot.slane %v784, 1
    %v786 = vadd.f32 %v784, %v785
    %v787 = vsel %vm751, %v748, 0.0
    %v788 = vrot.slane %v787, 4
    %v789 = vadd.f32 %v787, %v788
    %v790 = vrot.slane %v789, 2
    %v791 = vadd.f32 %v789, %v790
    %v792 = vrot.slane %v791, 1
    %v793 = vadd.f32 %v791, %v792
    %v794 = vsel %vm751, %v749, 0.0
    %v795 = vrot.slane %v794, 4
    %v796 = vadd.f32 %v794, %v795
    %v797 = vrot.slane %v796, 2
    %v798 = vadd.f32 %v796, %v797
    %v799 = vrot.slane %v798, 1
    %v800 = vadd.f32 %v798, %v799
    %v801 = vsel %vm751, %v750, 0.0
    %v802 = vrot.slane %v801, 4
    %v803 = vadd.f32 %v801, %v802
    %v804 = vrot.slane %v803, 2
    %v805 = vadd.f32 %v803, %v804
    %v806 = vrot.slane %v805, 1
    %v807 = vadd.f32 %v805, %v806
    %v808 = vpack.c.bf16 %v557, %v557
    %v809 = vpack.c.bf16 %v564, %v564
    %v810 = vpack.c.bf16 %v571, %v571
    %v811 = vpack.c.bf16 %v578, %v578
    %v812 = vpack.c.bf16 %v585, %v585
    %v813 = vpack.c.bf16 %v592, %v592
    %v814 = vpack.c.bf16 %v599, %v599
    %v815 = vpack.c.bf16 %v606, %v606
    %v816 = vld [vmem:[#allocation5] sm:$0xf]
    %v817 = vld [vmem:[#allocation5 + $0x4] sm:$0xf]
    %v818 = vpack.c.bf16 %v758, %v758
    %v819 = vpack.c.bf16 %v765, %v765
    %v820 = vpack.c.bf16 %v772, %v772
    %v821 = vpack.c.bf16 %v779, %v779
    %v822 = vpack.c.bf16 %v786, %v786
    %v823 = vpack.c.bf16 %v793, %v793
    %v824 = vpack.c.bf16 %v800, %v800
    %v825 = vpack.c.bf16 %v807, %v807
    %v826 = vld [vmem:[#allocation7] sm:$0xf]
    %v827 = vld [vmem:[#allocation7 + $0x4] sm:$0xf]
    %v836 = vunpack.c.l.b16 %v818
    %v837 = vunpack.c.l.b16 %v819
    %v838 = vunpack.c.l.b16 %v820
    %v839 = vunpack.c.l.b16 %v821
    %v840 = vunpack.c.l.b16 %v822
    %v841 = vunpack.c.l.b16 %v823
    %v842 = vunpack.c.l.b16 %v824
    %v843 = vunpack.c.l.b16 %v825
    %vm844 = vcmask 1041409
    %v845 = vsel %vm844, %v837, %v836
    %vm846 = vcmask 1042434
    %v847 = vsel %vm846, %v838, %v845
    %vm848 = vcmask 1043459
    %v849 = vsel %vm848, %v839, %v847
    %vm850 = vcmask 1044484
    %v851 = vsel %vm850, %v840, %v849
    %vm852 = vcmask 1045509
    %v853 = vsel %vm852, %v841, %v851
    %vm854 = vcmask 1046534
    %v855 = vsel %vm854, %v842, %v853
    %vm856 = vcmask 1047559
    %v857 = vsel %vm856, %v843, %v855
    %v858 = vpack.c.b16 %v857, %v857
    %859 = vrot.lane.b32.xlu0 %v858, 80
    %v860 = vpop.permute.xlu0 %859
    %v863 = vunpack.c.l.b16 %v826
    %v864 = vunpack.c.l.b16 %v827
    %v865 = vpack.c.b16 %v864, %v863
    %v868 = vsel %vm325, %v860, 0
    %870 = vmatprep.subr.bf16.mxu0 0
    %871 = vmatpush1.bf16.msra.mxu0 0
    %872 = vmatprep.subr.bf16.mxu0 0
    %873 = vmatpush1.bf16.msra.mxu0 0
    %874 = vmatprep.subr.bf16.mxu0 0
    %875 = vmatpush1.bf16.msra.mxu0 0
    %876 = vmatprep.subr.bf16.mxu0 0
    %877 = vmatpush1.bf16.msra.mxu0 0
    %878 = vmatprep.subr.bf16.mxu0 0
    %879 = vmatpush1.bf16.msra.mxu0 0
    %880 = vmatprep.subr.bf16.mxu0 0
    %881 = vmatpush1.bf16.msra.mxu0 0
    %882 = vmatprep.subr.bf16.mxu0 0
    %883 = vmatpush1.bf16.msra.mxu0 0
    %884 = vmatprep.subr.bf16.mxu0 0
    %885 = vmatpush1.bf16.msra.mxu0 %v865
    %886 = vmatprep.subr.bf16.mxu0 0
    %887 = vmatpush2.bf16.msra.mxu0 0
    %888 = vmatprep.subr.bf16.mxu0 0
    %889 = vmatpush2.bf16.msra.mxu0 0
    %890 = vmatprep.subr.bf16.mxu0 0
    %891 = vmatpush2.bf16.msra.mxu0 0
    %892 = vmatprep.subr.bf16.mxu0 0
    %893 = vmatpush2.bf16.msra.mxu0 0
    %894 = vmatprep.subr.bf16.mxu0 0
    %895 = vmatpush2.bf16.msra.mxu0 0
    %896 = vmatprep.subr.bf16.mxu0 0
    %897 = vmatpush2.bf16.msra.mxu0 0
    %898 = vmatprep.subr.bf16.mxu0 0
    %899 = vmatpush2.bf16.msra.mxu0 0
    %900 = vmatprep.subr.bf16.mxu0 0
    %901 = vmatpush2.bf16.msra.mxu0 0
    %902 = vmatprep.mubr.bf16.mxu0 0
    %903 = vmatmul.mubr.bf16.gmra.mxu0 %v868
    %v904 = vpop.f32.mrf.mxu0
    %v905 = vadd.f32 0.0, %v904
    %v906 = vpop.f32.mrf.mxu0
    %v907 = vpop.f32.mrf.mxu0
    %v908 = vpop.f32.mrf.mxu0
    %909 = vdwg.mxu0
    %v918 = vunpack.c.l.b16 %v808
    %v919 = vunpack.c.l.b16 %v809
    %v920 = vunpack.c.l.b16 %v810
    %v921 = vunpack.c.l.b16 %v811
    %v922 = vunpack.c.l.b16 %v812
    %v923 = vunpack.c.l.b16 %v813
    %v924 = vunpack.c.l.b16 %v814
    %v925 = vunpack.c.l.b16 %v815
    %v926 = vsel %vm844, %v919, %v918
    %v927 = vsel %vm846, %v920, %v926
    %v928 = vsel %vm848, %v921, %v927
    %v929 = vsel %vm850, %v922, %v928
    %v930 = vsel %vm852, %v923, %v929
    %v931 = vsel %vm854, %v924, %v930
    %v932 = vsel %vm856, %v925, %v931
    %v933 = vpack.c.b16 %v932, %v932
    %934 = vrot.lane.b32.xlu0 %v933, 96
    %v935 = vpop.permute.xlu0 %934
    %v938 = vunpack.c.l.b16 %v816
    %v939 = vunpack.c.l.b16 %v817
    %v940 = vpack.c.b16 %v939, %v938
    %v943 = vsel %vm325, %v935, 0
    %945 = vmatprep.subr.bf16.mxu0 0
    %946 = vmatpush1.bf16.msra.mxu0 0
    %947 = vmatprep.subr.bf16.mxu0 0
    %948 = vmatpush1.bf16.msra.mxu0 0
    %949 = vmatprep.subr.bf16.mxu0 0
    %950 = vmatpush1.bf16.msra.mxu0 0
    %951 = vmatprep.subr.bf16.mxu0 0
    %952 = vmatpush1.bf16.msra.mxu0 0
    %953 = vmatprep.subr.bf16.mxu0 0
    %954 = vmatpush1.bf16.msra.mxu0 0
    %955 = vmatprep.subr.bf16.mxu0 0
    %956 = vmatpush1.bf16.msra.mxu0 0
    %957 = vmatprep.subr.bf16.mxu0 0
    %958 = vmatpush1.bf16.msra.mxu0 0
    %959 = vmatprep.subr.bf16.mxu0 0
    %960 = vmatpush1.bf16.msra.mxu0 %v940
    %961 = vmatprep.subr.bf16.mxu0 0
    %962 = vmatpush2.bf16.msra.mxu0 0
    %963 = vmatprep.subr.bf16.mxu0 0
    %964 = vmatpush2.bf16.msra.mxu0 0
    %965 = vmatprep.subr.bf16.mxu0 0
    %966 = vmatpush2.bf16.msra.mxu0 0
    %967 = vmatprep.subr.bf16.mxu0 0
    %968 = vmatpush2.bf16.msra.mxu0 0
    %969 = vmatprep.subr.bf16.mxu0 0
    %970 = vmatpush2.bf16.msra.mxu0 0
    %971 = vmatprep.subr.bf16.mxu0 0
    %972 = vmatpush2.bf16.msra.mxu0 0
    %973 = vmatprep.subr.bf16.mxu0 0
    %974 = vmatpush2.bf16.msra.mxu0 0
    %975 = vmatprep.subr.bf16.mxu0 0
    %976 = vmatpush2.bf16.msra.mxu0 0
    %977 = vmatprep.mubr.bf16.mxu0 0
    %978 = vmatmul.mubr.bf16.gmra.mxu0 %v943
    %v979 = vpop.f32.mrf.mxu0
    %v980 = vadd.f32 %v905, %v979
    %v981 = vpop.f32.mrf.mxu0
    %v982 = vpop.f32.mrf.mxu0
    %v983 = vpop.f32.mrf.mxu0
    %984 = vdwg.mxu0
    %v985 = vld [vmem:[#allocation8] sm:$0x1]
    %v987 = vlaneseq
    %v988 = vshrl.u32 %v987, 7
    %v989 = vsub.s32 0, %v988
    %v990 = vrot.slane %v985, %v989
    %v992 = vadd.f32 %v980, %v990
    %v993 = vld [vmem:[#allocation10] sm:$0x1]
    %v994 = vld [vmem:[#allocation11] sm:$0x1]
    %v995 = vunpack.c.l.bf16 %v124
    %v996 = vunpack.c.l.bf16 %v125
    %v997 = vunpack.c.l.bf16 %v126
    %v998 = vunpack.c.l.bf16 %v127
    %v999 = vunpack.c.l.bf16 %v128
    %v1000 = vunpack.c.l.bf16 %v129
    %v1001 = vunpack.c.l.bf16 %v130
    %v1002 = vunpack.c.l.bf16 %v131
    %v1011 = vrot.slane %v996, 7
    %v1012 = vsel %vm844, %v1011, %v995
    %v1013 = vrot.slane %v997, 6
    %v1014 = vsel %vm846, %v1013, %v1012
    %v1015 = vrot.slane %v998, 5
    %v1016 = vsel %vm848, %v1015, %v1014
    %v1017 = vrot.slane %v999, 4
    %v1018 = vsel %vm850, %v1017, %v1016
    %v1019 = vrot.slane %v1000, 3
    %v1020 = vsel %vm852, %v1019, %v1018
    %v1021 = vrot.slane %v1001, 2
    %v1022 = vsel %vm854, %v1021, %v1020
    %v1023 = vrot.slane %v1002, 1
    %v1024 = vsel %vm856, %v1023, %v1022
    %v1026 = vadd.f32 %v992, %v1024
    %v1027 = vsel %vm175, %v1026, 0.0
    %1028 = vadd.xlane.f32.xlu0 %v1027
    %v1029 = vpop.xlane.xlu0 %1028
    %v1030 = vrcp.pop 32.0
    %v1031 = vmul.f32 %v1029, %v1030
    %v1032 = vsub.f32 %v1026, %v1031
    %v1033 = vmul.f32 %v1032, %v1032
    %v1034 = vsel %vm175, %v1033, 0.0
    %1035 = vadd.xlane.f32.xlu0 %v1034
    %v1036 = vpop.xlane.xlu0 %1035
    %v1037 = vmul.f32 %v1036, %v1030
    %v1038 = vadd.f32 %v1037, 1e-05
    %v1039 = vrsqrt.pop %v1038
    %v1040 = vmul.f32 %v1032, %v1039
    %v1042 = vlaneseq
    %v1043 = vshrl.u32 %v1042, 7
    %v1044 = vsub.s32 0, %v1043
    %v1045 = vrot.slane %v993, %v1044
    %v1047 = vmul.f32 %v1040, %v1045
    %v1049 = vlaneseq
    %v1050 = vshrl.u32 %v1049, 7
    %v1051 = vsub.s32 0, %v1050
    %v1052 = vrot.slane %v994, %v1051
    %v1054 = vadd.f32 %v1047, %v1052
    %v1055 = vpack.c.bf16 %v1054, %v1054
    %v1056 = vld [vmem:[%s8] sm:$0xf]
    %v1057 = vld [vmem:[%s8 + $0x4] sm:$0xf]
    %v1058 = vld [vmem:[%s8 + $0x8] sm:$0xf]
    %v1059 = vld [vmem:[%s8 + $0xc] sm:$0xf]
    %v1060 = vld [vmem:[%s9] sm:$0x1]
    %v1062 = vlaneseq
    %v1063 = vshrl.u32 %v1062, 7
    %v1064 = vsub.s32 0, %v1063
    %v1065 = vrot.slane %v1060, %v1064
    %v1071 = vunpack.c.l.b16 %v1056
    %v1072 = vunpack.c.l.b16 %v1057
    %v1073 = vunpack.c.l.b16 %v1058
    %v1074 = vunpack.c.l.b16 %v1059
    %v1075 = vpack.c.b16 %v1072, %v1071
    %v1076 = vpack.c.b16 %v1074, %v1073
    %v1080 = vsel %vm175, %v1055, 0
    %1082 = vmatprep.subr.bf16.mxu0 0
    %1083 = vmatpush1.bf16.msra.mxu0 0
    %1084 = vmatprep.subr.bf16.mxu0 0
    %1085 = vmatpush1.bf16.msra.mxu0 0
    %1086 = vmatprep.subr.bf16.mxu0 0
    %1087 = vmatpush1.bf16.msra.mxu0 0
    %1088 = vmatprep.subr.bf16.mxu0 0
    %1089 = vmatpush1.bf16.msra.mxu0 0
    %1090 = vmatprep.subr.bf16.mxu0 0
    %1091 = vmatpush1.bf16.msra.mxu0 0
    %1092 = vmatprep.subr.bf16.mxu0 0
    %1093 = vmatpush1.bf16.msra.mxu0 0
    %1094 = vmatprep.subr.bf16.mxu0 0
    %1095 = vmatpush1.bf16.msra.mxu0 %v1076
    %1096 = vmatprep.subr.bf16.mxu0 0
    %1097 = vmatpush1.bf16.msra.mxu0 %v1075
    %1098 = vmatprep.subr.bf16.mxu0 0
    %1099 = vmatpush2.bf16.msra.mxu0 0
    %1100 = vmatprep.subr.bf16.mxu0 0
    %1101 = vmatpush2.bf16.msra.mxu0 0
    %1102 = vmatprep.subr.bf16.mxu0 0
    %1103 = vmatpush2.bf16.msra.mxu0 0
    %1104 = vmatprep.subr.bf16.mxu0 0
    %1105 = vmatpush2.bf16.msra.mxu0 0
    %1106 = vmatprep.subr.bf16.mxu0 0
    %1107 = vmatpush2.bf16.msra.mxu0 0
    %1108 = vmatprep.subr.bf16.mxu0 0
    %1109 = vmatpush2.bf16.msra.mxu0 0
    %1110 = vmatprep.subr.bf16.mxu0 0
    %1111 = vmatpush2.bf16.msra.mxu0 0
    %1112 = vmatprep.subr.bf16.mxu0 0
    %1113 = vmatpush2.bf16.msra.mxu0 0
    %1114 = vmatprep.mubr.bf16.mxu0 0
    %1115 = vmatmul.mubr.bf16.gmra.mxu0 %v1080
    %v1116 = vpop.f32.mrf.mxu0
    %v1117 = vadd.f32 %v1065, %v1116
    %v1118 = vpop.f32.mrf.mxu0
    %v1119 = vpop.f32.mrf.mxu0
    %v1120 = vpop.f32.mrf.mxu0
    %1121 = vdwg.mxu0
    %v1122 = vmax.f32 %v1117, 0.0
    %v1123 = vpack.c.bf16 %v1122, %v1122
    %v1124 = vld [vmem:[%s10] sm:$0xf]
    %v1125 = vld [vmem:[%s10 + $0x4] sm:$0xf]
    %v1126 = vld [vmem:[%s10 + $0x8] sm:$0xf]
    %v1127 = vld [vmem:[%s10 + $0xc] sm:$0xf]
    %v1128 = vld [vmem:[%s10 + $0x10] sm:$0xf]
    %v1129 = vld [vmem:[%s10 + $0x14] sm:$0xf]
    %v1130 = vld [vmem:[%s10 + $0x18] sm:$0xf]
    %v1131 = vld [vmem:[%s10 + $0x1c] sm:$0xf]
    %v1132 = vld [vmem:[%s11] sm:$0x1]
    %v1134 = vlaneseq
    %v1135 = vshrl.u32 %v1134, 7
    %v1136 = vsub.s32 0, %v1135
    %v1137 = vrot.slane %v1132, %v1136
    %v1147 = vunpack.c.l.b16 %v1124
    %v1148 = vunpack.c.l.b16 %v1125
    %v1149 = vunpack.c.l.b16 %v1126
    %v1150 = vunpack.c.l.b16 %v1127
    %v1151 = vunpack.c.l.b16 %v1128
    %v1152 = vunpack.c.l.b16 %v1129
    %v1153 = vunpack.c.l.b16 %v1130
    %v1154 = vunpack.c.l.b16 %v1131
    %v1155 = vpack.c.b16 %v1148, %v1147
    %v1156 = vpack.c.b16 %v1150, %v1149
    %v1157 = vpack.c.b16 %v1152, %v1151
    %v1158 = vpack.c.b16 %v1154, %v1153
    %vm1163 = vcmask 523264
    %v1165 = vsel %vm1163, %v1123, 0
    %1167 = vmatprep.subr.bf16.mxu0 0
    %1168 = vmatpush1.bf16.msra.mxu0 0
    %1169 = vmatprep.subr.bf16.mxu0 0
    %1170 = vmatpush1.bf16.msra.mxu0 0
    %1171 = vmatprep.subr.bf16.mxu0 0
    %1172 = vmatpush1.bf16.msra.mxu0 0
    %1173 = vmatprep.subr.bf16.mxu0 0
    %1174 = vmatpush1.bf16.msra.mxu0 0
    %1175 = vmatprep.subr.bf16.mxu0 0
    %1176 = vmatpush1.bf16.msra.mxu0 %v1158
    %1177 = vmatprep.subr.bf16.mxu0 0
    %1178 = vmatpush1.bf16.msra.mxu0 %v1157
    %1179 = vmatprep.subr.bf16.mxu0 0
    %1180 = vmatpush1.bf16.msra.mxu0 %v1156
    %1181 = vmatprep.subr.bf16.mxu0 0
    %1182 = vmatpush1.bf16.msra.mxu0 %v1155
    %1183 = vmatprep.subr.bf16.mxu0 0
    %1184 = vmatpush2.bf16.msra.mxu0 0
    %1185 = vmatprep.subr.bf16.mxu0 0
    %1186 = vmatpush2.bf16.msra.mxu0 0
    %1187 = vmatprep.subr.bf16.mxu0 0
    %1188 = vmatpush2.bf16.msra.mxu0 0
    %1189 = vmatprep.subr.bf16.mxu0 0
    %1190 = vmatpush2.bf16.msra.mxu0 0
    %1191 = vmatprep.subr.bf16.mxu0 0
    %1192 = vmatpush2.bf16.msra.mxu0 0
    %1193 = vmatprep.subr.bf16.mxu0 0
    %1194 = vmatpush2.bf16.msra.mxu0 0
    %1195 = vmatprep.subr.bf16.mxu0 0
    %1196 = vmatpush2.bf16.msra.mxu0 0
    %1197 = vmatprep.subr.bf16.mxu0 0
    %1198 = vmatpush2.bf16.msra.mxu0 0
    %1199 = vmatprep.mubr.bf16.mxu0 0
    %1200 = vmatmul.mubr.bf16.gmra.mxu0 %v1165
    %v1201 = vpop.f32.mrf.mxu0
    %v1202 = vadd.f32 %v1137, %v1201
    %v1203 = vpop.f32.mrf.mxu0
    %v1204 = vpop.f32.mrf.mxu0
    %v1205 = vpop.f32.mrf.mxu0
    %1206 = vdwg.mxu0
    %v1207 = vadd.f32 %v1202, %v1054
    %v1208 = vsel %vm175, %v1207, 0.0
    %1209 = vadd.xlane.f32.xlu0 %v1208
    %v1210 = vpop.xlane.xlu0 %1209
    %v1211 = vmul.f32 %v1210, %v1030
    %v1212 = vsub.f32 %v1207, %v1211
    %v1213 = vmul.f32 %v1212, %v1212
    %v1214 = vsel %vm175, %v1213, 0.0
    %1215 = vadd.xlane.f32.xlu0 %v1214
    %v1216 = vpop.xlane.xlu0 %1215
    %v1217 = vmul.f32 %v1216, %v1030
    %v1218 = vadd.f32 %v1217, 1e-05
    %v1219 = vrsqrt.pop %v1218
    %v1220 = vmul.f32 %v1212, %v1219
    %v1221 = vmul.f32 %v1220, %v1045
    %v1222 = vadd.f32 %v1221, %v1052
    %v1223 = vld [vmem:[%s12] sm:$0x1]
    %v1225 = vlaneseq
    %v1226 = vshrl.u32 %v1225, 7
    %v1227 = vsub.s32 0, %v1226
    %v1228 = vrot.slane %v1223, %v1227
    %v1230 = vmul.f32 %v1222, %v1228
    %v1231 = vsel %vm175, %v1230, 0.0
    %1232 = vadd.xlane.f32.xlu0 %v1231
    %v1233 = vpop.xlane.xlu0 %1232
    %v1234 = vld [vmem:[#allocation2] sm:$0x1]
    %v1236 = vlaneseq
    %v1237 = vshrl.u32 %v1236, 7
    %v1238 = vsub.s32 0, %v1237
    %v1239 = vrot.slane %v1234, %v1238
    %v1241 = vadd.f32 %v1233, %v1239
    %v1242 = vxor.u32 %v1241, 2147483648
    %v1243 = vmul.f32 %v1242, 1.442695
    %v1244 = vpow.pop %v1243
    %v1245 = vadd.f32 %v1244, 1.0
    %v1246 = vrcp.pop %v1245
    %v1247 = vmul.f32 1.0, %v1246
    %vm1248 = vcmask 7168
    %1249 = vst.msk [vmem:[%s14] sm:$0xff] %vm1248, %v1247
    // Predicated region
    $region82: #{tpu_custom_call.1} parent=1 // pred_check
      _
    $region83: #{tpu_custom_call.1} parent=1 // pred_check_branch
      %1251 = sbr.rel (0) target = $region85
    $region84: #{tpu_custom_call.1} parent=1 // pred_region
      _
    $region85: #{tpu_custom_call.1} parent=1 // pred_fallthru
      _
    // Predicated region
    $region86: #{tpu_custom_call.1} parent=1 // pred_check
      _
    $region87: #{tpu_custom_call.1} parent=1 // pred_check_branch
      %1253 = sbr.rel (0) target = $region89
    $region88: #{tpu_custom_call.1} parent=1 // pred_region
      _
    $region89: #{tpu_custom_call.1} parent=1 // pred_fallthru
      _
    %1254 = vsyncpa [#allocation4], 1
    %1255 = vsyncpa [#allocation6], 1
    %1256 = vsyncpa [#allocation9], 1
    %1257 = vsyncpa [#allocation12], 1

</llo_original>
